<compile_context>
chip_gen: v6e
topology: v6e:2x2x1
jax: 0.10.0
libtpu: 0.0.40
codegen_flags: <defaults>
</compile_context>

<pallas_src>
import math
import jax
import jax.numpy as jnp
from jax import lax
from jax.experimental import pallas as pl
from jax.experimental.pallas import tpu as pltpu

# ------------------------- configuration (small, module-consistent) ----------
B = 2                  # batch
S = 16                 # max_seq_len
HD = 64                # hidden_dim
HALF = HD // 2         # comb_proj / cont_proj width (32)
N_HEADS = 2
HEAD_DIM = HD // N_HEADS           # 32
INTD = HD // N_HEADS               # categorical embedding width (32)
N_CAT = 6
N_CONT = 3
N_ROWS = S * B                     # folded rows, time-major: row = t*B + b
LN_EPS_PROJ = 1e-6                 # comb_proj / cont_proj LayerNorm eps
LN_EPS_ATTN = 1e-5                 # layer_norm1 default eps

# small synthetic vocab sizes (embedding lookup is glue; sizes don't affect kernel)
N_TESTS, N_QUESTIONS, N_TAGS, N_QN, N_BIG = 50, 40, 30, 20, 9

# ------------------------- packed small-parameter layout ----------------------
PACK_W = 4 * HD        # 256 lanes (widest row: LSTM bias)
PACK_R = 24            # 19 used rows, padded to a multiple of 8
(_PK_COMB_B, _PK_COMB_G, _PK_COMB_BETA,
 _PK_CW0, _PK_CW1, _PK_CW2,
 _PK_CONT_B, _PK_CONT_G, _PK_CONT_BETA,
 _PK_BQ, _PK_BQ_EFF, _PK_B_KV,
 _PK_OUT_B, _PK_LN1_G, _PK_LN1_B,
 _PK_LSTM_B1, _PK_LSTM_B2,
 _PK_FC_W, _PK_FC_B) = range(19)


# ------------------------- shared math ---------------------------------------
def _layernorm(x, g, b, eps):
    mu = jnp.mean(x, axis=-1, keepdims=True)
    var = jnp.mean((x - mu) ** 2, axis=-1, keepdims=True)
    return (x - mu) * lax.rsqrt(var + eps) * g + b


def _lstm_gates(g, c):
    """Gate math with permuted gate order i|f|o|g.

    One wide sigmoid (as 0.5*tanh(0.5x)+0.5) over the first 3*HD lanes, one tanh over
    the last HD lanes. Returns (h_new, c_new), all f32.
    """
    sg = 0.5 * jnp.tanh(0.5 * g[:, 0:3 * HD]) + 0.5
    i_g = sg[:, 0:HD]
    f_g = sg[:, HD:2 * HD]
    o_g = sg[:, 2 * HD:3 * HD]
    g_g = jnp.tanh(g[:, 3 * HD:4 * HD])
    c_new = f_g * c + i_g * g_g
    h_new = o_g * jnp.tanh(c_new)
    return h_new, c_new


# ------------------------- Pallas kernel --------------------------------------
def sakt_lstm_kernel(
    act_ref,                     # (32, 256) bf16  [cat (0:192) | inter (192:256)]
    cont_ref,                    # (32, 3)   f32
    front_w_ref,                 # (256, 160) bf16 block-diag [kv | comb] weight
    attn_w_ref,                  # (64, 192) bf16  [lin_q_w | Wq_eff | attn_out_w]
    lstm_w_ref,                  # (256, 256) bf16 [w_ih1 ; w_hh1 ; w_ih2 ; w_hh2] (perm)
    pk_ref,                      # (24, 256) f32   packed small params
    mask_ref,                    # (32, 32)  f32   static additive attention mask
    o_ref,                       # (32, 1)   f32   output logits (time-major rows)
    xp_buf,                      # (32, 256) f32   scratch: layer-1 input projections
):
    f32, bf16 = jnp.float32, jnp.bfloat16

    pk = pk_ref[...]
    prow = lambda r, n: pk[r:r + 1, 0:n]
    comb_b, comb_g, comb_beta = prow(_PK_COMB_B, HALF), prow(_PK_COMB_G, HALF), prow(_PK_COMB_BETA, HALF)
    cw0, cw1, cw2 = prow(_PK_CW0, HALF), prow(_PK_CW1, HALF), prow(_PK_CW2, HALF)
    cont_b, cont_g, cont_beta = prow(_PK_CONT_B, HALF), prow(_PK_CONT_G, HALF), prow(_PK_CONT_BETA, HALF)
    b_q, bq_eff = prow(_PK_BQ, HD), prow(_PK_BQ_EFF, HD)
    b_kv = prow(_PK_B_KV, 2 * HD)
    out_b, ln1_g, ln1_b = prow(_PK_OUT_B, HD), prow(_PK_LN1_G, HD), prow(_PK_LN1_B, HD)
    lstm_b1, lstm_b2 = prow(_PK_LSTM_B1, 4 * HD), prow(_PK_LSTM_B2, 4 * HD)
    fc_w, fc_b = prow(_PK_FC_W, HD), prow(_PK_FC_B, 1)

    # ---- fused comb_proj + k/v in-projection: ONE (32,256)x(256,160) matmul ---
    # output lanes [0:128] = kv (from inter rows), [128:160] = comb pre-LN (from cat rows)
    fr = jnp.dot(act_ref[...], front_w_ref[...], preferred_element_type=f32)
    kv = fr[:, 0:2 * HD] + b_kv
    k = kv[:, 0:HD]
    v = kv[:, HD:2 * HD]
    x_cat = _layernorm(fr[:, 2 * HD:2 * HD + HALF] + comb_b, comb_g, comb_beta, LN_EPS_PROJ)

    # ---- cont_proj as 3 FMAs (degenerate K=3 matmul kept off the MXU) --------
    cont = cont_ref[...]
    x_cont = cont[:, 0:1] * cw0 + cont[:, 1:2] * cw1 + cont[:, 2:3] * cw2 + cont_b
    x_cont = _layernorm(x_cont, cont_g, cont_beta, LN_EPS_PROJ)

    # ---- query_ex (residual) and pre-scaled q in one pair of matmuls ---------
    # attn_w columns [0:64] = lin_q_w, [64:128] = Wq_eff (lin_q ∘ in_q, scale folded)
    qq = (jnp.dot(x_cat.astype(bf16), attn_w_ref[0:HALF, 0:2 * HD], preferred_element_type=f32)
          + jnp.dot(x_cont.astype(bf16), attn_w_ref[HALF:HD, 0:2 * HD], preferred_element_type=f32))
    query_ex = qq[:, 0:HD] + b_q
    q = qq[:, HD:2 * HD] + bq_eff

    # ---- attention with static block-diagonal + causal additive mask ---------
    mask = mask_ref[...]                                                  # (32, 32) f32
    kT = k.T.astype(bf16)                                                 # (64, 32)
    heads = []
    for h in range(N_HEADS):                                              # static unroll
        lo, hi = h * HEAD_DIM, (h + 1) * HEAD_DIM
        s = jnp.dot(q[:, lo:hi].astype(bf16), kT[lo:hi, :], preferred_element_type=f32) + mask
        m = jnp.max(s, axis=-1, keepdims=True)
        p = jnp.exp(s - m)
        p = p * pl.reciprocal(jnp.sum(p, axis=-1, keepdims=True), approx=True)
        heads.append(jnp.dot(p.astype(bf16), v[:, lo:hi].astype(bf16), preferred_element_type=f32))
    head_cat = jnp.concatenate(heads, axis=-1)                            # (32, 64) f32
    attn_out = jnp.dot(head_cat.astype(bf16), attn_w_ref[:, 2 * HD:3 * HD],
                       preferred_element_type=f32) + out_b

    # ---- residual + LayerNorm(eps=1e-5) --------------------------------------
    atn = _layernorm(query_ex + attn_out, ln1_g, ln1_b, LN_EPS_ATTN)      # (32, 64) f32

    # ---- fused 2-layer LSTM + final fc ---------------------------------------
    # layer-1 input projections batched over all time steps (off the recurrence path)
    xp_buf[...] = jnp.dot(atn.astype(bf16), lstm_w_ref[0:HD, :],
                          preferred_element_type=f32) + lstm_b1
    w_hh1 = lstm_w_ref[HD:2 * HD, :]                                      # (64, 256) bf16
    w_ihh2 = lstm_w_ref[2 * HD:4 * HD, :]                                 # (128, 256) bf16

    h1 = jnp.zeros((B, HD), f32)
    c1 = jnp.zeros((B, HD), f32)
    h2 = jnp.zeros((B, HD), f32)
    c2 = jnp.zeros((B, HD), f32)
    for t in range(S):                                                    # static unroll (S=16)
        # layer 1 step t
        g1 = xp_buf[t * B:(t + 1) * B, :] + jnp.dot(h1.astype(bf16), w_hh1,
                                                    preferred_element_type=f32)
        h1, c1 = _lstm_gates(g1, c1)
        # layer 2 step t: [h1_t | h2_{t-1}] against stacked [w_ih2 ; w_hh2]
        x2 = jnp.concatenate([h1, h2], axis=-1).astype(bf16)              # (2, 128)
        g2 = jnp.dot(x2, w_ihh2, preferred_element_type=f32) + lstm_b2
        h2, c2 = _lstm_gates(g2, c2)
        # final fc folded into the step: VPU multiply + lane reduction
        o_ref[t * B:(t + 1) * B, :] = jnp.sum(h2 * fc_w, axis=-1, keepdims=True) + fc_b


# ------------------------- wrapper --------------------------------------------
def sakt_lstm_pallas(inter_emb, cat_embed, cont, p):
    f32, bf16 = jnp.float32, jnp.bfloat16
    # fold (B, S) -> time-major rows (row = t*B + b)
    tmajor = lambda x: jnp.transpose(x, (1, 0, 2)).reshape(S * B, x.shape[-1])
    cat_tm = tmajor(cat_embed)                                            # (32, 192)
    inter_tm = tmajor(inter_emb)                                          # (32, 64)
    cont_tm = tmajor(cont)                                                # (32, 3) f32 (VPU path)
    act = jnp.concatenate([cat_tm, inter_tm], axis=-1).astype(bf16)       # (32, 256)

    # ---- offline weight fusion ------------------------------------------------
    scale = 1.0 / math.sqrt(HEAD_DIM)
    in_w, in_b = p["attn_in_w"], p["attn_in_b"]
    in_wq = in_w[:, 0:HD] * scale                                         # fold softmax scale
    in_bq = in_b[:, 0:HD] * scale
    wq_eff = p["lin_q_w"] @ in_wq                                         # (64, 64)
    bq_eff = p["lin_q_b"] @ in_wq + in_bq                                 # (1, 64)
    w_k_eff = p["lin_k_w"] @ in_w[:, HD:2 * HD]
    b_k_eff = p["lin_k_b"] @ in_w[:, HD:2 * HD] + in_b[:, HD:2 * HD]
    w_v_eff = p["lin_v_w"] @ in_w[:, 2 * HD:3 * HD]
    b_v_eff = p["lin_v_b"] @ in_w[:, 2 * HD:3 * HD] + in_b[:, 2 * HD:3 * HD]
    w_kv = jnp.concatenate([w_k_eff, w_v_eff], axis=1)                    # (64, 128)
    b_kv = jnp.concatenate([b_k_eff, b_v_eff], axis=1)                    # (1, 128)

    # front slab: block-diag so [cat|inter] @ front_w = [kv | comb_pre] in one matmul
    front = jnp.zeros((4 * HD, 2 * HD + HALF), f32)                       # (256, 160)
    front = front.at[0:N_CAT * INTD, 2 * HD:2 * HD + HALF].set(p["comb_w"])
    front = front.at[N_CAT * INTD:4 * HD, 0:2 * HD].set(w_kv)
    front_w = front.astype(bf16)

    # attention slab: [lin_q_w | Wq_eff | attn_out_w] along lanes
    attn_slab = jnp.concatenate([p["lin_q_w"], wq_eff, p["attn_out_w"]], axis=1).astype(bf16)

    # LSTM slab with gate-column permutation i|f|g|o -> i|f|o|g (PyTorch -> kernel order)
    def perm_gates(w):
        return jnp.concatenate([w[..., 0:2 * HD], w[..., 3 * HD:4 * HD], w[..., 2 * HD:3 * HD]],
                               axis=-1)

    lstm_slab = jnp.concatenate(
        [perm_gates(p["lstm_w_ih1"]), perm_gates(p["lstm_w_hh1"]),
         perm_gates(p["lstm_w_ih2"]), perm_gates(p["lstm_w_hh2"])], axis=0).astype(bf16)  # (256,256)

    # static block-diagonal + causal additive mask over the time-major folded batch
    r = jnp.arange(N_ROWS)
    bad = ((r[None, :] % B) != (r[:, None] % B)) | ((r[None, :] // B) > (r[:, None] // B))
    mask = jnp.where(bad, jnp.float32(-1e30), jnp.float32(0.0)).astype(jnp.float32)  # (32, 32)

    # ---- pack all small (1, n) params into a single (PACK_R, PACK_W) operand --
    def row(vec, n):
        v = jnp.reshape(vec, (-1,))[:n].astype(jnp.float32)
        return jnp.pad(v, (0, PACK_W - n))

    rows = [jnp.zeros((PACK_W,), jnp.float32)] * PACK_R
    rows[_PK_COMB_B] = row(p["comb_b"], HALF)
    rows[_PK_COMB_G] = row(p["comb_g"], HALF)
    rows[_PK_COMB_BETA] = row(p["comb_beta"], HALF)
    rows[_PK_CW0] = row(p["cont_w"][0], HALF)
    rows[_PK_CW1] = row(p["cont_w"][1], HALF)
    rows[_PK_CW2] = row(p["cont_w"][2], HALF)
    rows[_PK_CONT_B] = row(p["cont_b"], HALF)
    rows[_PK_CONT_G] = row(p["cont_g"], HALF)
    rows[_PK_CONT_BETA] = row(p["cont_beta"], HALF)
    rows[_PK_BQ] = row(p["lin_q_b"], HD)
    rows[_PK_BQ_EFF] = row(bq_eff, HD)
    rows[_PK_B_KV] = row(b_kv, 2 * HD)
    rows[_PK_OUT_B] = row(p["attn_out_b"], HD)
    rows[_PK_LN1_G] = row(p["ln1_g"], HD)
    rows[_PK_LN1_B] = row(p["ln1_b"], HD)
    rows[_PK_LSTM_B1] = row(perm_gates(p["lstm_b1"]), 4 * HD)
    rows[_PK_LSTM_B2] = row(perm_gates(p["lstm_b2"]), 4 * HD)
    rows[_PK_FC_W] = row(p["fc_w"], HD)
    rows[_PK_FC_B] = row(p["fc_b"], 1)
    packed = jnp.stack(rows, axis=0)                                      # (24, 256) f32

    inputs = [act, cont_tm, front_w, attn_slab, lstm_slab, packed, mask]
    in_specs = [pl.BlockSpec(x.shape, lambda i: (0, 0)) for x in inputs]

    out = pl.pallas_call(
        sakt_lstm_kernel,
        out_shape=jax.ShapeDtypeStruct((N_ROWS, 1), jnp.float32),
        grid_spec=pltpu.PrefetchScalarGridSpec(
            num_scalar_prefetch=0,
            grid=(1,),                                    # single fused invocation
            in_specs=in_specs,
            out_specs=pl.BlockSpec((N_ROWS, 1), lambda i: (0, 0)),
            scratch_shapes=[
                pltpu.VMEM((N_ROWS, 4 * HD), jnp.float32),   # layer-1 LSTM input projections
            ],
        ),
        compiler_params=pltpu.CompilerParams(dimension_semantics=("arbitrary",)),
    )(*inputs)
    return out.reshape(S, B).T                            # back to (B, S)


# ------------------------- pure-JAX reference (f32, module semantics) ---------
def _lstm_layer_ref(x, w_ih, w_hh, b):
    bs, sl, hd = x.shape
    h = jnp.zeros((bs, hd), jnp.float32)
    c = jnp.zeros((bs, hd), jnp.float32)
    outs = []
    for t in range(sl):
        g = x[:, t, :] @ w_ih + h @ w_hh + b
        i_g = jax.nn.sigmoid(g[:, 0:hd])
        f_g = jax.nn.sigmoid(g[:, hd:2 * hd])
        g_g = jnp.tanh(g[:, 2 * hd:3 * hd])
        o_g = jax.nn.sigmoid(g[:, 3 * hd:4 * hd])
        c = f_g * c + i_g * g_g
        h = o_g * jnp.tanh(c)
        outs.append(h)
    return jnp.stack(outs, axis=1)


def sakt_lstm_reference(inter_emb, cat_embed, cont, p):
    x_cat = _layernorm(cat_embed @ p["comb_w"] + p["comb_b"], p["comb_g"], p["comb_beta"], LN_EPS_PROJ)
    x_cont = _layernorm(cont @ p["cont_w"] + p["cont_b"], p["cont_g"], p["cont_beta"], LN_EPS_PROJ)
    item = jnp.concatenate([x_cat, x_cont], axis=-1)
    value = inter_emb @ p["lin_v_w"] + p["lin_v_b"]
    key_ = inter_emb @ p["lin_k_w"] + p["lin_k_b"]
    query = item @ p["lin_q_w"] + p["lin_q_b"]
    q = query @ p["attn_in_w"][:, 0:HD] + p["attn_in_b"][:, 0:HD]
    k = key_ @ p["attn_in_w"][:, HD:2 * HD] + p["attn_in_b"][:, HD:2 * HD]
    v = value @ p["attn_in_w"][:, 2 * HD:] + p["attn_in_b"][:, 2 * HD:]
    qh = q.reshape(B, S, N_HEADS, HEAD_DIM)
    kh = k.reshape(B, S, N_HEADS, HEAD_DIM)
    vh = v.reshape(B, S, N_HEADS, HEAD_DIM)
    scores = jnp.einsum("bihd,bjhd->bhij", qh, kh) / math.sqrt(HEAD_DIM)
    causal = jnp.arange(S)[:, None] < jnp.arange(S)[None, :]
    scores = jnp.where(causal[None, None], -jnp.inf, scores)
    attn = jax.nn.softmax(scores, axis=-1)
    ao = jnp.einsum("bhij,bjhd->bihd", attn, vh).reshape(B, S, HD)
    ao = ao @ p["attn_out_w"] + p["attn_out_b"]
    atn = _layernorm(query + ao, p["ln1_g"], p["ln1_b"], LN_EPS_ATTN)
    h1 = _lstm_layer_ref(atn, p["lstm_w_ih1"], p["lstm_w_hh1"], p["lstm_b1"])
    h2 = _lstm_layer_ref(h1, p["lstm_w_ih2"], p["lstm_w_hh2"], p["lstm_b2"])
    return (h2 @ p["fc_w"] + p["fc_b"])[..., 0]


# ------------------------- deterministic params & inputs ----------------------
def init_params(key):
    ks = iter(jax.random.split(key, 64))
    nrm = lambda shape, s=0.1: (jax.random.normal(next(ks), shape, jnp.float32) * s)
    p = {}
    # embedding tables (glue lookups)
    p["emb_test"] = nrm((N_TESTS + 1, INTD))
    p["emb_question"] = nrm((N_QUESTIONS + 1, INTD))
    p["emb_tag"] = nrm((N_TAGS + 1, INTD))
    p["emb_interaction"] = nrm((3, INTD))
    p["emb_qN"] = nrm((N_QN + 1, INTD))
    p["emb_big"] = nrm((N_BIG + 1, INTD))
    p["interaction_dic"] = nrm((N_QUESTIONS + 1, 3, HD))   # per-item (3, HD) tables
    p["pos_emb"] = nrm((S, HD))
    # comb_proj / cont_proj (Linear + LayerNorm)
    p["comb_w"] = nrm((N_CAT * INTD, HALF))
    p["comb_b"] = nrm((1, HALF))
    p["comb_g"] = jnp.ones((1, HALF), jnp.float32)
    p["comb_beta"] = jnp.zeros((1, HALF), jnp.float32)
    p["cont_w"] = nrm((N_CONT, HALF))
    p["cont_b"] = nrm((1, HALF))
    p["cont_g"] = jnp.ones((1, HALF), jnp.float32)
    p["cont_beta"] = jnp.zeros((1, HALF), jnp.float32)
    # SAKT linears (value, key, query)
    for name in ("lin_v", "lin_k", "lin_q"):
        p[name + "_w"] = nrm((HD, HD))
        p[name + "_b"] = nrm((1, HD))
    # MultiheadAttention in/out projections (x @ W layout, columns [q|k|v])
    p["attn_in_w"] = nrm((HD, 3 * HD))
    p["attn_in_b"] = nrm((1, 3 * HD))
    p["attn_out_w"] = nrm((HD, HD))
    p["attn_out_b"] = nrm((1, HD))
    # layer_norm1
    p["ln1_g"] = jnp.ones((1, HD), jnp.float32)
    p["ln1_b"] = jnp.zeros((1, HD), jnp.float32)
    # 2-layer LSTM (x @ W layout, gate order i|f|g|o, bias = b_ih + b_hh)
    for l in (1, 2):
        p[f"lstm_w_ih{l}"] = nrm((HD, 4 * HD))
        p[f"lstm_w_hh{l}"] = nrm((HD, 4 * HD))
        p[f"lstm_b{l}"] = nrm((1, 4 * HD))
    # fc (use_res=False -> Linear(HD, 1))
    p["fc_w"] = nrm((HD, 1))
    p["fc_b"] = nrm((1, 1))
    return p


def build_inputs(key):
    ks = iter(jax.random.split(key, 16))
    ri = lambda hi: jax.random.randint(next(ks), (B, S), 0, hi)
    cat = {
        "testId": ri(N_TESTS + 1),
        "assessmentItemID": ri(N_QUESTIONS + 1),
        "KnowledgeTag": ri(N_TAGS + 1),
        "interaction": ri(3),
        "question_N": ri(N_QN + 1),
        "bigclass": ri(N_BIG + 1),
    }
    cont = [jax.random.uniform(next(ks), (B, S), jnp.float32) for _ in range(N_CONT)]
    return cat, cont


def embed_glue(params, cat, cont_list):
    # SAKT.get_interaction: per-item interaction table lookup + positional embedding
    inter_emb = (params["interaction_dic"][cat["assessmentItemID"], cat["interaction"]]
                 + params["pos_emb"][None, :, :])                                   # (B, S, HD)
    # ModelBase.dic_forward categorical concat (fixed dict order)
    cat_embed = jnp.concatenate([
        params["emb_test"][cat["testId"]],
        params["emb_question"][cat["assessmentItemID"]],
        params["emb_tag"][cat["KnowledgeTag"]],
        params["emb_interaction"][cat["interaction"]],
        params["emb_qN"][cat["question_N"]],
        params["emb_big"][cat["bigclass"]],
    ], axis=-1)                                                                      # (B, S, 192)
    cont = jnp.stack(cont_list, axis=-1)                                             # (B, S, 3)
    return inter_emb, cat_embed, cont


if __name__ == "__main__":
    root = jax.random.PRNGKey(0)
    k_params, k_inputs = jax.random.split(root)
    params = init_params(k_params)
    cat, cont_list = build_inputs(k_inputs)

    inter_emb, cat_embed, cont = embed_glue(params, cat, cont_list)

    out = sakt_lstm_pallas(inter_emb, cat_embed, cont, params)
    out = jax.block_until_ready(out)

    ref = sakt_lstm_reference(inter_emb, cat_embed, cont, params)
    assert out.shape == (B, S), out.shape
    # tolerance accounts for bf16 MXU operands (f32 accumulate) and approx reciprocal
    if not jnp.allclose(out, ref, atol=5e-2, rtol=5e-2):
        raise AssertionError(f"mismatch vs reference: max abs err "
                             f"{float(jnp.max(jnp.abs(out - ref)))}")
    print("KERNEL_OK")
</pallas_src>

<mosaic_0001>
module attributes {stable_mosaic.version = 11 : i64} {
  func.func @sakt_lstm_kernel(%arg0: i32, %arg1: memref<32x256xbf16, #tpu.memory_space<vmem>>, %arg2: memref<32x3xf32, #tpu.memory_space<vmem>>, %arg3: memref<256x160xbf16, #tpu.memory_space<vmem>>, %arg4: memref<64x192xbf16, #tpu.memory_space<vmem>>, %arg5: memref<256x256xbf16, #tpu.memory_space<vmem>>, %arg6: memref<24x256xf32, #tpu.memory_space<vmem>>, %arg7: memref<32x32xf32, #tpu.memory_space<vmem>>, %arg8: memref<32x1xf32, #tpu.memory_space<vmem>>, %arg9: memref<32x256xf32, #tpu.memory_space<vmem>>) attributes {dimension_semantics = [#tpu.dimension_semantics<arbitrary>], iteration_bounds = array<i64: 1>, scalar_prefetch = 0 : i64, scratch_operands = 1 : i64, tpu.core_type = #tpu.core_type<tc>, window_params = [{pipeline_mode = #tpu.pipeline_mode<synchronous>, transform_indices = @transform_0, window_bounds = array<i64: 32, 256>}, {pipeline_mode = #tpu.pipeline_mode<synchronous>, transform_indices = @transform_1, window_bounds = array<i64: 32, 3>}, {pipeline_mode = #tpu.pipeline_mode<synchronous>, transform_indices = @transform_2, window_bounds = array<i64: 256, 160>}, {pipeline_mode = #tpu.pipeline_mode<synchronous>, transform_indices = @transform_3, window_bounds = array<i64: 64, 192>}, {pipeline_mode = #tpu.pipeline_mode<synchronous>, transform_indices = @transform_4, window_bounds = array<i64: 256, 256>}, {pipeline_mode = #tpu.pipeline_mode<synchronous>, transform_indices = @transform_5, window_bounds = array<i64: 24, 256>}, {pipeline_mode = #tpu.pipeline_mode<synchronous>, transform_indices = @transform_6, window_bounds = array<i64: 32, 32>}, {pipeline_mode = #tpu.pipeline_mode<synchronous>, transform_indices = @transform_7, window_bounds = array<i64: 32, 1>}]} {
    %c0 = arith.constant 0 : index
    %c0_0 = arith.constant 0 : index
    %0 = vector.load %arg6[%c0, %c0_0] : memref<24x256xf32, #tpu.memory_space<vmem>>, vector<24x256xf32>
    %1 = vector.extract_strided_slice %0 {offsets = [0, 0], sizes = [1, 32], strides = [1, 1]} : vector<24x256xf32> to vector<1x32xf32>
    %2 = vector.extract_strided_slice %0 {offsets = [1, 0], sizes = [1, 32], strides = [1, 1]} : vector<24x256xf32> to vector<1x32xf32>
    %3 = vector.extract_strided_slice %0 {offsets = [2, 0], sizes = [1, 32], strides = [1, 1]} : vector<24x256xf32> to vector<1x32xf32>
    %4 = vector.extract_strided_slice %0 {offsets = [3, 0], sizes = [1, 32], strides = [1, 1]} : vector<24x256xf32> to vector<1x32xf32>
    %5 = vector.extract_strided_slice %0 {offsets = [4, 0], sizes = [1, 32], strides = [1, 1]} : vector<24x256xf32> to vector<1x32xf32>
    %6 = vector.extract_strided_slice %0 {offsets = [5, 0], sizes = [1, 32], strides = [1, 1]} : vector<24x256xf32> to vector<1x32xf32>
    %7 = vector.extract_strided_slice %0 {offsets = [6, 0], sizes = [1, 32], strides = [1, 1]} : vector<24x256xf32> to vector<1x32xf32>
    %8 = vector.extract_strided_slice %0 {offsets = [7, 0], sizes = [1, 32], strides = [1, 1]} : vector<24x256xf32> to vector<1x32xf32>
    %9 = vector.extract_strided_slice %0 {offsets = [8, 0], sizes = [1, 32], strides = [1, 1]} : vector<24x256xf32> to vector<1x32xf32>
    %10 = vector.extract_strided_slice %0 {offsets = [9, 0], sizes = [1, 64], strides = [1, 1]} : vector<24x256xf32> to vector<1x64xf32>
    %11 = vector.extract_strided_slice %0 {offsets = [10, 0], sizes = [1, 64], strides = [1, 1]} : vector<24x256xf32> to vector<1x64xf32>
    %12 = vector.extract_strided_slice %0 {offsets = [11, 0], sizes = [1, 128], strides = [1, 1]} : vector<24x256xf32> to vector<1x128xf32>
    %13 = vector.extract_strided_slice %0 {offsets = [12, 0], sizes = [1, 64], strides = [1, 1]} : vector<24x256xf32> to vector<1x64xf32>
    %14 = vector.extract_strided_slice %0 {offsets = [13, 0], sizes = [1, 64], strides = [1, 1]} : vector<24x256xf32> to vector<1x64xf32>
    %15 = vector.extract_strided_slice %0 {offsets = [14, 0], sizes = [1, 64], strides = [1, 1]} : vector<24x256xf32> to vector<1x64xf32>
    %16 = vector.extract_strided_slice %0 {offsets = [15, 0], sizes = [1, 256], strides = [1, 1]} : vector<24x256xf32> to vector<1x256xf32>
    %17 = vector.extract_strided_slice %0 {offsets = [16, 0], sizes = [1, 256], strides = [1, 1]} : vector<24x256xf32> to vector<1x256xf32>
    %18 = vector.extract_strided_slice %0 {offsets = [17, 0], sizes = [1, 64], strides = [1, 1]} : vector<24x256xf32> to vector<1x64xf32>
    %19 = vector.extract_strided_slice %0 {offsets = [18, 0], sizes = [1, 1], strides = [1, 1]} : vector<24x256xf32> to vector<1x1xf32>
    %c0_1 = arith.constant 0 : index
    %c0_2 = arith.constant 0 : index
    %20 = vector.load %arg1[%c0_1, %c0_2] : memref<32x256xbf16, #tpu.memory_space<vmem>>, vector<32x256xbf16>
    %c0_3 = arith.constant 0 : index
    %c0_4 = arith.constant 0 : index
    %21 = vector.load %arg3[%c0_3, %c0_4] : memref<256x160xbf16, #tpu.memory_space<vmem>>, vector<256x160xbf16>
    %cst = arith.constant dense<0.000000e+00> : vector<32x160xf32>
    %22 = tpu.matmul %20, %21, %cst {dimension_numbers = #tpu.dot_dimension_numbers<[1], [0], [0], [1], [0, 0, 1, 1], [], []>} : vector<32x256xbf16>, vector<256x160xbf16>, vector<32x160xf32> -> vector<32x160xf32>
    %23 = vector.extract_strided_slice %22 {offsets = [0, 0], sizes = [32, 128], strides = [1, 1]} : vector<32x160xf32> to vector<32x128xf32>
    %24 = vector.broadcast %12 : vector<1x128xf32> to vector<32x128xf32>
    %25 = arith.addf %23, %24 : vector<32x128xf32>
    %26 = vector.extract_strided_slice %25 {offsets = [0, 0], sizes = [32, 64], strides = [1, 1]} : vector<32x128xf32> to vector<32x64xf32>
    %27 = vector.extract_strided_slice %25 {offsets = [0, 64], sizes = [32, 64], strides = [1, 1]} : vector<32x128xf32> to vector<32x64xf32>
    %28 = vector.extract_strided_slice %22 {offsets = [0, 128], sizes = [32, 32], strides = [1, 1]} : vector<32x160xf32> to vector<32x32xf32>
    %29 = vector.broadcast %1 : vector<1x32xf32> to vector<32x32xf32>
    %30 = arith.addf %28, %29 : vector<32x32xf32>
    %cst_5 = arith.constant dense<0.000000e+00> : vector<32xf32>
    %31 = vector.multi_reduction <add>, %30, %cst_5 [1] : vector<32x32xf32> to vector<32xf32>
    %32 = vector.shape_cast %31 : vector<32xf32> to vector<32x1xf32>
    %cst_6 = arith.constant 3.200000e+01 : f32
    %33 = vector.broadcast %cst_6 : f32 to vector<32x1xf32>
    %34 = arith.divf %32, %33 : vector<32x1xf32>
    %35 = vector.broadcast %34 : vector<32x1xf32> to vector<32x32xf32>
    %36 = arith.subf %30, %35 : vector<32x32xf32>
    %37 = arith.mulf %36, %36 : vector<32x32xf32>
    %cst_7 = arith.constant dense<0.000000e+00> : vector<32xf32>
    %38 = vector.multi_reduction <add>, %37, %cst_7 [1] : vector<32x32xf32> to vector<32xf32>
    %39 = vector.shape_cast %38 : vector<32xf32> to vector<32x1xf32>
    %cst_8 = arith.constant 3.200000e+01 : f32
    %40 = vector.broadcast %cst_8 : f32 to vector<32x1xf32>
    %41 = arith.divf %39, %40 : vector<32x1xf32>
    %42 = vector.broadcast %34 : vector<32x1xf32> to vector<32x32xf32>
    %43 = arith.subf %30, %42 : vector<32x32xf32>
    %cst_9 = arith.constant 9.99999997E-7 : f32
    %44 = vector.broadcast %cst_9 : f32 to vector<32x1xf32>
    %45 = arith.addf %41, %44 : vector<32x1xf32>
    %46 = math.rsqrt %45 : vector<32x1xf32>
    %47 = vector.broadcast %46 : vector<32x1xf32> to vector<32x32xf32>
    %48 = arith.mulf %43, %47 : vector<32x32xf32>
    %49 = vector.broadcast %2 : vector<1x32xf32> to vector<32x32xf32>
    %50 = arith.mulf %48, %49 : vector<32x32xf32>
    %51 = vector.broadcast %3 : vector<1x32xf32> to vector<32x32xf32>
    %52 = arith.addf %50, %51 : vector<32x32xf32>
    %c0_10 = arith.constant 0 : index
    %c0_11 = arith.constant 0 : index
    %53 = vector.load %arg2[%c0_10, %c0_11] : memref<32x3xf32, #tpu.memory_space<vmem>>, vector<32x3xf32>
    %54 = vector.extract_strided_slice %53 {offsets = [0, 0], sizes = [32, 1], strides = [1, 1]} : vector<32x3xf32> to vector<32x1xf32>
    %55 = vector.broadcast %54 : vector<32x1xf32> to vector<32x32xf32>
    %56 = vector.broadcast %4 : vector<1x32xf32> to vector<32x32xf32>
    %57 = arith.mulf %55, %56 : vector<32x32xf32>
    %58 = vector.extract_strided_slice %53 {offsets = [0, 1], sizes = [32, 1], strides = [1, 1]} : vector<32x3xf32> to vector<32x1xf32>
    %59 = vector.broadcast %58 : vector<32x1xf32> to vector<32x32xf32>
    %60 = vector.broadcast %5 : vector<1x32xf32> to vector<32x32xf32>
    %61 = arith.mulf %59, %60 : vector<32x32xf32>
    %62 = arith.addf %57, %61 : vector<32x32xf32>
    %63 = vector.extract_strided_slice %53 {offsets = [0, 2], sizes = [32, 1], strides = [1, 1]} : vector<32x3xf32> to vector<32x1xf32>
    %64 = vector.broadcast %63 : vector<32x1xf32> to vector<32x32xf32>
    %65 = vector.broadcast %6 : vector<1x32xf32> to vector<32x32xf32>
    %66 = arith.mulf %64, %65 : vector<32x32xf32>
    %67 = arith.addf %62, %66 : vector<32x32xf32>
    %68 = vector.broadcast %7 : vector<1x32xf32> to vector<32x32xf32>
    %69 = arith.addf %67, %68 : vector<32x32xf32>
    %cst_12 = arith.constant dense<0.000000e+00> : vector<32xf32>
    %70 = vector.multi_reduction <add>, %69, %cst_12 [1] : vector<32x32xf32> to vector<32xf32>
    %71 = vector.shape_cast %70 : vector<32xf32> to vector<32x1xf32>
    %cst_13 = arith.constant 3.200000e+01 : f32
    %72 = vector.broadcast %cst_13 : f32 to vector<32x1xf32>
    %73 = arith.divf %71, %72 : vector<32x1xf32>
    %74 = vector.broadcast %73 : vector<32x1xf32> to vector<32x32xf32>
    %75 = arith.subf %69, %74 : vector<32x32xf32>
    %76 = arith.mulf %75, %75 : vector<32x32xf32>
    %cst_14 = arith.constant dense<0.000000e+00> : vector<32xf32>
    %77 = vector.multi_reduction <add>, %76, %cst_14 [1] : vector<32x32xf32> to vector<32xf32>
    %78 = vector.shape_cast %77 : vector<32xf32> to vector<32x1xf32>
    %cst_15 = arith.constant 3.200000e+01 : f32
    %79 = vector.broadcast %cst_15 : f32 to vector<32x1xf32>
    %80 = arith.divf %78, %79 : vector<32x1xf32>
    %81 = vector.broadcast %73 : vector<32x1xf32> to vector<32x32xf32>
    %82 = arith.subf %69, %81 : vector<32x32xf32>
    %cst_16 = arith.constant 9.99999997E-7 : f32
    %83 = vector.broadcast %cst_16 : f32 to vector<32x1xf32>
    %84 = arith.addf %80, %83 : vector<32x1xf32>
    %85 = math.rsqrt %84 : vector<32x1xf32>
    %86 = vector.broadcast %85 : vector<32x1xf32> to vector<32x32xf32>
    %87 = arith.mulf %82, %86 : vector<32x32xf32>
    %88 = vector.broadcast %8 : vector<1x32xf32> to vector<32x32xf32>
    %89 = arith.mulf %87, %88 : vector<32x32xf32>
    %90 = vector.broadcast %9 : vector<1x32xf32> to vector<32x32xf32>
    %91 = arith.addf %89, %90 : vector<32x32xf32>
    %92 = arith.truncf %52 : vector<32x32xf32> to vector<32x32xbf16>
    %c0_17 = arith.constant 0 : index
    %c0_18 = arith.constant 0 : index
    %93 = vector.load %arg4[%c0_17, %c0_18] : memref<64x192xbf16, #tpu.memory_space<vmem>>, vector<32x128xbf16>
    %cst_19 = arith.constant dense<0.000000e+00> : vector<32x128xf32>
    %94 = tpu.matmul %92, %93, %cst_19 {dimension_numbers = #tpu.dot_dimension_numbers<[1], [0], [0], [1], [0, 0, 1, 1], [], []>} : vector<32x32xbf16>, vector<32x128xbf16>, vector<32x128xf32> -> vector<32x128xf32>
    %95 = arith.truncf %91 : vector<32x32xf32> to vector<32x32xbf16>
    %c32 = arith.constant 32 : index
    %c0_20 = arith.constant 0 : index
    %96 = vector.load %arg4[%c32, %c0_20] : memref<64x192xbf16, #tpu.memory_space<vmem>>, vector<32x128xbf16>
    %cst_21 = arith.constant dense<0.000000e+00> : vector<32x128xf32>
    %97 = tpu.matmul %95, %96, %cst_21 {dimension_numbers = #tpu.dot_dimension_numbers<[1], [0], [0], [1], [0, 0, 1, 1], [], []>} : vector<32x32xbf16>, vector<32x128xbf16>, vector<32x128xf32> -> vector<32x128xf32>
    %98 = arith.addf %94, %97 : vector<32x128xf32>
    %99 = vector.extract_strided_slice %98 {offsets = [0, 0], sizes = [32, 64], strides = [1, 1]} : vector<32x128xf32> to vector<32x64xf32>
    %100 = vector.broadcast %10 : vector<1x64xf32> to vector<32x64xf32>
    %101 = arith.addf %99, %100 : vector<32x64xf32>
    %102 = vector.extract_strided_slice %98 {offsets = [0, 64], sizes = [32, 64], strides = [1, 1]} : vector<32x128xf32> to vector<32x64xf32>
    %103 = vector.broadcast %11 : vector<1x64xf32> to vector<32x64xf32>
    %104 = arith.addf %102, %103 : vector<32x64xf32>
    %c0_22 = arith.constant 0 : index
    %c0_23 = arith.constant 0 : index
    %105 = vector.load %arg7[%c0_22, %c0_23] : memref<32x32xf32, #tpu.memory_space<vmem>>, vector<32x32xf32>
    %106 = tpu.transpose %26, [1, 0] : vector<32x64xf32> -> vector<64x32xf32>
    %107 = arith.truncf %106 : vector<64x32xf32> to vector<64x32xbf16>
    %108 = vector.extract_strided_slice %104 {offsets = [0, 0], sizes = [32, 32], strides = [1, 1]} : vector<32x64xf32> to vector<32x32xf32>
    %109 = arith.truncf %108 : vector<32x32xf32> to vector<32x32xbf16>
    %110 = vector.extract_strided_slice %107 {offsets = [0, 0], sizes = [32, 32], strides = [1, 1]} : vector<64x32xbf16> to vector<32x32xbf16>
    %cst_24 = arith.constant dense<0.000000e+00> : vector<32x32xf32>
    %111 = tpu.matmul %109, %110, %cst_24 {dimension_numbers = #tpu.dot_dimension_numbers<[1], [0], [0], [1], [0, 0, 1, 1], [], []>} : vector<32x32xbf16>, vector<32x32xbf16>, vector<32x32xf32> -> vector<32x32xf32>
    %112 = arith.addf %111, %105 : vector<32x32xf32>
    %cst_25 = arith.constant dense<0xFF800000> : vector<32xf32>
    %113 = vector.multi_reduction <maximumf>, %112, %cst_25 [1] : vector<32x32xf32> to vector<32xf32>
    %114 = vector.shape_cast %113 : vector<32xf32> to vector<32x1xf32>
    %115 = vector.broadcast %114 : vector<32x1xf32> to vector<32x32xf32>
    %116 = arith.subf %112, %115 : vector<32x32xf32>
    %117 = math.exp %116 : vector<32x32xf32>
    %cst_26 = arith.constant dense<0.000000e+00> : vector<32xf32>
    %118 = vector.multi_reduction <add>, %117, %cst_26 [1] : vector<32x32xf32> to vector<32xf32>
    %119 = vector.shape_cast %118 : vector<32xf32> to vector<32x1xf32>
    %120 = tpu.reciprocal %119 {approx = true} : vector<32x1xf32> -> vector<32x1xf32>
    %121 = vector.broadcast %120 : vector<32x1xf32> to vector<32x32xf32>
    %122 = arith.mulf %117, %121 : vector<32x32xf32>
    %123 = arith.truncf %122 : vector<32x32xf32> to vector<32x32xbf16>
    %124 = vector.extract_strided_slice %27 {offsets = [0, 0], sizes = [32, 32], strides = [1, 1]} : vector<32x64xf32> to vector<32x32xf32>
    %125 = arith.truncf %124 : vector<32x32xf32> to vector<32x32xbf16>
    %cst_27 = arith.constant dense<0.000000e+00> : vector<32x32xf32>
    %126 = tpu.matmul %123, %125, %cst_27 {dimension_numbers = #tpu.dot_dimension_numbers<[1], [0], [0], [1], [0, 0, 1, 1], [], []>} : vector<32x32xbf16>, vector<32x32xbf16>, vector<32x32xf32> -> vector<32x32xf32>
    %127 = vector.extract_strided_slice %104 {offsets = [0, 32], sizes = [32, 32], strides = [1, 1]} : vector<32x64xf32> to vector<32x32xf32>
    %128 = arith.truncf %127 : vector<32x32xf32> to vector<32x32xbf16>
    %129 = vector.extract_strided_slice %107 {offsets = [32, 0], sizes = [32, 32], strides = [1, 1]} : vector<64x32xbf16> to vector<32x32xbf16>
    %cst_28 = arith.constant dense<0.000000e+00> : vector<32x32xf32>
    %130 = tpu.matmul %128, %129, %cst_28 {dimension_numbers = #tpu.dot_dimension_numbers<[1], [0], [0], [1], [0, 0, 1, 1], [], []>} : vector<32x32xbf16>, vector<32x32xbf16>, vector<32x32xf32> -> vector<32x32xf32>
    %131 = arith.addf %130, %105 : vector<32x32xf32>
    %cst_29 = arith.constant dense<0xFF800000> : vector<32xf32>
    %132 = vector.multi_reduction <maximumf>, %131, %cst_29 [1] : vector<32x32xf32> to vector<32xf32>
    %133 = vector.shape_cast %132 : vector<32xf32> to vector<32x1xf32>
    %134 = vector.broadcast %133 : vector<32x1xf32> to vector<32x32xf32>
    %135 = arith.subf %131, %134 : vector<32x32xf32>
    %136 = math.exp %135 : vector<32x32xf32>
    %cst_30 = arith.constant dense<0.000000e+00> : vector<32xf32>
    %137 = vector.multi_reduction <add>, %136, %cst_30 [1] : vector<32x32xf32> to vector<32xf32>
    %138 = vector.shape_cast %137 : vector<32xf32> to vector<32x1xf32>
    %139 = tpu.reciprocal %138 {approx = true} : vector<32x1xf32> -> vector<32x1xf32>
    %140 = vector.broadcast %139 : vector<32x1xf32> to vector<32x32xf32>
    %141 = arith.mulf %136, %140 : vector<32x32xf32>
    %142 = arith.truncf %141 : vector<32x32xf32> to vector<32x32xbf16>
    %143 = vector.extract_strided_slice %27 {offsets = [0, 32], sizes = [32, 32], strides = [1, 1]} : vector<32x64xf32> to vector<32x32xf32>
    %144 = arith.truncf %143 : vector<32x32xf32> to vector<32x32xbf16>
    %cst_31 = arith.constant dense<0.000000e+00> : vector<32x32xf32>
    %145 = tpu.matmul %142, %144, %cst_31 {dimension_numbers = #tpu.dot_dimension_numbers<[1], [0], [0], [1], [0, 0, 1, 1], [], []>} : vector<32x32xbf16>, vector<32x32xbf16>, vector<32x32xf32> -> vector<32x32xf32>
    %146 = tpu.concatenate %126, %145 in 1 : vector<32x32xf32>, vector<32x32xf32> -> vector<32x64xf32>
    %147 = arith.truncf %146 : vector<32x64xf32> to vector<32x64xbf16>
    %c0_32 = arith.constant 0 : index
    %c128 = arith.constant 128 : index
    %148 = vector.load %arg4[%c0_32, %c128] : memref<64x192xbf16, #tpu.memory_space<vmem>>, vector<64x64xbf16>
    %cst_33 = arith.constant dense<0.000000e+00> : vector<32x64xf32>
    %149 = tpu.matmul %147, %148, %cst_33 {dimension_numbers = #tpu.dot_dimension_numbers<[1], [0], [0], [1], [0, 0, 1, 1], [], []>} : vector<32x64xbf16>, vector<64x64xbf16>, vector<32x64xf32> -> vector<32x64xf32>
    %150 = vector.broadcast %13 : vector<1x64xf32> to vector<32x64xf32>
    %151 = arith.addf %149, %150 : vector<32x64xf32>
    %152 = arith.addf %101, %151 : vector<32x64xf32>
    %cst_34 = arith.constant dense<0.000000e+00> : vector<32xf32>
    %153 = vector.multi_reduction <add>, %152, %cst_34 [1] : vector<32x64xf32> to vector<32xf32>
    %154 = vector.shape_cast %153 : vector<32xf32> to vector<32x1xf32>
    %cst_35 = arith.constant 6.400000e+01 : f32
    %155 = vector.broadcast %cst_35 : f32 to vector<32x1xf32>
    %156 = arith.divf %154, %155 : vector<32x1xf32>
    %157 = vector.broadcast %156 : vector<32x1xf32> to vector<32x64xf32>
    %158 = arith.subf %152, %157 : vector<32x64xf32>
    %159 = arith.mulf %158, %158 : vector<32x64xf32>
    %cst_36 = arith.constant dense<0.000000e+00> : vector<32xf32>
    %160 = vector.multi_reduction <add>, %159, %cst_36 [1] : vector<32x64xf32> to vector<32xf32>
    %161 = vector.shape_cast %160 : vector<32xf32> to vector<32x1xf32>
    %cst_37 = arith.constant 6.400000e+01 : f32
    %162 = vector.broadcast %cst_37 : f32 to vector<32x1xf32>
    %163 = arith.divf %161, %162 : vector<32x1xf32>
    %164 = vector.broadcast %156 : vector<32x1xf32> to vector<32x64xf32>
    %165 = arith.subf %152, %164 : vector<32x64xf32>
    %cst_38 = arith.constant 9.99999974E-6 : f32
    %166 = vector.broadcast %cst_38 : f32 to vector<32x1xf32>
    %167 = arith.addf %163, %166 : vector<32x1xf32>
    %168 = math.rsqrt %167 : vector<32x1xf32>
    %169 = vector.broadcast %168 : vector<32x1xf32> to vector<32x64xf32>
    %170 = arith.mulf %165, %169 : vector<32x64xf32>
    %171 = vector.broadcast %14 : vector<1x64xf32> to vector<32x64xf32>
    %172 = arith.mulf %170, %171 : vector<32x64xf32>
    %173 = vector.broadcast %15 : vector<1x64xf32> to vector<32x64xf32>
    %174 = arith.addf %172, %173 : vector<32x64xf32>
    %175 = arith.truncf %174 : vector<32x64xf32> to vector<32x64xbf16>
    %c0_39 = arith.constant 0 : index
    %c0_40 = arith.constant 0 : index
    %176 = vector.load %arg5[%c0_39, %c0_40] : memref<256x256xbf16, #tpu.memory_space<vmem>>, vector<64x256xbf16>
    %cst_41 = arith.constant dense<0.000000e+00> : vector<32x256xf32>
    %177 = tpu.matmul %175, %176, %cst_41 {dimension_numbers = #tpu.dot_dimension_numbers<[1], [0], [0], [1], [0, 0, 1, 1], [], []>} : vector<32x64xbf16>, vector<64x256xbf16>, vector<32x256xf32> -> vector<32x256xf32>
    %178 = vector.broadcast %16 : vector<1x256xf32> to vector<32x256xf32>
    %179 = arith.addf %177, %178 : vector<32x256xf32>
    %c0_42 = arith.constant 0 : index
    %c0_43 = arith.constant 0 : index
    %180 = vector.load %arg9[%c0_42, %c0_43] : memref<32x256xf32, #tpu.memory_space<vmem>>, vector<32x256xf32>
    tpu.vector_store %arg9[%c0_42, %c0_43], %179 {strides = array<i32>} : memref<32x256xf32, #tpu.memory_space<vmem>>, vector<32x256xf32>,
    %c64 = arith.constant 64 : index
    %c0_44 = arith.constant 0 : index
    %181 = vector.load %arg5[%c64, %c0_44] : memref<256x256xbf16, #tpu.memory_space<vmem>>, vector<64x256xbf16>
    %c128_45 = arith.constant 128 : index
    %c0_46 = arith.constant 0 : index
    %182 = vector.load %arg5[%c128_45, %c0_46] : memref<256x256xbf16, #tpu.memory_space<vmem>>, vector<128x256xbf16>
    %cst_47 = arith.constant 0.000000e+00 : f32
    %183 = vector.broadcast %cst_47 : f32 to vector<2x64xf32>
    %cst_48 = arith.constant 0.000000e+00 : f32
    %184 = vector.broadcast %cst_48 : f32 to vector<2x64xf32>
    %cst_49 = arith.constant 0.000000e+00 : f32
    %185 = vector.broadcast %cst_49 : f32 to vector<2x64xf32>
    %cst_50 = arith.constant 0.000000e+00 : f32
    %186 = vector.broadcast %cst_50 : f32 to vector<2x64xf32>
    %c0_51 = arith.constant 0 : index
    %c0_52 = arith.constant 0 : index
    %187 = vector.load %arg9[%c0_51, %c0_52] : memref<32x256xf32, #tpu.memory_space<vmem>>, vector<2x256xf32>
    %188 = arith.truncf %183 : vector<2x64xf32> to vector<2x64xbf16>
    %cst_53 = arith.constant dense<0.000000e+00> : vector<2x256xf32>
    %189 = tpu.matmul %188, %181, %cst_53 {dimension_numbers = #tpu.dot_dimension_numbers<[1], [0], [0], [1], [0, 0, 1, 1], [], []>} : vector<2x64xbf16>, vector<64x256xbf16>, vector<2x256xf32> -> vector<2x256xf32>
    %190 = arith.addf %187, %189 : vector<2x256xf32>
    %191 = vector.extract_strided_slice %190 {offsets = [0, 0], sizes = [2, 192], strides = [1, 1]} : vector<2x256xf32> to vector<2x192xf32>
    %cst_54 = arith.constant 5.000000e-01 : f32
    %192 = vector.broadcast %cst_54 : f32 to vector<2x192xf32>
    %193 = arith.mulf %192, %191 : vector<2x192xf32>
    %194 = math.tanh %193 : vector<2x192xf32>
    %cst_55 = arith.constant 5.000000e-01 : f32
    %195 = vector.broadcast %cst_55 : f32 to vector<2x192xf32>
    %196 = arith.mulf %195, %194 : vector<2x192xf32>
    %cst_56 = arith.constant 5.000000e-01 : f32
    %197 = vector.broadcast %cst_56 : f32 to vector<2x192xf32>
    %198 = arith.addf %196, %197 : vector<2x192xf32>
    %199 = vector.extract_strided_slice %198 {offsets = [0, 0], sizes = [2, 64], strides = [1, 1]} : vector<2x192xf32> to vector<2x64xf32>
    %200 = vector.extract_strided_slice %198 {offsets = [0, 64], sizes = [2, 64], strides = [1, 1]} : vector<2x192xf32> to vector<2x64xf32>
    %201 = vector.extract_strided_slice %198 {offsets = [0, 128], sizes = [2, 64], strides = [1, 1]} : vector<2x192xf32> to vector<2x64xf32>
    %202 = vector.extract_strided_slice %190 {offsets = [0, 192], sizes = [2, 64], strides = [1, 1]} : vector<2x256xf32> to vector<2x64xf32>
    %203 = math.tanh %202 : vector<2x64xf32>
    %204 = arith.mulf %200, %184 : vector<2x64xf32>
    %205 = arith.mulf %199, %203 : vector<2x64xf32>
    %206 = arith.addf %204, %205 : vector<2x64xf32>
    %207 = math.tanh %206 : vector<2x64xf32>
    %208 = arith.mulf %201, %207 : vector<2x64xf32>
    %209 = tpu.concatenate %208, %185 in 1 : vector<2x64xf32>, vector<2x64xf32> -> vector<2x128xf32>
    %210 = arith.truncf %209 : vector<2x128xf32> to vector<2x128xbf16>
    %cst_57 = arith.constant dense<0.000000e+00> : vector<2x256xf32>
    %211 = tpu.matmul %210, %182, %cst_57 {dimension_numbers = #tpu.dot_dimension_numbers<[1], [0], [0], [1], [0, 0, 1, 1], [], []>} : vector<2x128xbf16>, vector<128x256xbf16>, vector<2x256xf32> -> vector<2x256xf32>
    %212 = vector.broadcast %17 : vector<1x256xf32> to vector<2x256xf32>
    %213 = arith.addf %211, %212 : vector<2x256xf32>
    %214 = vector.extract_strided_slice %213 {offsets = [0, 0], sizes = [2, 192], strides = [1, 1]} : vector<2x256xf32> to vector<2x192xf32>
    %cst_58 = arith.constant 5.000000e-01 : f32
    %215 = vector.broadcast %cst_58 : f32 to vector<2x192xf32>
    %216 = arith.mulf %215, %214 : vector<2x192xf32>
    %217 = math.tanh %216 : vector<2x192xf32>
    %cst_59 = arith.constant 5.000000e-01 : f32
    %218 = vector.broadcast %cst_59 : f32 to vector<2x192xf32>
    %219 = arith.mulf %218, %217 : vector<2x192xf32>
    %cst_60 = arith.constant 5.000000e-01 : f32
    %220 = vector.broadcast %cst_60 : f32 to vector<2x192xf32>
    %221 = arith.addf %219, %220 : vector<2x192xf32>
    %222 = vector.extract_strided_slice %221 {offsets = [0, 0], sizes = [2, 64], strides = [1, 1]} : vector<2x192xf32> to vector<2x64xf32>
    %223 = vector.extract_strided_slice %221 {offsets = [0, 64], sizes = [2, 64], strides = [1, 1]} : vector<2x192xf32> to vector<2x64xf32>
    %224 = vector.extract_strided_slice %221 {offsets = [0, 128], sizes = [2, 64], strides = [1, 1]} : vector<2x192xf32> to vector<2x64xf32>
    %225 = vector.extract_strided_slice %213 {offsets = [0, 192], sizes = [2, 64], strides = [1, 1]} : vector<2x256xf32> to vector<2x64xf32>
    %226 = math.tanh %225 : vector<2x64xf32>
    %227 = arith.mulf %223, %186 : vector<2x64xf32>
    %228 = arith.mulf %222, %226 : vector<2x64xf32>
    %229 = arith.addf %227, %228 : vector<2x64xf32>
    %230 = math.tanh %229 : vector<2x64xf32>
    %231 = arith.mulf %224, %230 : vector<2x64xf32>
    %232 = vector.broadcast %18 : vector<1x64xf32> to vector<2x64xf32>
    %233 = arith.mulf %231, %232 : vector<2x64xf32>
    %cst_61 = arith.constant dense<0.000000e+00> : vector<2xf32>
    %234 = vector.multi_reduction <add>, %233, %cst_61 [1] : vector<2x64xf32> to vector<2xf32>
    %235 = vector.shape_cast %234 : vector<2xf32> to vector<2x1xf32>
    %236 = vector.broadcast %19 : vector<1x1xf32> to vector<2x1xf32>
    %237 = arith.addf %235, %236 : vector<2x1xf32>
    %c0_62 = arith.constant 0 : index
    %c0_63 = arith.constant 0 : index
    %238 = vector.load %arg8[%c0_62, %c0_63] : memref<32x1xf32, #tpu.memory_space<vmem>>, vector<2x1xf32>
    tpu.vector_store %arg8[%c0_62, %c0_63], %237 {strides = array<i32>} : memref<32x1xf32, #tpu.memory_space<vmem>>, vector<2x1xf32>,
    %c2 = arith.constant 2 : index
    %c0_64 = arith.constant 0 : index
    %239 = vector.load %arg9[%c2, %c0_64] : memref<32x256xf32, #tpu.memory_space<vmem>>, vector<2x256xf32>
    %240 = arith.truncf %208 : vector<2x64xf32> to vector<2x64xbf16>
    %cst_65 = arith.constant dense<0.000000e+00> : vector<2x256xf32>
    %241 = tpu.matmul %240, %181, %cst_65 {dimension_numbers = #tpu.dot_dimension_numbers<[1], [0], [0], [1], [0, 0, 1, 1], [], []>} : vector<2x64xbf16>, vector<64x256xbf16>, vector<2x256xf32> -> vector<2x256xf32>
    %242 = arith.addf %239, %241 : vector<2x256xf32>
    %243 = vector.extract_strided_slice %242 {offsets = [0, 0], sizes = [2, 192], strides = [1, 1]} : vector<2x256xf32> to vector<2x192xf32>
    %cst_66 = arith.constant 5.000000e-01 : f32
    %244 = vector.broadcast %cst_66 : f32 to vector<2x192xf32>
    %245 = arith.mulf %244, %243 : vector<2x192xf32>
    %246 = math.tanh %245 : vector<2x192xf32>
    %cst_67 = arith.constant 5.000000e-01 : f32
    %247 = vector.broadcast %cst_67 : f32 to vector<2x192xf32>
    %248 = arith.mulf %247, %246 : vector<2x192xf32>
    %cst_68 = arith.constant 5.000000e-01 : f32
    %249 = vector.broadcast %cst_68 : f32 to vector<2x192xf32>
    %250 = arith.addf %248, %249 : vector<2x192xf32>
    %251 = vector.extract_strided_slice %250 {offsets = [0, 0], sizes = [2, 64], strides = [1, 1]} : vector<2x192xf32> to vector<2x64xf32>
    %252 = vector.extract_strided_slice %250 {offsets = [0, 64], sizes = [2, 64], strides = [1, 1]} : vector<2x192xf32> to vector<2x64xf32>
    %253 = vector.extract_strided_slice %250 {offsets = [0, 128], sizes = [2, 64], strides = [1, 1]} : vector<2x192xf32> to vector<2x64xf32>
    %254 = vector.extract_strided_slice %242 {offsets = [0, 192], sizes = [2, 64], strides = [1, 1]} : vector<2x256xf32> to vector<2x64xf32>
    %255 = math.tanh %254 : vector<2x64xf32>
    %256 = arith.mulf %252, %206 : vector<2x64xf32>
    %257 = arith.mulf %251, %255 : vector<2x64xf32>
    %258 = arith.addf %256, %257 : vector<2x64xf32>
    %259 = math.tanh %258 : vector<2x64xf32>
    %260 = arith.mulf %253, %259 : vector<2x64xf32>
    %261 = tpu.concatenate %260, %231 in 1 : vector<2x64xf32>, vector<2x64xf32> -> vector<2x128xf32>
    %262 = arith.truncf %261 : vector<2x128xf32> to vector<2x128xbf16>
    %cst_69 = arith.constant dense<0.000000e+00> : vector<2x256xf32>
    %263 = tpu.matmul %262, %182, %cst_69 {dimension_numbers = #tpu.dot_dimension_numbers<[1], [0], [0], [1], [0, 0, 1, 1], [], []>} : vector<2x128xbf16>, vector<128x256xbf16>, vector<2x256xf32> -> vector<2x256xf32>
    %264 = vector.broadcast %17 : vector<1x256xf32> to vector<2x256xf32>
    %265 = arith.addf %263, %264 : vector<2x256xf32>
    %266 = vector.extract_strided_slice %265 {offsets = [0, 0], sizes = [2, 192], strides = [1, 1]} : vector<2x256xf32> to vector<2x192xf32>
    %cst_70 = arith.constant 5.000000e-01 : f32
    %267 = vector.broadcast %cst_70 : f32 to vector<2x192xf32>
    %268 = arith.mulf %267, %266 : vector<2x192xf32>
    %269 = math.tanh %268 : vector<2x192xf32>
    %cst_71 = arith.constant 5.000000e-01 : f32
    %270 = vector.broadcast %cst_71 : f32 to vector<2x192xf32>
    %271 = arith.mulf %270, %269 : vector<2x192xf32>
    %cst_72 = arith.constant 5.000000e-01 : f32
    %272 = vector.broadcast %cst_72 : f32 to vector<2x192xf32>
    %273 = arith.addf %271, %272 : vector<2x192xf32>
    %274 = vector.extract_strided_slice %273 {offsets = [0, 0], sizes = [2, 64], strides = [1, 1]} : vector<2x192xf32> to vector<2x64xf32>
    %275 = vector.extract_strided_slice %273 {offsets = [0, 64], sizes = [2, 64], strides = [1, 1]} : vector<2x192xf32> to vector<2x64xf32>
    %276 = vector.extract_strided_slice %273 {offsets = [0, 128], sizes = [2, 64], strides = [1, 1]} : vector<2x192xf32> to vector<2x64xf32>
    %277 = vector.extract_strided_slice %265 {offsets = [0, 192], sizes = [2, 64], strides = [1, 1]} : vector<2x256xf32> to vector<2x64xf32>
    %278 = math.tanh %277 : vector<2x64xf32>
    %279 = arith.mulf %275, %229 : vector<2x64xf32>
    %280 = arith.mulf %274, %278 : vector<2x64xf32>
    %281 = arith.addf %279, %280 : vector<2x64xf32>
    %282 = math.tanh %281 : vector<2x64xf32>
    %283 = arith.mulf %276, %282 : vector<2x64xf32>
    %284 = vector.broadcast %18 : vector<1x64xf32> to vector<2x64xf32>
    %285 = arith.mulf %283, %284 : vector<2x64xf32>
    %cst_73 = arith.constant dense<0.000000e+00> : vector<2xf32>
    %286 = vector.multi_reduction <add>, %285, %cst_73 [1] : vector<2x64xf32> to vector<2xf32>
    %287 = vector.shape_cast %286 : vector<2xf32> to vector<2x1xf32>
    %288 = vector.broadcast %19 : vector<1x1xf32> to vector<2x1xf32>
    %289 = arith.addf %287, %288 : vector<2x1xf32>
    %c2_74 = arith.constant 2 : index
    %c0_75 = arith.constant 0 : index
    %290 = vector.load %arg8[%c2_74, %c0_75] : memref<32x1xf32, #tpu.memory_space<vmem>>, vector<2x1xf32>
    tpu.vector_store %arg8[%c2_74, %c0_75], %289 {strides = array<i32>} : memref<32x1xf32, #tpu.memory_space<vmem>>, vector<2x1xf32>,
    %c4 = arith.constant 4 : index
    %c0_76 = arith.constant 0 : index
    %291 = vector.load %arg9[%c4, %c0_76] : memref<32x256xf32, #tpu.memory_space<vmem>>, vector<2x256xf32>
    %292 = arith.truncf %260 : vector<2x64xf32> to vector<2x64xbf16>
    %cst_77 = arith.constant dense<0.000000e+00> : vector<2x256xf32>
    %293 = tpu.matmul %292, %181, %cst_77 {dimension_numbers = #tpu.dot_dimension_numbers<[1], [0], [0], [1], [0, 0, 1, 1], [], []>} : vector<2x64xbf16>, vector<64x256xbf16>, vector<2x256xf32> -> vector<2x256xf32>
    %294 = arith.addf %291, %293 : vector<2x256xf32>
    %295 = vector.extract_strided_slice %294 {offsets = [0, 0], sizes = [2, 192], strides = [1, 1]} : vector<2x256xf32> to vector<2x192xf32>
    %cst_78 = arith.constant 5.000000e-01 : f32
    %296 = vector.broadcast %cst_78 : f32 to vector<2x192xf32>
    %297 = arith.mulf %296, %295 : vector<2x192xf32>
    %298 = math.tanh %297 : vector<2x192xf32>
    %cst_79 = arith.constant 5.000000e-01 : f32
    %299 = vector.broadcast %cst_79 : f32 to vector<2x192xf32>
    %300 = arith.mulf %299, %298 : vector<2x192xf32>
    %cst_80 = arith.constant 5.000000e-01 : f32
    %301 = vector.broadcast %cst_80 : f32 to vector<2x192xf32>
    %302 = arith.addf %300, %301 : vector<2x192xf32>
    %303 = vector.extract_strided_slice %302 {offsets = [0, 0], sizes = [2, 64], strides = [1, 1]} : vector<2x192xf32> to vector<2x64xf32>
    %304 = vector.extract_strided_slice %302 {offsets = [0, 64], sizes = [2, 64], strides = [1, 1]} : vector<2x192xf32> to vector<2x64xf32>
    %305 = vector.extract_strided_slice %302 {offsets = [0, 128], sizes = [2, 64], strides = [1, 1]} : vector<2x192xf32> to vector<2x64xf32>
    %306 = vector.extract_strided_slice %294 {offsets = [0, 192], sizes = [2, 64], strides = [1, 1]} : vector<2x256xf32> to vector<2x64xf32>
    %307 = math.tanh %306 : vector<2x64xf32>
    %308 = arith.mulf %304, %258 : vector<2x64xf32>
    %309 = arith.mulf %303, %307 : vector<2x64xf32>
    %310 = arith.addf %308, %309 : vector<2x64xf32>
    %311 = math.tanh %310 : vector<2x64xf32>
    %312 = arith.mulf %305, %311 : vector<2x64xf32>
    %313 = tpu.concatenate %312, %283 in 1 : vector<2x64xf32>, vector<2x64xf32> -> vector<2x128xf32>
    %314 = arith.truncf %313 : vector<2x128xf32> to vector<2x128xbf16>
    %cst_81 = arith.constant dense<0.000000e+00> : vector<2x256xf32>
    %315 = tpu.matmul %314, %182, %cst_81 {dimension_numbers = #tpu.dot_dimension_numbers<[1], [0], [0], [1], [0, 0, 1, 1], [], []>} : vector<2x128xbf16>, vector<128x256xbf16>, vector<2x256xf32> -> vector<2x256xf32>
    %316 = vector.broadcast %17 : vector<1x256xf32> to vector<2x256xf32>
    %317 = arith.addf %315, %316 : vector<2x256xf32>
    %318 = vector.extract_strided_slice %317 {offsets = [0, 0], sizes = [2, 192], strides = [1, 1]} : vector<2x256xf32> to vector<2x192xf32>
    %cst_82 = arith.constant 5.000000e-01 : f32
    %319 = vector.broadcast %cst_82 : f32 to vector<2x192xf32>
    %320 = arith.mulf %319, %318 : vector<2x192xf32>
    %321 = math.tanh %320 : vector<2x192xf32>
    %cst_83 = arith.constant 5.000000e-01 : f32
    %322 = vector.broadcast %cst_83 : f32 to vector<2x192xf32>
    %323 = arith.mulf %322, %321 : vector<2x192xf32>
    %cst_84 = arith.constant 5.000000e-01 : f32
    %324 = vector.broadcast %cst_84 : f32 to vector<2x192xf32>
    %325 = arith.addf %323, %324 : vector<2x192xf32>
    %326 = vector.extract_strided_slice %325 {offsets = [0, 0], sizes = [2, 64], strides = [1, 1]} : vector<2x192xf32> to vector<2x64xf32>
    %327 = vector.extract_strided_slice %325 {offsets = [0, 64], sizes = [2, 64], strides = [1, 1]} : vector<2x192xf32> to vector<2x64xf32>
    %328 = vector.extract_strided_slice %325 {offsets = [0, 128], sizes = [2, 64], strides = [1, 1]} : vector<2x192xf32> to vector<2x64xf32>
    %329 = vector.extract_strided_slice %317 {offsets = [0, 192], sizes = [2, 64], strides = [1, 1]} : vector<2x256xf32> to vector<2x64xf32>
    %330 = math.tanh %329 : vector<2x64xf32>
    %331 = arith.mulf %327, %281 : vector<2x64xf32>
    %332 = arith.mulf %326, %330 : vector<2x64xf32>
    %333 = arith.addf %331, %332 : vector<2x64xf32>
    %334 = math.tanh %333 : vector<2x64xf32>
    %335 = arith.mulf %328, %334 : vector<2x64xf32>
    %336 = vector.broadcast %18 : vector<1x64xf32> to vector<2x64xf32>
    %337 = arith.mulf %335, %336 : vector<2x64xf32>
    %cst_85 = arith.constant dense<0.000000e+00> : vector<2xf32>
    %338 = vector.multi_reduction <add>, %337, %cst_85 [1] : vector<2x64xf32> to vector<2xf32>
    %339 = vector.shape_cast %338 : vector<2xf32> to vector<2x1xf32>
    %340 = vector.broadcast %19 : vector<1x1xf32> to vector<2x1xf32>
    %341 = arith.addf %339, %340 : vector<2x1xf32>
    %c4_86 = arith.constant 4 : index
    %c0_87 = arith.constant 0 : index
    %342 = vector.load %arg8[%c4_86, %c0_87] : memref<32x1xf32, #tpu.memory_space<vmem>>, vector<2x1xf32>
    tpu.vector_store %arg8[%c4_86, %c0_87], %341 {strides = array<i32>} : memref<32x1xf32, #tpu.memory_space<vmem>>, vector<2x1xf32>,
    %c6 = arith.constant 6 : index
    %c0_88 = arith.constant 0 : index
    %343 = vector.load %arg9[%c6, %c0_88] : memref<32x256xf32, #tpu.memory_space<vmem>>, vector<2x256xf32>
    %344 = arith.truncf %312 : vector<2x64xf32> to vector<2x64xbf16>
    %cst_89 = arith.constant dense<0.000000e+00> : vector<2x256xf32>
    %345 = tpu.matmul %344, %181, %cst_89 {dimension_numbers = #tpu.dot_dimension_numbers<[1], [0], [0], [1], [0, 0, 1, 1], [], []>} : vector<2x64xbf16>, vector<64x256xbf16>, vector<2x256xf32> -> vector<2x256xf32>
    %346 = arith.addf %343, %345 : vector<2x256xf32>
    %347 = vector.extract_strided_slice %346 {offsets = [0, 0], sizes = [2, 192], strides = [1, 1]} : vector<2x256xf32> to vector<2x192xf32>
    %cst_90 = arith.constant 5.000000e-01 : f32
    %348 = vector.broadcast %cst_90 : f32 to vector<2x192xf32>
    %349 = arith.mulf %348, %347 : vector<2x192xf32>
    %350 = math.tanh %349 : vector<2x192xf32>
    %cst_91 = arith.constant 5.000000e-01 : f32
    %351 = vector.broadcast %cst_91 : f32 to vector<2x192xf32>
    %352 = arith.mulf %351, %350 : vector<2x192xf32>
    %cst_92 = arith.constant 5.000000e-01 : f32
    %353 = vector.broadcast %cst_92 : f32 to vector<2x192xf32>
    %354 = arith.addf %352, %353 : vector<2x192xf32>
    %355 = vector.extract_strided_slice %354 {offsets = [0, 0], sizes = [2, 64], strides = [1, 1]} : vector<2x192xf32> to vector<2x64xf32>
    %356 = vector.extract_strided_slice %354 {offsets = [0, 64], sizes = [2, 64], strides = [1, 1]} : vector<2x192xf32> to vector<2x64xf32>
    %357 = vector.extract_strided_slice %354 {offsets = [0, 128], sizes = [2, 64], strides = [1, 1]} : vector<2x192xf32> to vector<2x64xf32>
    %358 = vector.extract_strided_slice %346 {offsets = [0, 192], sizes = [2, 64], strides = [1, 1]} : vector<2x256xf32> to vector<2x64xf32>
    %359 = math.tanh %358 : vector<2x64xf32>
    %360 = arith.mulf %356, %310 : vector<2x64xf32>
    %361 = arith.mulf %355, %359 : vector<2x64xf32>
    %362 = arith.addf %360, %361 : vector<2x64xf32>
    %363 = math.tanh %362 : vector<2x64xf32>
    %364 = arith.mulf %357, %363 : vector<2x64xf32>
    %365 = tpu.concatenate %364, %335 in 1 : vector<2x64xf32>, vector<2x64xf32> -> vector<2x128xf32>
    %366 = arith.truncf %365 : vector<2x128xf32> to vector<2x128xbf16>
    %cst_93 = arith.constant dense<0.000000e+00> : vector<2x256xf32>
    %367 = tpu.matmul %366, %182, %cst_93 {dimension_numbers = #tpu.dot_dimension_numbers<[1], [0], [0], [1], [0, 0, 1, 1], [], []>} : vector<2x128xbf16>, vector<128x256xbf16>, vector<2x256xf32> -> vector<2x256xf32>
    %368 = vector.broadcast %17 : vector<1x256xf32> to vector<2x256xf32>
    %369 = arith.addf %367, %368 : vector<2x256xf32>
    %370 = vector.extract_strided_slice %369 {offsets = [0, 0], sizes = [2, 192], strides = [1, 1]} : vector<2x256xf32> to vector<2x192xf32>
    %cst_94 = arith.constant 5.000000e-01 : f32
    %371 = vector.broadcast %cst_94 : f32 to vector<2x192xf32>
    %372 = arith.mulf %371, %370 : vector<2x192xf32>
    %373 = math.tanh %372 : vector<2x192xf32>
    %cst_95 = arith.constant 5.000000e-01 : f32
    %374 = vector.broadcast %cst_95 : f32 to vector<2x192xf32>
    %375 = arith.mulf %374, %373 : vector<2x192xf32>
    %cst_96 = arith.constant 5.000000e-01 : f32
    %376 = vector.broadcast %cst_96 : f32 to vector<2x192xf32>
    %377 = arith.addf %375, %376 : vector<2x192xf32>
    %378 = vector.extract_strided_slice %377 {offsets = [0, 0], sizes = [2, 64], strides = [1, 1]} : vector<2x192xf32> to vector<2x64xf32>
    %379 = vector.extract_strided_slice %377 {offsets = [0, 64], sizes = [2, 64], strides = [1, 1]} : vector<2x192xf32> to vector<2x64xf32>
    %380 = vector.extract_strided_slice %377 {offsets = [0, 128], sizes = [2, 64], strides = [1, 1]} : vector<2x192xf32> to vector<2x64xf32>
    %381 = vector.extract_strided_slice %369 {offsets = [0, 192], sizes = [2, 64], strides = [1, 1]} : vector<2x256xf32> to vector<2x64xf32>
    %382 = math.tanh %381 : vector<2x64xf32>
    %383 = arith.mulf %379, %333 : vector<2x64xf32>
    %384 = arith.mulf %378, %382 : vector<2x64xf32>
    %385 = arith.addf %383, %384 : vector<2x64xf32>
    %386 = math.tanh %385 : vector<2x64xf32>
    %387 = arith.mulf %380, %386 : vector<2x64xf32>
    %388 = vector.broadcast %18 : vector<1x64xf32> to vector<2x64xf32>
    %389 = arith.mulf %387, %388 : vector<2x64xf32>
    %cst_97 = arith.constant dense<0.000000e+00> : vector<2xf32>
    %390 = vector.multi_reduction <add>, %389, %cst_97 [1] : vector<2x64xf32> to vector<2xf32>
    %391 = vector.shape_cast %390 : vector<2xf32> to vector<2x1xf32>
    %392 = vector.broadcast %19 : vector<1x1xf32> to vector<2x1xf32>
    %393 = arith.addf %391, %392 : vector<2x1xf32>
    %c6_98 = arith.constant 6 : index
    %c0_99 = arith.constant 0 : index
    %394 = vector.load %arg8[%c6_98, %c0_99] : memref<32x1xf32, #tpu.memory_space<vmem>>, vector<2x1xf32>
    tpu.vector_store %arg8[%c6_98, %c0_99], %393 {strides = array<i32>} : memref<32x1xf32, #tpu.memory_space<vmem>>, vector<2x1xf32>,
    %c8 = arith.constant 8 : index
    %c0_100 = arith.constant 0 : index
    %395 = vector.load %arg9[%c8, %c0_100] : memref<32x256xf32, #tpu.memory_space<vmem>>, vector<2x256xf32>
    %396 = arith.truncf %364 : vector<2x64xf32> to vector<2x64xbf16>
    %cst_101 = arith.constant dense<0.000000e+00> : vector<2x256xf32>
    %397 = tpu.matmul %396, %181, %cst_101 {dimension_numbers = #tpu.dot_dimension_numbers<[1], [0], [0], [1], [0, 0, 1, 1], [], []>} : vector<2x64xbf16>, vector<64x256xbf16>, vector<2x256xf32> -> vector<2x256xf32>
    %398 = arith.addf %395, %397 : vector<2x256xf32>
    %399 = vector.extract_strided_slice %398 {offsets = [0, 0], sizes = [2, 192], strides = [1, 1]} : vector<2x256xf32> to vector<2x192xf32>
    %cst_102 = arith.constant 5.000000e-01 : f32
    %400 = vector.broadcast %cst_102 : f32 to vector<2x192xf32>
    %401 = arith.mulf %400, %399 : vector<2x192xf32>
    %402 = math.tanh %401 : vector<2x192xf32>
    %cst_103 = arith.constant 5.000000e-01 : f32
    %403 = vector.broadcast %cst_103 : f32 to vector<2x192xf32>
    %404 = arith.mulf %403, %402 : vector<2x192xf32>
    %cst_104 = arith.constant 5.000000e-01 : f32
    %405 = vector.broadcast %cst_104 : f32 to vector<2x192xf32>
    %406 = arith.addf %404, %405 : vector<2x192xf32>
    %407 = vector.extract_strided_slice %406 {offsets = [0, 0], sizes = [2, 64], strides = [1, 1]} : vector<2x192xf32> to vector<2x64xf32>
    %408 = vector.extract_strided_slice %406 {offsets = [0, 64], sizes = [2, 64], strides = [1, 1]} : vector<2x192xf32> to vector<2x64xf32>
    %409 = vector.extract_strided_slice %406 {offsets = [0, 128], sizes = [2, 64], strides = [1, 1]} : vector<2x192xf32> to vector<2x64xf32>
    %410 = vector.extract_strided_slice %398 {offsets = [0, 192], sizes = [2, 64], strides = [1, 1]} : vector<2x256xf32> to vector<2x64xf32>
    %411 = math.tanh %410 : vector<2x64xf32>
    %412 = arith.mulf %408, %362 : vector<2x64xf32>
    %413 = arith.mulf %407, %411 : vector<2x64xf32>
    %414 = arith.addf %412, %413 : vector<2x64xf32>
    %415 = math.tanh %414 : vector<2x64xf32>
    %416 = arith.mulf %409, %415 : vector<2x64xf32>
    %417 = tpu.concatenate %416, %387 in 1 : vector<2x64xf32>, vector<2x64xf32> -> vector<2x128xf32>
    %418 = arith.truncf %417 : vector<2x128xf32> to vector<2x128xbf16>
    %cst_105 = arith.constant dense<0.000000e+00> : vector<2x256xf32>
    %419 = tpu.matmul %418, %182, %cst_105 {dimension_numbers = #tpu.dot_dimension_numbers<[1], [0], [0], [1], [0, 0, 1, 1], [], []>} : vector<2x128xbf16>, vector<128x256xbf16>, vector<2x256xf32> -> vector<2x256xf32>
    %420 = vector.broadcast %17 : vector<1x256xf32> to vector<2x256xf32>
    %421 = arith.addf %419, %420 : vector<2x256xf32>
    %422 = vector.extract_strided_slice %421 {offsets = [0, 0], sizes = [2, 192], strides = [1, 1]} : vector<2x256xf32> to vector<2x192xf32>
    %cst_106 = arith.constant 5.000000e-01 : f32
    %423 = vector.broadcast %cst_106 : f32 to vector<2x192xf32>
    %424 = arith.mulf %423, %422 : vector<2x192xf32>
    %425 = math.tanh %424 : vector<2x192xf32>
    %cst_107 = arith.constant 5.000000e-01 : f32
    %426 = vector.broadcast %cst_107 : f32 to vector<2x192xf32>
    %427 = arith.mulf %426, %425 : vector<2x192xf32>
    %cst_108 = arith.constant 5.000000e-01 : f32
    %428 = vector.broadcast %cst_108 : f32 to vector<2x192xf32>
    %429 = arith.addf %427, %428 : vector<2x192xf32>
    %430 = vector.extract_strided_slice %429 {offsets = [0, 0], sizes = [2, 64], strides = [1, 1]} : vector<2x192xf32> to vector<2x64xf32>
    %431 = vector.extract_strided_slice %429 {offsets = [0, 64], sizes = [2, 64], strides = [1, 1]} : vector<2x192xf32> to vector<2x64xf32>
    %432 = vector.extract_strided_slice %429 {offsets = [0, 128], sizes = [2, 64], strides = [1, 1]} : vector<2x192xf32> to vector<2x64xf32>
    %433 = vector.extract_strided_slice %421 {offsets = [0, 192], sizes = [2, 64], strides = [1, 1]} : vector<2x256xf32> to vector<2x64xf32>
    %434 = math.tanh %433 : vector<2x64xf32>
    %435 = arith.mulf %431, %385 : vector<2x64xf32>
    %436 = arith.mulf %430, %434 : vector<2x64xf32>
    %437 = arith.addf %435, %436 : vector<2x64xf32>
    %438 = math.tanh %437 : vector<2x64xf32>
    %439 = arith.mulf %432, %438 : vector<2x64xf32>
    %440 = vector.broadcast %18 : vector<1x64xf32> to vector<2x64xf32>
    %441 = arith.mulf %439, %440 : vector<2x64xf32>
    %cst_109 = arith.constant dense<0.000000e+00> : vector<2xf32>
    %442 = vector.multi_reduction <add>, %441, %cst_109 [1] : vector<2x64xf32> to vector<2xf32>
    %443 = vector.shape_cast %442 : vector<2xf32> to vector<2x1xf32>
    %444 = vector.broadcast %19 : vector<1x1xf32> to vector<2x1xf32>
    %445 = arith.addf %443, %444 : vector<2x1xf32>
    %c8_110 = arith.constant 8 : index
    %c0_111 = arith.constant 0 : index
    %446 = vector.load %arg8[%c8_110, %c0_111] : memref<32x1xf32, #tpu.memory_space<vmem>>, vector<2x1xf32>
    tpu.vector_store %arg8[%c8_110, %c0_111], %445 {strides = array<i32>} : memref<32x1xf32, #tpu.memory_space<vmem>>, vector<2x1xf32>,
    %c10 = arith.constant 10 : index
    %c0_112 = arith.constant 0 : index
    %447 = vector.load %arg9[%c10, %c0_112] : memref<32x256xf32, #tpu.memory_space<vmem>>, vector<2x256xf32>
    %448 = arith.truncf %416 : vector<2x64xf32> to vector<2x64xbf16>
    %cst_113 = arith.constant dense<0.000000e+00> : vector<2x256xf32>
    %449 = tpu.matmul %448, %181, %cst_113 {dimension_numbers = #tpu.dot_dimension_numbers<[1], [0], [0], [1], [0, 0, 1, 1], [], []>} : vector<2x64xbf16>, vector<64x256xbf16>, vector<2x256xf32> -> vector<2x256xf32>
    %450 = arith.addf %447, %449 : vector<2x256xf32>
    %451 = vector.extract_strided_slice %450 {offsets = [0, 0], sizes = [2, 192], strides = [1, 1]} : vector<2x256xf32> to vector<2x192xf32>
    %cst_114 = arith.constant 5.000000e-01 : f32
    %452 = vector.broadcast %cst_114 : f32 to vector<2x192xf32>
    %453 = arith.mulf %452, %451 : vector<2x192xf32>
    %454 = math.tanh %453 : vector<2x192xf32>
    %cst_115 = arith.constant 5.000000e-01 : f32
    %455 = vector.broadcast %cst_115 : f32 to vector<2x192xf32>
    %456 = arith.mulf %455, %454 : vector<2x192xf32>
    %cst_116 = arith.constant 5.000000e-01 : f32
    %457 = vector.broadcast %cst_116 : f32 to vector<2x192xf32>
    %458 = arith.addf %456, %457 : vector<2x192xf32>
    %459 = vector.extract_strided_slice %458 {offsets = [0, 0], sizes = [2, 64], strides = [1, 1]} : vector<2x192xf32> to vector<2x64xf32>
    %460 = vector.extract_strided_slice %458 {offsets = [0, 64], sizes = [2, 64], strides = [1, 1]} : vector<2x192xf32> to vector<2x64xf32>
    %461 = vector.extract_strided_slice %458 {offsets = [0, 128], sizes = [2, 64], strides = [1, 1]} : vector<2x192xf32> to vector<2x64xf32>
    %462 = vector.extract_strided_slice %450 {offsets = [0, 192], sizes = [2, 64], strides = [1, 1]} : vector<2x256xf32> to vector<2x64xf32>
    %463 = math.tanh %462 : vector<2x64xf32>
    %464 = arith.mulf %460, %414 : vector<2x64xf32>
    %465 = arith.mulf %459, %463 : vector<2x64xf32>
    %466 = arith.addf %464, %465 : vector<2x64xf32>
    %467 = math.tanh %466 : vector<2x64xf32>
    %468 = arith.mulf %461, %467 : vector<2x64xf32>
    %469 = tpu.concatenate %468, %439 in 1 : vector<2x64xf32>, vector<2x64xf32> -> vector<2x128xf32>
    %470 = arith.truncf %469 : vector<2x128xf32> to vector<2x128xbf16>
    %cst_117 = arith.constant dense<0.000000e+00> : vector<2x256xf32>
    %471 = tpu.matmul %470, %182, %cst_117 {dimension_numbers = #tpu.dot_dimension_numbers<[1], [0], [0], [1], [0, 0, 1, 1], [], []>} : vector<2x128xbf16>, vector<128x256xbf16>, vector<2x256xf32> -> vector<2x256xf32>
    %472 = vector.broadcast %17 : vector<1x256xf32> to vector<2x256xf32>
    %473 = arith.addf %471, %472 : vector<2x256xf32>
    %474 = vector.extract_strided_slice %473 {offsets = [0, 0], sizes = [2, 192], strides = [1, 1]} : vector<2x256xf32> to vector<2x192xf32>
    %cst_118 = arith.constant 5.000000e-01 : f32
    %475 = vector.broadcast %cst_118 : f32 to vector<2x192xf32>
    %476 = arith.mulf %475, %474 : vector<2x192xf32>
    %477 = math.tanh %476 : vector<2x192xf32>
    %cst_119 = arith.constant 5.000000e-01 : f32
    %478 = vector.broadcast %cst_119 : f32 to vector<2x192xf32>
    %479 = arith.mulf %478, %477 : vector<2x192xf32>
    %cst_120 = arith.constant 5.000000e-01 : f32
    %480 = vector.broadcast %cst_120 : f32 to vector<2x192xf32>
    %481 = arith.addf %479, %480 : vector<2x192xf32>
    %482 = vector.extract_strided_slice %481 {offsets = [0, 0], sizes = [2, 64], strides = [1, 1]} : vector<2x192xf32> to vector<2x64xf32>
    %483 = vector.extract_strided_slice %481 {offsets = [0, 64], sizes = [2, 64], strides = [1, 1]} : vector<2x192xf32> to vector<2x64xf32>
    %484 = vector.extract_strided_slice %481 {offsets = [0, 128], sizes = [2, 64], strides = [1, 1]} : vector<2x192xf32> to vector<2x64xf32>
    %485 = vector.extract_strided_slice %473 {offsets = [0, 192], sizes = [2, 64], strides = [1, 1]} : vector<2x256xf32> to vector<2x64xf32>
    %486 = math.tanh %485 : vector<2x64xf32>
    %487 = arith.mulf %483, %437 : vector<2x64xf32>
    %488 = arith.mulf %482, %486 : vector<2x64xf32>
    %489 = arith.addf %487, %488 : vector<2x64xf32>
    %490 = math.tanh %489 : vector<2x64xf32>
    %491 = arith.mulf %484, %490 : vector<2x64xf32>
    %492 = vector.broadcast %18 : vector<1x64xf32> to vector<2x64xf32>
    %493 = arith.mulf %491, %492 : vector<2x64xf32>
    %cst_121 = arith.constant dense<0.000000e+00> : vector<2xf32>
    %494 = vector.multi_reduction <add>, %493, %cst_121 [1] : vector<2x64xf32> to vector<2xf32>
    %495 = vector.shape_cast %494 : vector<2xf32> to vector<2x1xf32>
    %496 = vector.broadcast %19 : vector<1x1xf32> to vector<2x1xf32>
    %497 = arith.addf %495, %496 : vector<2x1xf32>
    %c10_122 = arith.constant 10 : index
    %c0_123 = arith.constant 0 : index
    %498 = vector.load %arg8[%c10_122, %c0_123] : memref<32x1xf32, #tpu.memory_space<vmem>>, vector<2x1xf32>
    tpu.vector_store %arg8[%c10_122, %c0_123], %497 {strides = array<i32>} : memref<32x1xf32, #tpu.memory_space<vmem>>, vector<2x1xf32>,
    %c12 = arith.constant 12 : index
    %c0_124 = arith.constant 0 : index
    %499 = vector.load %arg9[%c12, %c0_124] : memref<32x256xf32, #tpu.memory_space<vmem>>, vector<2x256xf32>
    %500 = arith.truncf %468 : vector<2x64xf32> to vector<2x64xbf16>
    %cst_125 = arith.constant dense<0.000000e+00> : vector<2x256xf32>
    %501 = tpu.matmul %500, %181, %cst_125 {dimension_numbers = #tpu.dot_dimension_numbers<[1], [0], [0], [1], [0, 0, 1, 1], [], []>} : vector<2x64xbf16>, vector<64x256xbf16>, vector<2x256xf32> -> vector<2x256xf32>
    %502 = arith.addf %499, %501 : vector<2x256xf32>
    %503 = vector.extract_strided_slice %502 {offsets = [0, 0], sizes = [2, 192], strides = [1, 1]} : vector<2x256xf32> to vector<2x192xf32>
    %cst_126 = arith.constant 5.000000e-01 : f32
    %504 = vector.broadcast %cst_126 : f32 to vector<2x192xf32>
    %505 = arith.mulf %504, %503 : vector<2x192xf32>
    %506 = math.tanh %505 : vector<2x192xf32>
    %cst_127 = arith.constant 5.000000e-01 : f32
    %507 = vector.broadcast %cst_127 : f32 to vector<2x192xf32>
    %508 = arith.mulf %507, %506 : vector<2x192xf32>
    %cst_128 = arith.constant 5.000000e-01 : f32
    %509 = vector.broadcast %cst_128 : f32 to vector<2x192xf32>
    %510 = arith.addf %508, %509 : vector<2x192xf32>
    %511 = vector.extract_strided_slice %510 {offsets = [0, 0], sizes = [2, 64], strides = [1, 1]} : vector<2x192xf32> to vector<2x64xf32>
    %512 = vector.extract_strided_slice %510 {offsets = [0, 64], sizes = [2, 64], strides = [1, 1]} : vector<2x192xf32> to vector<2x64xf32>
    %513 = vector.extract_strided_slice %510 {offsets = [0, 128], sizes = [2, 64], strides = [1, 1]} : vector<2x192xf32> to vector<2x64xf32>
    %514 = vector.extract_strided_slice %502 {offsets = [0, 192], sizes = [2, 64], strides = [1, 1]} : vector<2x256xf32> to vector<2x64xf32>
    %515 = math.tanh %514 : vector<2x64xf32>
    %516 = arith.mulf %512, %466 : vector<2x64xf32>
    %517 = arith.mulf %511, %515 : vector<2x64xf32>
    %518 = arith.addf %516, %517 : vector<2x64xf32>
    %519 = math.tanh %518 : vector<2x64xf32>
    %520 = arith.mulf %513, %519 : vector<2x64xf32>
    %521 = tpu.concatenate %520, %491 in 1 : vector<2x64xf32>, vector<2x64xf32> -> vector<2x128xf32>
    %522 = arith.truncf %521 : vector<2x128xf32> to vector<2x128xbf16>
    %cst_129 = arith.constant dense<0.000000e+00> : vector<2x256xf32>
    %523 = tpu.matmul %522, %182, %cst_129 {dimension_numbers = #tpu.dot_dimension_numbers<[1], [0], [0], [1], [0, 0, 1, 1], [], []>} : vector<2x128xbf16>, vector<128x256xbf16>, vector<2x256xf32> -> vector<2x256xf32>
    %524 = vector.broadcast %17 : vector<1x256xf32> to vector<2x256xf32>
    %525 = arith.addf %523, %524 : vector<2x256xf32>
    %526 = vector.extract_strided_slice %525 {offsets = [0, 0], sizes = [2, 192], strides = [1, 1]} : vector<2x256xf32> to vector<2x192xf32>
    %cst_130 = arith.constant 5.000000e-01 : f32
    %527 = vector.broadcast %cst_130 : f32 to vector<2x192xf32>
    %528 = arith.mulf %527, %526 : vector<2x192xf32>
    %529 = math.tanh %528 : vector<2x192xf32>
    %cst_131 = arith.constant 5.000000e-01 : f32
    %530 = vector.broadcast %cst_131 : f32 to vector<2x192xf32>
    %531 = arith.mulf %530, %529 : vector<2x192xf32>
    %cst_132 = arith.constant 5.000000e-01 : f32
    %532 = vector.broadcast %cst_132 : f32 to vector<2x192xf32>
    %533 = arith.addf %531, %532 : vector<2x192xf32>
    %534 = vector.extract_strided_slice %533 {offsets = [0, 0], sizes = [2, 64], strides = [1, 1]} : vector<2x192xf32> to vector<2x64xf32>
    %535 = vector.extract_strided_slice %533 {offsets = [0, 64], sizes = [2, 64], strides = [1, 1]} : vector<2x192xf32> to vector<2x64xf32>
    %536 = vector.extract_strided_slice %533 {offsets = [0, 128], sizes = [2, 64], strides = [1, 1]} : vector<2x192xf32> to vector<2x64xf32>
    %537 = vector.extract_strided_slice %525 {offsets = [0, 192], sizes = [2, 64], strides = [1, 1]} : vector<2x256xf32> to vector<2x64xf32>
    %538 = math.tanh %537 : vector<2x64xf32>
    %539 = arith.mulf %535, %489 : vector<2x64xf32>
    %540 = arith.mulf %534, %538 : vector<2x64xf32>
    %541 = arith.addf %539, %540 : vector<2x64xf32>
    %542 = math.tanh %541 : vector<2x64xf32>
    %543 = arith.mulf %536, %542 : vector<2x64xf32>
    %544 = vector.broadcast %18 : vector<1x64xf32> to vector<2x64xf32>
    %545 = arith.mulf %543, %544 : vector<2x64xf32>
    %cst_133 = arith.constant dense<0.000000e+00> : vector<2xf32>
    %546 = vector.multi_reduction <add>, %545, %cst_133 [1] : vector<2x64xf32> to vector<2xf32>
    %547 = vector.shape_cast %546 : vector<2xf32> to vector<2x1xf32>
    %548 = vector.broadcast %19 : vector<1x1xf32> to vector<2x1xf32>
    %549 = arith.addf %547, %548 : vector<2x1xf32>
    %c12_134 = arith.constant 12 : index
    %c0_135 = arith.constant 0 : index
    %550 = vector.load %arg8[%c12_134, %c0_135] : memref<32x1xf32, #tpu.memory_space<vmem>>, vector<2x1xf32>
    tpu.vector_store %arg8[%c12_134, %c0_135], %549 {strides = array<i32>} : memref<32x1xf32, #tpu.memory_space<vmem>>, vector<2x1xf32>,
    %c14 = arith.constant 14 : index
    %c0_136 = arith.constant 0 : index
    %551 = vector.load %arg9[%c14, %c0_136] : memref<32x256xf32, #tpu.memory_space<vmem>>, vector<2x256xf32>
    %552 = arith.truncf %520 : vector<2x64xf32> to vector<2x64xbf16>
    %cst_137 = arith.constant dense<0.000000e+00> : vector<2x256xf32>
    %553 = tpu.matmul %552, %181, %cst_137 {dimension_numbers = #tpu.dot_dimension_numbers<[1], [0], [0], [1], [0, 0, 1, 1], [], []>} : vector<2x64xbf16>, vector<64x256xbf16>, vector<2x256xf32> -> vector<2x256xf32>
    %554 = arith.addf %551, %553 : vector<2x256xf32>
    %555 = vector.extract_strided_slice %554 {offsets = [0, 0], sizes = [2, 192], strides = [1, 1]} : vector<2x256xf32> to vector<2x192xf32>
    %cst_138 = arith.constant 5.000000e-01 : f32
    %556 = vector.broadcast %cst_138 : f32 to vector<2x192xf32>
    %557 = arith.mulf %556, %555 : vector<2x192xf32>
    %558 = math.tanh %557 : vector<2x192xf32>
    %cst_139 = arith.constant 5.000000e-01 : f32
    %559 = vector.broadcast %cst_139 : f32 to vector<2x192xf32>
    %560 = arith.mulf %559, %558 : vector<2x192xf32>
    %cst_140 = arith.constant 5.000000e-01 : f32
    %561 = vector.broadcast %cst_140 : f32 to vector<2x192xf32>
    %562 = arith.addf %560, %561 : vector<2x192xf32>
    %563 = vector.extract_strided_slice %562 {offsets = [0, 0], sizes = [2, 64], strides = [1, 1]} : vector<2x192xf32> to vector<2x64xf32>
    %564 = vector.extract_strided_slice %562 {offsets = [0, 64], sizes = [2, 64], strides = [1, 1]} : vector<2x192xf32> to vector<2x64xf32>
    %565 = vector.extract_strided_slice %562 {offsets = [0, 128], sizes = [2, 64], strides = [1, 1]} : vector<2x192xf32> to vector<2x64xf32>
    %566 = vector.extract_strided_slice %554 {offsets = [0, 192], sizes = [2, 64], strides = [1, 1]} : vector<2x256xf32> to vector<2x64xf32>
    %567 = math.tanh %566 : vector<2x64xf32>
    %568 = arith.mulf %564, %518 : vector<2x64xf32>
    %569 = arith.mulf %563, %567 : vector<2x64xf32>
    %570 = arith.addf %568, %569 : vector<2x64xf32>
    %571 = math.tanh %570 : vector<2x64xf32>
    %572 = arith.mulf %565, %571 : vector<2x64xf32>
    %573 = tpu.concatenate %572, %543 in 1 : vector<2x64xf32>, vector<2x64xf32> -> vector<2x128xf32>
    %574 = arith.truncf %573 : vector<2x128xf32> to vector<2x128xbf16>
    %cst_141 = arith.constant dense<0.000000e+00> : vector<2x256xf32>
    %575 = tpu.matmul %574, %182, %cst_141 {dimension_numbers = #tpu.dot_dimension_numbers<[1], [0], [0], [1], [0, 0, 1, 1], [], []>} : vector<2x128xbf16>, vector<128x256xbf16>, vector<2x256xf32> -> vector<2x256xf32>
    %576 = vector.broadcast %17 : vector<1x256xf32> to vector<2x256xf32>
    %577 = arith.addf %575, %576 : vector<2x256xf32>
    %578 = vector.extract_strided_slice %577 {offsets = [0, 0], sizes = [2, 192], strides = [1, 1]} : vector<2x256xf32> to vector<2x192xf32>
    %cst_142 = arith.constant 5.000000e-01 : f32
    %579 = vector.broadcast %cst_142 : f32 to vector<2x192xf32>
    %580 = arith.mulf %579, %578 : vector<2x192xf32>
    %581 = math.tanh %580 : vector<2x192xf32>
    %cst_143 = arith.constant 5.000000e-01 : f32
    %582 = vector.broadcast %cst_143 : f32 to vector<2x192xf32>
    %583 = arith.mulf %582, %581 : vector<2x192xf32>
    %cst_144 = arith.constant 5.000000e-01 : f32
    %584 = vector.broadcast %cst_144 : f32 to vector<2x192xf32>
    %585 = arith.addf %583, %584 : vector<2x192xf32>
    %586 = vector.extract_strided_slice %585 {offsets = [0, 0], sizes = [2, 64], strides = [1, 1]} : vector<2x192xf32> to vector<2x64xf32>
    %587 = vector.extract_strided_slice %585 {offsets = [0, 64], sizes = [2, 64], strides = [1, 1]} : vector<2x192xf32> to vector<2x64xf32>
    %588 = vector.extract_strided_slice %585 {offsets = [0, 128], sizes = [2, 64], strides = [1, 1]} : vector<2x192xf32> to vector<2x64xf32>
    %589 = vector.extract_strided_slice %577 {offsets = [0, 192], sizes = [2, 64], strides = [1, 1]} : vector<2x256xf32> to vector<2x64xf32>
    %590 = math.tanh %589 : vector<2x64xf32>
    %591 = arith.mulf %587, %541 : vector<2x64xf32>
    %592 = arith.mulf %586, %590 : vector<2x64xf32>
    %593 = arith.addf %591, %592 : vector<2x64xf32>
    %594 = math.tanh %593 : vector<2x64xf32>
    %595 = arith.mulf %588, %594 : vector<2x64xf32>
    %596 = vector.broadcast %18 : vector<1x64xf32> to vector<2x64xf32>
    %597 = arith.mulf %595, %596 : vector<2x64xf32>
    %cst_145 = arith.constant dense<0.000000e+00> : vector<2xf32>
    %598 = vector.multi_reduction <add>, %597, %cst_145 [1] : vector<2x64xf32> to vector<2xf32>
    %599 = vector.shape_cast %598 : vector<2xf32> to vector<2x1xf32>
    %600 = vector.broadcast %19 : vector<1x1xf32> to vector<2x1xf32>
    %601 = arith.addf %599, %600 : vector<2x1xf32>
    %c14_146 = arith.constant 14 : index
    %c0_147 = arith.constant 0 : index
    %602 = vector.load %arg8[%c14_146, %c0_147] : memref<32x1xf32, #tpu.memory_space<vmem>>, vector<2x1xf32>
    tpu.vector_store %arg8[%c14_146, %c0_147], %601 {strides = array<i32>} : memref<32x1xf32, #tpu.memory_space<vmem>>, vector<2x1xf32>,
    %c16 = arith.constant 16 : index
    %c0_148 = arith.constant 0 : index
    %603 = vector.load %arg9[%c16, %c0_148] : memref<32x256xf32, #tpu.memory_space<vmem>>, vector<2x256xf32>
    %604 = arith.truncf %572 : vector<2x64xf32> to vector<2x64xbf16>
    %cst_149 = arith.constant dense<0.000000e+00> : vector<2x256xf32>
    %605 = tpu.matmul %604, %181, %cst_149 {dimension_numbers = #tpu.dot_dimension_numbers<[1], [0], [0], [1], [0, 0, 1, 1], [], []>} : vector<2x64xbf16>, vector<64x256xbf16>, vector<2x256xf32> -> vector<2x256xf32>
    %606 = arith.addf %603, %605 : vector<2x256xf32>
    %607 = vector.extract_strided_slice %606 {offsets = [0, 0], sizes = [2, 192], strides = [1, 1]} : vector<2x256xf32> to vector<2x192xf32>
    %cst_150 = arith.constant 5.000000e-01 : f32
    %608 = vector.broadcast %cst_150 : f32 to vector<2x192xf32>
    %609 = arith.mulf %608, %607 : vector<2x192xf32>
    %610 = math.tanh %609 : vector<2x192xf32>
    %cst_151 = arith.constant 5.000000e-01 : f32
    %611 = vector.broadcast %cst_151 : f32 to vector<2x192xf32>
    %612 = arith.mulf %611, %610 : vector<2x192xf32>
    %cst_152 = arith.constant 5.000000e-01 : f32
    %613 = vector.broadcast %cst_152 : f32 to vector<2x192xf32>
    %614 = arith.addf %612, %613 : vector<2x192xf32>
    %615 = vector.extract_strided_slice %614 {offsets = [0, 0], sizes = [2, 64], strides = [1, 1]} : vector<2x192xf32> to vector<2x64xf32>
    %616 = vector.extract_strided_slice %614 {offsets = [0, 64], sizes = [2, 64], strides = [1, 1]} : vector<2x192xf32> to vector<2x64xf32>
    %617 = vector.extract_strided_slice %614 {offsets = [0, 128], sizes = [2, 64], strides = [1, 1]} : vector<2x192xf32> to vector<2x64xf32>
    %618 = vector.extract_strided_slice %606 {offsets = [0, 192], sizes = [2, 64], strides = [1, 1]} : vector<2x256xf32> to vector<2x64xf32>
    %619 = math.tanh %618 : vector<2x64xf32>
    %620 = arith.mulf %616, %570 : vector<2x64xf32>
    %621 = arith.mulf %615, %619 : vector<2x64xf32>
    %622 = arith.addf %620, %621 : vector<2x64xf32>
    %623 = math.tanh %622 : vector<2x64xf32>
    %624 = arith.mulf %617, %623 : vector<2x64xf32>
    %625 = tpu.concatenate %624, %595 in 1 : vector<2x64xf32>, vector<2x64xf32> -> vector<2x128xf32>
    %626 = arith.truncf %625 : vector<2x128xf32> to vector<2x128xbf16>
    %cst_153 = arith.constant dense<0.000000e+00> : vector<2x256xf32>
    %627 = tpu.matmul %626, %182, %cst_153 {dimension_numbers = #tpu.dot_dimension_numbers<[1], [0], [0], [1], [0, 0, 1, 1], [], []>} : vector<2x128xbf16>, vector<128x256xbf16>, vector<2x256xf32> -> vector<2x256xf32>
    %628 = vector.broadcast %17 : vector<1x256xf32> to vector<2x256xf32>
    %629 = arith.addf %627, %628 : vector<2x256xf32>
    %630 = vector.extract_strided_slice %629 {offsets = [0, 0], sizes = [2, 192], strides = [1, 1]} : vector<2x256xf32> to vector<2x192xf32>
    %cst_154 = arith.constant 5.000000e-01 : f32
    %631 = vector.broadcast %cst_154 : f32 to vector<2x192xf32>
    %632 = arith.mulf %631, %630 : vector<2x192xf32>
    %633 = math.tanh %632 : vector<2x192xf32>
    %cst_155 = arith.constant 5.000000e-01 : f32
    %634 = vector.broadcast %cst_155 : f32 to vector<2x192xf32>
    %635 = arith.mulf %634, %633 : vector<2x192xf32>
    %cst_156 = arith.constant 5.000000e-01 : f32
    %636 = vector.broadcast %cst_156 : f32 to vector<2x192xf32>
    %637 = arith.addf %635, %636 : vector<2x192xf32>
    %638 = vector.extract_strided_slice %637 {offsets = [0, 0], sizes = [2, 64], strides = [1, 1]} : vector<2x192xf32> to vector<2x64xf32>
    %639 = vector.extract_strided_slice %637 {offsets = [0, 64], sizes = [2, 64], strides = [1, 1]} : vector<2x192xf32> to vector<2x64xf32>
    %640 = vector.extract_strided_slice %637 {offsets = [0, 128], sizes = [2, 64], strides = [1, 1]} : vector<2x192xf32> to vector<2x64xf32>
    %641 = vector.extract_strided_slice %629 {offsets = [0, 192], sizes = [2, 64], strides = [1, 1]} : vector<2x256xf32> to vector<2x64xf32>
    %642 = math.tanh %641 : vector<2x64xf32>
    %643 = arith.mulf %639, %593 : vector<2x64xf32>
    %644 = arith.mulf %638, %642 : vector<2x64xf32>
    %645 = arith.addf %643, %644 : vector<2x64xf32>
    %646 = math.tanh %645 : vector<2x64xf32>
    %647 = arith.mulf %640, %646 : vector<2x64xf32>
    %648 = vector.broadcast %18 : vector<1x64xf32> to vector<2x64xf32>
    %649 = arith.mulf %647, %648 : vector<2x64xf32>
    %cst_157 = arith.constant dense<0.000000e+00> : vector<2xf32>
    %650 = vector.multi_reduction <add>, %649, %cst_157 [1] : vector<2x64xf32> to vector<2xf32>
    %651 = vector.shape_cast %650 : vector<2xf32> to vector<2x1xf32>
    %652 = vector.broadcast %19 : vector<1x1xf32> to vector<2x1xf32>
    %653 = arith.addf %651, %652 : vector<2x1xf32>
    %c16_158 = arith.constant 16 : index
    %c0_159 = arith.constant 0 : index
    %654 = vector.load %arg8[%c16_158, %c0_159] : memref<32x1xf32, #tpu.memory_space<vmem>>, vector<2x1xf32>
    tpu.vector_store %arg8[%c16_158, %c0_159], %653 {strides = array<i32>} : memref<32x1xf32, #tpu.memory_space<vmem>>, vector<2x1xf32>,
    %c18 = arith.constant 18 : index
    %c0_160 = arith.constant 0 : index
    %655 = vector.load %arg9[%c18, %c0_160] : memref<32x256xf32, #tpu.memory_space<vmem>>, vector<2x256xf32>
    %656 = arith.truncf %624 : vector<2x64xf32> to vector<2x64xbf16>
    %cst_161 = arith.constant dense<0.000000e+00> : vector<2x256xf32>
    %657 = tpu.matmul %656, %181, %cst_161 {dimension_numbers = #tpu.dot_dimension_numbers<[1], [0], [0], [1], [0, 0, 1, 1], [], []>} : vector<2x64xbf16>, vector<64x256xbf16>, vector<2x256xf32> -> vector<2x256xf32>
    %658 = arith.addf %655, %657 : vector<2x256xf32>
    %659 = vector.extract_strided_slice %658 {offsets = [0, 0], sizes = [2, 192], strides = [1, 1]} : vector<2x256xf32> to vector<2x192xf32>
    %cst_162 = arith.constant 5.000000e-01 : f32
    %660 = vector.broadcast %cst_162 : f32 to vector<2x192xf32>
    %661 = arith.mulf %660, %659 : vector<2x192xf32>
    %662 = math.tanh %661 : vector<2x192xf32>
    %cst_163 = arith.constant 5.000000e-01 : f32
    %663 = vector.broadcast %cst_163 : f32 to vector<2x192xf32>
    %664 = arith.mulf %663, %662 : vector<2x192xf32>
    %cst_164 = arith.constant 5.000000e-01 : f32
    %665 = vector.broadcast %cst_164 : f32 to vector<2x192xf32>
    %666 = arith.addf %664, %665 : vector<2x192xf32>
    %667 = vector.extract_strided_slice %666 {offsets = [0, 0], sizes = [2, 64], strides = [1, 1]} : vector<2x192xf32> to vector<2x64xf32>
    %668 = vector.extract_strided_slice %666 {offsets = [0, 64], sizes = [2, 64], strides = [1, 1]} : vector<2x192xf32> to vector<2x64xf32>
    %669 = vector.extract_strided_slice %666 {offsets = [0, 128], sizes = [2, 64], strides = [1, 1]} : vector<2x192xf32> to vector<2x64xf32>
    %670 = vector.extract_strided_slice %658 {offsets = [0, 192], sizes = [2, 64], strides = [1, 1]} : vector<2x256xf32> to vector<2x64xf32>
    %671 = math.tanh %670 : vector<2x64xf32>
    %672 = arith.mulf %668, %622 : vector<2x64xf32>
    %673 = arith.mulf %667, %671 : vector<2x64xf32>
    %674 = arith.addf %672, %673 : vector<2x64xf32>
    %675 = math.tanh %674 : vector<2x64xf32>
    %676 = arith.mulf %669, %675 : vector<2x64xf32>
    %677 = tpu.concatenate %676, %647 in 1 : vector<2x64xf32>, vector<2x64xf32> -> vector<2x128xf32>
    %678 = arith.truncf %677 : vector<2x128xf32> to vector<2x128xbf16>
    %cst_165 = arith.constant dense<0.000000e+00> : vector<2x256xf32>
    %679 = tpu.matmul %678, %182, %cst_165 {dimension_numbers = #tpu.dot_dimension_numbers<[1], [0], [0], [1], [0, 0, 1, 1], [], []>} : vector<2x128xbf16>, vector<128x256xbf16>, vector<2x256xf32> -> vector<2x256xf32>
    %680 = vector.broadcast %17 : vector<1x256xf32> to vector<2x256xf32>
    %681 = arith.addf %679, %680 : vector<2x256xf32>
    %682 = vector.extract_strided_slice %681 {offsets = [0, 0], sizes = [2, 192], strides = [1, 1]} : vector<2x256xf32> to vector<2x192xf32>
    %cst_166 = arith.constant 5.000000e-01 : f32
    %683 = vector.broadcast %cst_166 : f32 to vector<2x192xf32>
    %684 = arith.mulf %683, %682 : vector<2x192xf32>
    %685 = math.tanh %684 : vector<2x192xf32>
    %cst_167 = arith.constant 5.000000e-01 : f32
    %686 = vector.broadcast %cst_167 : f32 to vector<2x192xf32>
    %687 = arith.mulf %686, %685 : vector<2x192xf32>
    %cst_168 = arith.constant 5.000000e-01 : f32
    %688 = vector.broadcast %cst_168 : f32 to vector<2x192xf32>
    %689 = arith.addf %687, %688 : vector<2x192xf32>
    %690 = vector.extract_strided_slice %689 {offsets = [0, 0], sizes = [2, 64], strides = [1, 1]} : vector<2x192xf32> to vector<2x64xf32>
    %691 = vector.extract_strided_slice %689 {offsets = [0, 64], sizes = [2, 64], strides = [1, 1]} : vector<2x192xf32> to vector<2x64xf32>
    %692 = vector.extract_strided_slice %689 {offsets = [0, 128], sizes = [2, 64], strides = [1, 1]} : vector<2x192xf32> to vector<2x64xf32>
    %693 = vector.extract_strided_slice %681 {offsets = [0, 192], sizes = [2, 64], strides = [1, 1]} : vector<2x256xf32> to vector<2x64xf32>
    %694 = math.tanh %693 : vector<2x64xf32>
    %695 = arith.mulf %691, %645 : vector<2x64xf32>
    %696 = arith.mulf %690, %694 : vector<2x64xf32>
    %697 = arith.addf %695, %696 : vector<2x64xf32>
    %698 = math.tanh %697 : vector<2x64xf32>
    %699 = arith.mulf %692, %698 : vector<2x64xf32>
    %700 = vector.broadcast %18 : vector<1x64xf32> to vector<2x64xf32>
    %701 = arith.mulf %699, %700 : vector<2x64xf32>
    %cst_169 = arith.constant dense<0.000000e+00> : vector<2xf32>
    %702 = vector.multi_reduction <add>, %701, %cst_169 [1] : vector<2x64xf32> to vector<2xf32>
    %703 = vector.shape_cast %702 : vector<2xf32> to vector<2x1xf32>
    %704 = vector.broadcast %19 : vector<1x1xf32> to vector<2x1xf32>
    %705 = arith.addf %703, %704 : vector<2x1xf32>
    %c18_170 = arith.constant 18 : index
    %c0_171 = arith.constant 0 : index
    %706 = vector.load %arg8[%c18_170, %c0_171] : memref<32x1xf32, #tpu.memory_space<vmem>>, vector<2x1xf32>
    tpu.vector_store %arg8[%c18_170, %c0_171], %705 {strides = array<i32>} : memref<32x1xf32, #tpu.memory_space<vmem>>, vector<2x1xf32>,
    %c20 = arith.constant 20 : index
    %c0_172 = arith.constant 0 : index
    %707 = vector.load %arg9[%c20, %c0_172] : memref<32x256xf32, #tpu.memory_space<vmem>>, vector<2x256xf32>
    %708 = arith.truncf %676 : vector<2x64xf32> to vector<2x64xbf16>
    %cst_173 = arith.constant dense<0.000000e+00> : vector<2x256xf32>
    %709 = tpu.matmul %708, %181, %cst_173 {dimension_numbers = #tpu.dot_dimension_numbers<[1], [0], [0], [1], [0, 0, 1, 1], [], []>} : vector<2x64xbf16>, vector<64x256xbf16>, vector<2x256xf32> -> vector<2x256xf32>
    %710 = arith.addf %707, %709 : vector<2x256xf32>
    %711 = vector.extract_strided_slice %710 {offsets = [0, 0], sizes = [2, 192], strides = [1, 1]} : vector<2x256xf32> to vector<2x192xf32>
    %cst_174 = arith.constant 5.000000e-01 : f32
    %712 = vector.broadcast %cst_174 : f32 to vector<2x192xf32>
    %713 = arith.mulf %712, %711 : vector<2x192xf32>
    %714 = math.tanh %713 : vector<2x192xf32>
    %cst_175 = arith.constant 5.000000e-01 : f32
    %715 = vector.broadcast %cst_175 : f32 to vector<2x192xf32>
    %716 = arith.mulf %715, %714 : vector<2x192xf32>
    %cst_176 = arith.constant 5.000000e-01 : f32
    %717 = vector.broadcast %cst_176 : f32 to vector<2x192xf32>
    %718 = arith.addf %716, %717 : vector<2x192xf32>
    %719 = vector.extract_strided_slice %718 {offsets = [0, 0], sizes = [2, 64], strides = [1, 1]} : vector<2x192xf32> to vector<2x64xf32>
    %720 = vector.extract_strided_slice %718 {offsets = [0, 64], sizes = [2, 64], strides = [1, 1]} : vector<2x192xf32> to vector<2x64xf32>
    %721 = vector.extract_strided_slice %718 {offsets = [0, 128], sizes = [2, 64], strides = [1, 1]} : vector<2x192xf32> to vector<2x64xf32>
    %722 = vector.extract_strided_slice %710 {offsets = [0, 192], sizes = [2, 64], strides = [1, 1]} : vector<2x256xf32> to vector<2x64xf32>
    %723 = math.tanh %722 : vector<2x64xf32>
    %724 = arith.mulf %720, %674 : vector<2x64xf32>
    %725 = arith.mulf %719, %723 : vector<2x64xf32>
    %726 = arith.addf %724, %725 : vector<2x64xf32>
    %727 = math.tanh %726 : vector<2x64xf32>
    %728 = arith.mulf %721, %727 : vector<2x64xf32>
    %729 = tpu.concatenate %728, %699 in 1 : vector<2x64xf32>, vector<2x64xf32> -> vector<2x128xf32>
    %730 = arith.truncf %729 : vector<2x128xf32> to vector<2x128xbf16>
    %cst_177 = arith.constant dense<0.000000e+00> : vector<2x256xf32>
    %731 = tpu.matmul %730, %182, %cst_177 {dimension_numbers = #tpu.dot_dimension_numbers<[1], [0], [0], [1], [0, 0, 1, 1], [], []>} : vector<2x128xbf16>, vector<128x256xbf16>, vector<2x256xf32> -> vector<2x256xf32>
    %732 = vector.broadcast %17 : vector<1x256xf32> to vector<2x256xf32>
    %733 = arith.addf %731, %732 : vector<2x256xf32>
    %734 = vector.extract_strided_slice %733 {offsets = [0, 0], sizes = [2, 192], strides = [1, 1]} : vector<2x256xf32> to vector<2x192xf32>
    %cst_178 = arith.constant 5.000000e-01 : f32
    %735 = vector.broadcast %cst_178 : f32 to vector<2x192xf32>
    %736 = arith.mulf %735, %734 : vector<2x192xf32>
    %737 = math.tanh %736 : vector<2x192xf32>
    %cst_179 = arith.constant 5.000000e-01 : f32
    %738 = vector.broadcast %cst_179 : f32 to vector<2x192xf32>
    %739 = arith.mulf %738, %737 : vector<2x192xf32>
    %cst_180 = arith.constant 5.000000e-01 : f32
    %740 = vector.broadcast %cst_180 : f32 to vector<2x192xf32>
    %741 = arith.addf %739, %740 : vector<2x192xf32>
    %742 = vector.extract_strided_slice %741 {offsets = [0, 0], sizes = [2, 64], strides = [1, 1]} : vector<2x192xf32> to vector<2x64xf32>
    %743 = vector.extract_strided_slice %741 {offsets = [0, 64], sizes = [2, 64], strides = [1, 1]} : vector<2x192xf32> to vector<2x64xf32>
    %744 = vector.extract_strided_slice %741 {offsets = [0, 128], sizes = [2, 64], strides = [1, 1]} : vector<2x192xf32> to vector<2x64xf32>
    %745 = vector.extract_strided_slice %733 {offsets = [0, 192], sizes = [2, 64], strides = [1, 1]} : vector<2x256xf32> to vector<2x64xf32>
    %746 = math.tanh %745 : vector<2x64xf32>
    %747 = arith.mulf %743, %697 : vector<2x64xf32>
    %748 = arith.mulf %742, %746 : vector<2x64xf32>
    %749 = arith.addf %747, %748 : vector<2x64xf32>
    %750 = math.tanh %749 : vector<2x64xf32>
    %751 = arith.mulf %744, %750 : vector<2x64xf32>
    %752 = vector.broadcast %18 : vector<1x64xf32> to vector<2x64xf32>
    %753 = arith.mulf %751, %752 : vector<2x64xf32>
    %cst_181 = arith.constant dense<0.000000e+00> : vector<2xf32>
    %754 = vector.multi_reduction <add>, %753, %cst_181 [1] : vector<2x64xf32> to vector<2xf32>
    %755 = vector.shape_cast %754 : vector<2xf32> to vector<2x1xf32>
    %756 = vector.broadcast %19 : vector<1x1xf32> to vector<2x1xf32>
    %757 = arith.addf %755, %756 : vector<2x1xf32>
    %c20_182 = arith.constant 20 : index
    %c0_183 = arith.constant 0 : index
    %758 = vector.load %arg8[%c20_182, %c0_183] : memref<32x1xf32, #tpu.memory_space<vmem>>, vector<2x1xf32>
    tpu.vector_store %arg8[%c20_182, %c0_183], %757 {strides = array<i32>} : memref<32x1xf32, #tpu.memory_space<vmem>>, vector<2x1xf32>,
    %c22 = arith.constant 22 : index
    %c0_184 = arith.constant 0 : index
    %759 = vector.load %arg9[%c22, %c0_184] : memref<32x256xf32, #tpu.memory_space<vmem>>, vector<2x256xf32>
    %760 = arith.truncf %728 : vector<2x64xf32> to vector<2x64xbf16>
    %cst_185 = arith.constant dense<0.000000e+00> : vector<2x256xf32>
    %761 = tpu.matmul %760, %181, %cst_185 {dimension_numbers = #tpu.dot_dimension_numbers<[1], [0], [0], [1], [0, 0, 1, 1], [], []>} : vector<2x64xbf16>, vector<64x256xbf16>, vector<2x256xf32> -> vector<2x256xf32>
    %762 = arith.addf %759, %761 : vector<2x256xf32>
    %763 = vector.extract_strided_slice %762 {offsets = [0, 0], sizes = [2, 192], strides = [1, 1]} : vector<2x256xf32> to vector<2x192xf32>
    %cst_186 = arith.constant 5.000000e-01 : f32
    %764 = vector.broadcast %cst_186 : f32 to vector<2x192xf32>
    %765 = arith.mulf %764, %763 : vector<2x192xf32>
    %766 = math.tanh %765 : vector<2x192xf32>
    %cst_187 = arith.constant 5.000000e-01 : f32
    %767 = vector.broadcast %cst_187 : f32 to vector<2x192xf32>
    %768 = arith.mulf %767, %766 : vector<2x192xf32>
    %cst_188 = arith.constant 5.000000e-01 : f32
    %769 = vector.broadcast %cst_188 : f32 to vector<2x192xf32>
    %770 = arith.addf %768, %769 : vector<2x192xf32>
    %771 = vector.extract_strided_slice %770 {offsets = [0, 0], sizes = [2, 64], strides = [1, 1]} : vector<2x192xf32> to vector<2x64xf32>
    %772 = vector.extract_strided_slice %770 {offsets = [0, 64], sizes = [2, 64], strides = [1, 1]} : vector<2x192xf32> to vector<2x64xf32>
    %773 = vector.extract_strided_slice %770 {offsets = [0, 128], sizes = [2, 64], strides = [1, 1]} : vector<2x192xf32> to vector<2x64xf32>
    %774 = vector.extract_strided_slice %762 {offsets = [0, 192], sizes = [2, 64], strides = [1, 1]} : vector<2x256xf32> to vector<2x64xf32>
    %775 = math.tanh %774 : vector<2x64xf32>
    %776 = arith.mulf %772, %726 : vector<2x64xf32>
    %777 = arith.mulf %771, %775 : vector<2x64xf32>
    %778 = arith.addf %776, %777 : vector<2x64xf32>
    %779 = math.tanh %778 : vector<2x64xf32>
    %780 = arith.mulf %773, %779 : vector<2x64xf32>
    %781 = tpu.concatenate %780, %751 in 1 : vector<2x64xf32>, vector<2x64xf32> -> vector<2x128xf32>
    %782 = arith.truncf %781 : vector<2x128xf32> to vector<2x128xbf16>
    %cst_189 = arith.constant dense<0.000000e+00> : vector<2x256xf32>
    %783 = tpu.matmul %782, %182, %cst_189 {dimension_numbers = #tpu.dot_dimension_numbers<[1], [0], [0], [1], [0, 0, 1, 1], [], []>} : vector<2x128xbf16>, vector<128x256xbf16>, vector<2x256xf32> -> vector<2x256xf32>
    %784 = vector.broadcast %17 : vector<1x256xf32> to vector<2x256xf32>
    %785 = arith.addf %783, %784 : vector<2x256xf32>
    %786 = vector.extract_strided_slice %785 {offsets = [0, 0], sizes = [2, 192], strides = [1, 1]} : vector<2x256xf32> to vector<2x192xf32>
    %cst_190 = arith.constant 5.000000e-01 : f32
    %787 = vector.broadcast %cst_190 : f32 to vector<2x192xf32>
    %788 = arith.mulf %787, %786 : vector<2x192xf32>
    %789 = math.tanh %788 : vector<2x192xf32>
    %cst_191 = arith.constant 5.000000e-01 : f32
    %790 = vector.broadcast %cst_191 : f32 to vector<2x192xf32>
    %791 = arith.mulf %790, %789 : vector<2x192xf32>
    %cst_192 = arith.constant 5.000000e-01 : f32
    %792 = vector.broadcast %cst_192 : f32 to vector<2x192xf32>
    %793 = arith.addf %791, %792 : vector<2x192xf32>
    %794 = vector.extract_strided_slice %793 {offsets = [0, 0], sizes = [2, 64], strides = [1, 1]} : vector<2x192xf32> to vector<2x64xf32>
    %795 = vector.extract_strided_slice %793 {offsets = [0, 64], sizes = [2, 64], strides = [1, 1]} : vector<2x192xf32> to vector<2x64xf32>
    %796 = vector.extract_strided_slice %793 {offsets = [0, 128], sizes = [2, 64], strides = [1, 1]} : vector<2x192xf32> to vector<2x64xf32>
    %797 = vector.extract_strided_slice %785 {offsets = [0, 192], sizes = [2, 64], strides = [1, 1]} : vector<2x256xf32> to vector<2x64xf32>
    %798 = math.tanh %797 : vector<2x64xf32>
    %799 = arith.mulf %795, %749 : vector<2x64xf32>
    %800 = arith.mulf %794, %798 : vector<2x64xf32>
    %801 = arith.addf %799, %800 : vector<2x64xf32>
    %802 = math.tanh %801 : vector<2x64xf32>
    %803 = arith.mulf %796, %802 : vector<2x64xf32>
    %804 = vector.broadcast %18 : vector<1x64xf32> to vector<2x64xf32>
    %805 = arith.mulf %803, %804 : vector<2x64xf32>
    %cst_193 = arith.constant dense<0.000000e+00> : vector<2xf32>
    %806 = vector.multi_reduction <add>, %805, %cst_193 [1] : vector<2x64xf32> to vector<2xf32>
    %807 = vector.shape_cast %806 : vector<2xf32> to vector<2x1xf32>
    %808 = vector.broadcast %19 : vector<1x1xf32> to vector<2x1xf32>
    %809 = arith.addf %807, %808 : vector<2x1xf32>
    %c22_194 = arith.constant 22 : index
    %c0_195 = arith.constant 0 : index
    %810 = vector.load %arg8[%c22_194, %c0_195] : memref<32x1xf32, #tpu.memory_space<vmem>>, vector<2x1xf32>
    tpu.vector_store %arg8[%c22_194, %c0_195], %809 {strides = array<i32>} : memref<32x1xf32, #tpu.memory_space<vmem>>, vector<2x1xf32>,
    %c24 = arith.constant 24 : index
    %c0_196 = arith.constant 0 : index
    %811 = vector.load %arg9[%c24, %c0_196] : memref<32x256xf32, #tpu.memory_space<vmem>>, vector<2x256xf32>
    %812 = arith.truncf %780 : vector<2x64xf32> to vector<2x64xbf16>
    %cst_197 = arith.constant dense<0.000000e+00> : vector<2x256xf32>
    %813 = tpu.matmul %812, %181, %cst_197 {dimension_numbers = #tpu.dot_dimension_numbers<[1], [0], [0], [1], [0, 0, 1, 1], [], []>} : vector<2x64xbf16>, vector<64x256xbf16>, vector<2x256xf32> -> vector<2x256xf32>
    %814 = arith.addf %811, %813 : vector<2x256xf32>
    %815 = vector.extract_strided_slice %814 {offsets = [0, 0], sizes = [2, 192], strides = [1, 1]} : vector<2x256xf32> to vector<2x192xf32>
    %cst_198 = arith.constant 5.000000e-01 : f32
    %816 = vector.broadcast %cst_198 : f32 to vector<2x192xf32>
    %817 = arith.mulf %816, %815 : vector<2x192xf32>
    %818 = math.tanh %817 : vector<2x192xf32>
    %cst_199 = arith.constant 5.000000e-01 : f32
    %819 = vector.broadcast %cst_199 : f32 to vector<2x192xf32>
    %820 = arith.mulf %819, %818 : vector<2x192xf32>
    %cst_200 = arith.constant 5.000000e-01 : f32
    %821 = vector.broadcast %cst_200 : f32 to vector<2x192xf32>
    %822 = arith.addf %820, %821 : vector<2x192xf32>
    %823 = vector.extract_strided_slice %822 {offsets = [0, 0], sizes = [2, 64], strides = [1, 1]} : vector<2x192xf32> to vector<2x64xf32>
    %824 = vector.extract_strided_slice %822 {offsets = [0, 64], sizes = [2, 64], strides = [1, 1]} : vector<2x192xf32> to vector<2x64xf32>
    %825 = vector.extract_strided_slice %822 {offsets = [0, 128], sizes = [2, 64], strides = [1, 1]} : vector<2x192xf32> to vector<2x64xf32>
    %826 = vector.extract_strided_slice %814 {offsets = [0, 192], sizes = [2, 64], strides = [1, 1]} : vector<2x256xf32> to vector<2x64xf32>
    %827 = math.tanh %826 : vector<2x64xf32>
    %828 = arith.mulf %824, %778 : vector<2x64xf32>
    %829 = arith.mulf %823, %827 : vector<2x64xf32>
    %830 = arith.addf %828, %829 : vector<2x64xf32>
    %831 = math.tanh %830 : vector<2x64xf32>
    %832 = arith.mulf %825, %831 : vector<2x64xf32>
    %833 = tpu.concatenate %832, %803 in 1 : vector<2x64xf32>, vector<2x64xf32> -> vector<2x128xf32>
    %834 = arith.truncf %833 : vector<2x128xf32> to vector<2x128xbf16>
    %cst_201 = arith.constant dense<0.000000e+00> : vector<2x256xf32>
    %835 = tpu.matmul %834, %182, %cst_201 {dimension_numbers = #tpu.dot_dimension_numbers<[1], [0], [0], [1], [0, 0, 1, 1], [], []>} : vector<2x128xbf16>, vector<128x256xbf16>, vector<2x256xf32> -> vector<2x256xf32>
    %836 = vector.broadcast %17 : vector<1x256xf32> to vector<2x256xf32>
    %837 = arith.addf %835, %836 : vector<2x256xf32>
    %838 = vector.extract_strided_slice %837 {offsets = [0, 0], sizes = [2, 192], strides = [1, 1]} : vector<2x256xf32> to vector<2x192xf32>
    %cst_202 = arith.constant 5.000000e-01 : f32
    %839 = vector.broadcast %cst_202 : f32 to vector<2x192xf32>
    %840 = arith.mulf %839, %838 : vector<2x192xf32>
    %841 = math.tanh %840 : vector<2x192xf32>
    %cst_203 = arith.constant 5.000000e-01 : f32
    %842 = vector.broadcast %cst_203 : f32 to vector<2x192xf32>
    %843 = arith.mulf %842, %841 : vector<2x192xf32>
    %cst_204 = arith.constant 5.000000e-01 : f32
    %844 = vector.broadcast %cst_204 : f32 to vector<2x192xf32>
    %845 = arith.addf %843, %844 : vector<2x192xf32>
    %846 = vector.extract_strided_slice %845 {offsets = [0, 0], sizes = [2, 64], strides = [1, 1]} : vector<2x192xf32> to vector<2x64xf32>
    %847 = vector.extract_strided_slice %845 {offsets = [0, 64], sizes = [2, 64], strides = [1, 1]} : vector<2x192xf32> to vector<2x64xf32>
    %848 = vector.extract_strided_slice %845 {offsets = [0, 128], sizes = [2, 64], strides = [1, 1]} : vector<2x192xf32> to vector<2x64xf32>
    %849 = vector.extract_strided_slice %837 {offsets = [0, 192], sizes = [2, 64], strides = [1, 1]} : vector<2x256xf32> to vector<2x64xf32>
    %850 = math.tanh %849 : vector<2x64xf32>
    %851 = arith.mulf %847, %801 : vector<2x64xf32>
    %852 = arith.mulf %846, %850 : vector<2x64xf32>
    %853 = arith.addf %851, %852 : vector<2x64xf32>
    %854 = math.tanh %853 : vector<2x64xf32>
    %855 = arith.mulf %848, %854 : vector<2x64xf32>
    %856 = vector.broadcast %18 : vector<1x64xf32> to vector<2x64xf32>
    %857 = arith.mulf %855, %856 : vector<2x64xf32>
    %cst_205 = arith.constant dense<0.000000e+00> : vector<2xf32>
    %858 = vector.multi_reduction <add>, %857, %cst_205 [1] : vector<2x64xf32> to vector<2xf32>
    %859 = vector.shape_cast %858 : vector<2xf32> to vector<2x1xf32>
    %860 = vector.broadcast %19 : vector<1x1xf32> to vector<2x1xf32>
    %861 = arith.addf %859, %860 : vector<2x1xf32>
    %c24_206 = arith.constant 24 : index
    %c0_207 = arith.constant 0 : index
    %862 = vector.load %arg8[%c24_206, %c0_207] : memref<32x1xf32, #tpu.memory_space<vmem>>, vector<2x1xf32>
    tpu.vector_store %arg8[%c24_206, %c0_207], %861 {strides = array<i32>} : memref<32x1xf32, #tpu.memory_space<vmem>>, vector<2x1xf32>,
    %c26 = arith.constant 26 : index
    %c0_208 = arith.constant 0 : index
    %863 = vector.load %arg9[%c26, %c0_208] : memref<32x256xf32, #tpu.memory_space<vmem>>, vector<2x256xf32>
    %864 = arith.truncf %832 : vector<2x64xf32> to vector<2x64xbf16>
    %cst_209 = arith.constant dense<0.000000e+00> : vector<2x256xf32>
    %865 = tpu.matmul %864, %181, %cst_209 {dimension_numbers = #tpu.dot_dimension_numbers<[1], [0], [0], [1], [0, 0, 1, 1], [], []>} : vector<2x64xbf16>, vector<64x256xbf16>, vector<2x256xf32> -> vector<2x256xf32>
    %866 = arith.addf %863, %865 : vector<2x256xf32>
    %867 = vector.extract_strided_slice %866 {offsets = [0, 0], sizes = [2, 192], strides = [1, 1]} : vector<2x256xf32> to vector<2x192xf32>
    %cst_210 = arith.constant 5.000000e-01 : f32
    %868 = vector.broadcast %cst_210 : f32 to vector<2x192xf32>
    %869 = arith.mulf %868, %867 : vector<2x192xf32>
    %870 = math.tanh %869 : vector<2x192xf32>
    %cst_211 = arith.constant 5.000000e-01 : f32
    %871 = vector.broadcast %cst_211 : f32 to vector<2x192xf32>
    %872 = arith.mulf %871, %870 : vector<2x192xf32>
    %cst_212 = arith.constant 5.000000e-01 : f32
    %873 = vector.broadcast %cst_212 : f32 to vector<2x192xf32>
    %874 = arith.addf %872, %873 : vector<2x192xf32>
    %875 = vector.extract_strided_slice %874 {offsets = [0, 0], sizes = [2, 64], strides = [1, 1]} : vector<2x192xf32> to vector<2x64xf32>
    %876 = vector.extract_strided_slice %874 {offsets = [0, 64], sizes = [2, 64], strides = [1, 1]} : vector<2x192xf32> to vector<2x64xf32>
    %877 = vector.extract_strided_slice %874 {offsets = [0, 128], sizes = [2, 64], strides = [1, 1]} : vector<2x192xf32> to vector<2x64xf32>
    %878 = vector.extract_strided_slice %866 {offsets = [0, 192], sizes = [2, 64], strides = [1, 1]} : vector<2x256xf32> to vector<2x64xf32>
    %879 = math.tanh %878 : vector<2x64xf32>
    %880 = arith.mulf %876, %830 : vector<2x64xf32>
    %881 = arith.mulf %875, %879 : vector<2x64xf32>
    %882 = arith.addf %880, %881 : vector<2x64xf32>
    %883 = math.tanh %882 : vector<2x64xf32>
    %884 = arith.mulf %877, %883 : vector<2x64xf32>
    %885 = tpu.concatenate %884, %855 in 1 : vector<2x64xf32>, vector<2x64xf32> -> vector<2x128xf32>
    %886 = arith.truncf %885 : vector<2x128xf32> to vector<2x128xbf16>
    %cst_213 = arith.constant dense<0.000000e+00> : vector<2x256xf32>
    %887 = tpu.matmul %886, %182, %cst_213 {dimension_numbers = #tpu.dot_dimension_numbers<[1], [0], [0], [1], [0, 0, 1, 1], [], []>} : vector<2x128xbf16>, vector<128x256xbf16>, vector<2x256xf32> -> vector<2x256xf32>
    %888 = vector.broadcast %17 : vector<1x256xf32> to vector<2x256xf32>
    %889 = arith.addf %887, %888 : vector<2x256xf32>
    %890 = vector.extract_strided_slice %889 {offsets = [0, 0], sizes = [2, 192], strides = [1, 1]} : vector<2x256xf32> to vector<2x192xf32>
    %cst_214 = arith.constant 5.000000e-01 : f32
    %891 = vector.broadcast %cst_214 : f32 to vector<2x192xf32>
    %892 = arith.mulf %891, %890 : vector<2x192xf32>
    %893 = math.tanh %892 : vector<2x192xf32>
    %cst_215 = arith.constant 5.000000e-01 : f32
    %894 = vector.broadcast %cst_215 : f32 to vector<2x192xf32>
    %895 = arith.mulf %894, %893 : vector<2x192xf32>
    %cst_216 = arith.constant 5.000000e-01 : f32
    %896 = vector.broadcast %cst_216 : f32 to vector<2x192xf32>
    %897 = arith.addf %895, %896 : vector<2x192xf32>
    %898 = vector.extract_strided_slice %897 {offsets = [0, 0], sizes = [2, 64], strides = [1, 1]} : vector<2x192xf32> to vector<2x64xf32>
    %899 = vector.extract_strided_slice %897 {offsets = [0, 64], sizes = [2, 64], strides = [1, 1]} : vector<2x192xf32> to vector<2x64xf32>
    %900 = vector.extract_strided_slice %897 {offsets = [0, 128], sizes = [2, 64], strides = [1, 1]} : vector<2x192xf32> to vector<2x64xf32>
    %901 = vector.extract_strided_slice %889 {offsets = [0, 192], sizes = [2, 64], strides = [1, 1]} : vector<2x256xf32> to vector<2x64xf32>
    %902 = math.tanh %901 : vector<2x64xf32>
    %903 = arith.mulf %899, %853 : vector<2x64xf32>
    %904 = arith.mulf %898, %902 : vector<2x64xf32>
    %905 = arith.addf %903, %904 : vector<2x64xf32>
    %906 = math.tanh %905 : vector<2x64xf32>
    %907 = arith.mulf %900, %906 : vector<2x64xf32>
    %908 = vector.broadcast %18 : vector<1x64xf32> to vector<2x64xf32>
    %909 = arith.mulf %907, %908 : vector<2x64xf32>
    %cst_217 = arith.constant dense<0.000000e+00> : vector<2xf32>
    %910 = vector.multi_reduction <add>, %909, %cst_217 [1] : vector<2x64xf32> to vector<2xf32>
    %911 = vector.shape_cast %910 : vector<2xf32> to vector<2x1xf32>
    %912 = vector.broadcast %19 : vector<1x1xf32> to vector<2x1xf32>
    %913 = arith.addf %911, %912 : vector<2x1xf32>
    %c26_218 = arith.constant 26 : index
    %c0_219 = arith.constant 0 : index
    %914 = vector.load %arg8[%c26_218, %c0_219] : memref<32x1xf32, #tpu.memory_space<vmem>>, vector<2x1xf32>
    tpu.vector_store %arg8[%c26_218, %c0_219], %913 {strides = array<i32>} : memref<32x1xf32, #tpu.memory_space<vmem>>, vector<2x1xf32>,
    %c28 = arith.constant 28 : index
    %c0_220 = arith.constant 0 : index
    %915 = vector.load %arg9[%c28, %c0_220] : memref<32x256xf32, #tpu.memory_space<vmem>>, vector<2x256xf32>
    %916 = arith.truncf %884 : vector<2x64xf32> to vector<2x64xbf16>
    %cst_221 = arith.constant dense<0.000000e+00> : vector<2x256xf32>
    %917 = tpu.matmul %916, %181, %cst_221 {dimension_numbers = #tpu.dot_dimension_numbers<[1], [0], [0], [1], [0, 0, 1, 1], [], []>} : vector<2x64xbf16>, vector<64x256xbf16>, vector<2x256xf32> -> vector<2x256xf32>
    %918 = arith.addf %915, %917 : vector<2x256xf32>
    %919 = vector.extract_strided_slice %918 {offsets = [0, 0], sizes = [2, 192], strides = [1, 1]} : vector<2x256xf32> to vector<2x192xf32>
    %cst_222 = arith.constant 5.000000e-01 : f32
    %920 = vector.broadcast %cst_222 : f32 to vector<2x192xf32>
    %921 = arith.mulf %920, %919 : vector<2x192xf32>
    %922 = math.tanh %921 : vector<2x192xf32>
    %cst_223 = arith.constant 5.000000e-01 : f32
    %923 = vector.broadcast %cst_223 : f32 to vector<2x192xf32>
    %924 = arith.mulf %923, %922 : vector<2x192xf32>
    %cst_224 = arith.constant 5.000000e-01 : f32
    %925 = vector.broadcast %cst_224 : f32 to vector<2x192xf32>
    %926 = arith.addf %924, %925 : vector<2x192xf32>
    %927 = vector.extract_strided_slice %926 {offsets = [0, 0], sizes = [2, 64], strides = [1, 1]} : vector<2x192xf32> to vector<2x64xf32>
    %928 = vector.extract_strided_slice %926 {offsets = [0, 64], sizes = [2, 64], strides = [1, 1]} : vector<2x192xf32> to vector<2x64xf32>
    %929 = vector.extract_strided_slice %926 {offsets = [0, 128], sizes = [2, 64], strides = [1, 1]} : vector<2x192xf32> to vector<2x64xf32>
    %930 = vector.extract_strided_slice %918 {offsets = [0, 192], sizes = [2, 64], strides = [1, 1]} : vector<2x256xf32> to vector<2x64xf32>
    %931 = math.tanh %930 : vector<2x64xf32>
    %932 = arith.mulf %928, %882 : vector<2x64xf32>
    %933 = arith.mulf %927, %931 : vector<2x64xf32>
    %934 = arith.addf %932, %933 : vector<2x64xf32>
    %935 = math.tanh %934 : vector<2x64xf32>
    %936 = arith.mulf %929, %935 : vector<2x64xf32>
    %937 = tpu.concatenate %936, %907 in 1 : vector<2x64xf32>, vector<2x64xf32> -> vector<2x128xf32>
    %938 = arith.truncf %937 : vector<2x128xf32> to vector<2x128xbf16>
    %cst_225 = arith.constant dense<0.000000e+00> : vector<2x256xf32>
    %939 = tpu.matmul %938, %182, %cst_225 {dimension_numbers = #tpu.dot_dimension_numbers<[1], [0], [0], [1], [0, 0, 1, 1], [], []>} : vector<2x128xbf16>, vector<128x256xbf16>, vector<2x256xf32> -> vector<2x256xf32>
    %940 = vector.broadcast %17 : vector<1x256xf32> to vector<2x256xf32>
    %941 = arith.addf %939, %940 : vector<2x256xf32>
    %942 = vector.extract_strided_slice %941 {offsets = [0, 0], sizes = [2, 192], strides = [1, 1]} : vector<2x256xf32> to vector<2x192xf32>
    %cst_226 = arith.constant 5.000000e-01 : f32
    %943 = vector.broadcast %cst_226 : f32 to vector<2x192xf32>
    %944 = arith.mulf %943, %942 : vector<2x192xf32>
    %945 = math.tanh %944 : vector<2x192xf32>
    %cst_227 = arith.constant 5.000000e-01 : f32
    %946 = vector.broadcast %cst_227 : f32 to vector<2x192xf32>
    %947 = arith.mulf %946, %945 : vector<2x192xf32>
    %cst_228 = arith.constant 5.000000e-01 : f32
    %948 = vector.broadcast %cst_228 : f32 to vector<2x192xf32>
    %949 = arith.addf %947, %948 : vector<2x192xf32>
    %950 = vector.extract_strided_slice %949 {offsets = [0, 0], sizes = [2, 64], strides = [1, 1]} : vector<2x192xf32> to vector<2x64xf32>
    %951 = vector.extract_strided_slice %949 {offsets = [0, 64], sizes = [2, 64], strides = [1, 1]} : vector<2x192xf32> to vector<2x64xf32>
    %952 = vector.extract_strided_slice %949 {offsets = [0, 128], sizes = [2, 64], strides = [1, 1]} : vector<2x192xf32> to vector<2x64xf32>
    %953 = vector.extract_strided_slice %941 {offsets = [0, 192], sizes = [2, 64], strides = [1, 1]} : vector<2x256xf32> to vector<2x64xf32>
    %954 = math.tanh %953 : vector<2x64xf32>
    %955 = arith.mulf %951, %905 : vector<2x64xf32>
    %956 = arith.mulf %950, %954 : vector<2x64xf32>
    %957 = arith.addf %955, %956 : vector<2x64xf32>
    %958 = math.tanh %957 : vector<2x64xf32>
    %959 = arith.mulf %952, %958 : vector<2x64xf32>
    %960 = vector.broadcast %18 : vector<1x64xf32> to vector<2x64xf32>
    %961 = arith.mulf %959, %960 : vector<2x64xf32>
    %cst_229 = arith.constant dense<0.000000e+00> : vector<2xf32>
    %962 = vector.multi_reduction <add>, %961, %cst_229 [1] : vector<2x64xf32> to vector<2xf32>
    %963 = vector.shape_cast %962 : vector<2xf32> to vector<2x1xf32>
    %964 = vector.broadcast %19 : vector<1x1xf32> to vector<2x1xf32>
    %965 = arith.addf %963, %964 : vector<2x1xf32>
    %c28_230 = arith.constant 28 : index
    %c0_231 = arith.constant 0 : index
    %966 = vector.load %arg8[%c28_230, %c0_231] : memref<32x1xf32, #tpu.memory_space<vmem>>, vector<2x1xf32>
    tpu.vector_store %arg8[%c28_230, %c0_231], %965 {strides = array<i32>} : memref<32x1xf32, #tpu.memory_space<vmem>>, vector<2x1xf32>,
    %c30 = arith.constant 30 : index
    %c0_232 = arith.constant 0 : index
    %967 = vector.load %arg9[%c30, %c0_232] : memref<32x256xf32, #tpu.memory_space<vmem>>, vector<2x256xf32>
    %968 = arith.truncf %936 : vector<2x64xf32> to vector<2x64xbf16>
    %cst_233 = arith.constant dense<0.000000e+00> : vector<2x256xf32>
    %969 = tpu.matmul %968, %181, %cst_233 {dimension_numbers = #tpu.dot_dimension_numbers<[1], [0], [0], [1], [0, 0, 1, 1], [], []>} : vector<2x64xbf16>, vector<64x256xbf16>, vector<2x256xf32> -> vector<2x256xf32>
    %970 = arith.addf %967, %969 : vector<2x256xf32>
    %971 = vector.extract_strided_slice %970 {offsets = [0, 0], sizes = [2, 192], strides = [1, 1]} : vector<2x256xf32> to vector<2x192xf32>
    %cst_234 = arith.constant 5.000000e-01 : f32
    %972 = vector.broadcast %cst_234 : f32 to vector<2x192xf32>
    %973 = arith.mulf %972, %971 : vector<2x192xf32>
    %974 = math.tanh %973 : vector<2x192xf32>
    %cst_235 = arith.constant 5.000000e-01 : f32
    %975 = vector.broadcast %cst_235 : f32 to vector<2x192xf32>
    %976 = arith.mulf %975, %974 : vector<2x192xf32>
    %cst_236 = arith.constant 5.000000e-01 : f32
    %977 = vector.broadcast %cst_236 : f32 to vector<2x192xf32>
    %978 = arith.addf %976, %977 : vector<2x192xf32>
    %979 = vector.extract_strided_slice %978 {offsets = [0, 0], sizes = [2, 64], strides = [1, 1]} : vector<2x192xf32> to vector<2x64xf32>
    %980 = vector.extract_strided_slice %978 {offsets = [0, 64], sizes = [2, 64], strides = [1, 1]} : vector<2x192xf32> to vector<2x64xf32>
    %981 = vector.extract_strided_slice %978 {offsets = [0, 128], sizes = [2, 64], strides = [1, 1]} : vector<2x192xf32> to vector<2x64xf32>
    %982 = vector.extract_strided_slice %970 {offsets = [0, 192], sizes = [2, 64], strides = [1, 1]} : vector<2x256xf32> to vector<2x64xf32>
    %983 = math.tanh %982 : vector<2x64xf32>
    %984 = arith.mulf %980, %934 : vector<2x64xf32>
    %985 = arith.mulf %979, %983 : vector<2x64xf32>
    %986 = arith.addf %984, %985 : vector<2x64xf32>
    %987 = math.tanh %986 : vector<2x64xf32>
    %988 = arith.mulf %981, %987 : vector<2x64xf32>
    %989 = tpu.concatenate %988, %959 in 1 : vector<2x64xf32>, vector<2x64xf32> -> vector<2x128xf32>
    %990 = arith.truncf %989 : vector<2x128xf32> to vector<2x128xbf16>
    %cst_237 = arith.constant dense<0.000000e+00> : vector<2x256xf32>
    %991 = tpu.matmul %990, %182, %cst_237 {dimension_numbers = #tpu.dot_dimension_numbers<[1], [0], [0], [1], [0, 0, 1, 1], [], []>} : vector<2x128xbf16>, vector<128x256xbf16>, vector<2x256xf32> -> vector<2x256xf32>
    %992 = vector.broadcast %17 : vector<1x256xf32> to vector<2x256xf32>
    %993 = arith.addf %991, %992 : vector<2x256xf32>
    %994 = vector.extract_strided_slice %993 {offsets = [0, 0], sizes = [2, 192], strides = [1, 1]} : vector<2x256xf32> to vector<2x192xf32>
    %cst_238 = arith.constant 5.000000e-01 : f32
    %995 = vector.broadcast %cst_238 : f32 to vector<2x192xf32>
    %996 = arith.mulf %995, %994 : vector<2x192xf32>
    %997 = math.tanh %996 : vector<2x192xf32>
    %cst_239 = arith.constant 5.000000e-01 : f32
    %998 = vector.broadcast %cst_239 : f32 to vector<2x192xf32>
    %999 = arith.mulf %998, %997 : vector<2x192xf32>
    %cst_240 = arith.constant 5.000000e-01 : f32
    %1000 = vector.broadcast %cst_240 : f32 to vector<2x192xf32>
    %1001 = arith.addf %999, %1000 : vector<2x192xf32>
    %1002 = vector.extract_strided_slice %1001 {offsets = [0, 0], sizes = [2, 64], strides = [1, 1]} : vector<2x192xf32> to vector<2x64xf32>
    %1003 = vector.extract_strided_slice %1001 {offsets = [0, 64], sizes = [2, 64], strides = [1, 1]} : vector<2x192xf32> to vector<2x64xf32>
    %1004 = vector.extract_strided_slice %1001 {offsets = [0, 128], sizes = [2, 64], strides = [1, 1]} : vector<2x192xf32> to vector<2x64xf32>
    %1005 = vector.extract_strided_slice %993 {offsets = [0, 192], sizes = [2, 64], strides = [1, 1]} : vector<2x256xf32> to vector<2x64xf32>
    %1006 = math.tanh %1005 : vector<2x64xf32>
    %1007 = arith.mulf %1003, %957 : vector<2x64xf32>
    %1008 = arith.mulf %1002, %1006 : vector<2x64xf32>
    %1009 = arith.addf %1007, %1008 : vector<2x64xf32>
    %1010 = math.tanh %1009 : vector<2x64xf32>
    %1011 = arith.mulf %1004, %1010 : vector<2x64xf32>
    %1012 = vector.broadcast %18 : vector<1x64xf32> to vector<2x64xf32>
    %1013 = arith.mulf %1011, %1012 : vector<2x64xf32>
    %cst_241 = arith.constant dense<0.000000e+00> : vector<2xf32>
    %1014 = vector.multi_reduction <add>, %1013, %cst_241 [1] : vector<2x64xf32> to vector<2xf32>
    %1015 = vector.shape_cast %1014 : vector<2xf32> to vector<2x1xf32>
    %1016 = vector.broadcast %19 : vector<1x1xf32> to vector<2x1xf32>
    %1017 = arith.addf %1015, %1016 : vector<2x1xf32>
    %c30_242 = arith.constant 30 : index
    %c0_243 = arith.constant 0 : index
    %1018 = vector.load %arg8[%c30_242, %c0_243] : memref<32x1xf32, #tpu.memory_space<vmem>>, vector<2x1xf32>
    tpu.vector_store %arg8[%c30_242, %c0_243], %1017 {strides = array<i32>} : memref<32x1xf32, #tpu.memory_space<vmem>>, vector<2x1xf32>,
    return
  }
  func.func @transform_0(%arg0: i32) -> (i32, i32) {
    %c0_i32 = arith.constant 0 : i32
    %c0_i32_0 = arith.constant 0 : i32
    %c0_i32_1 = arith.constant 0 : i32
    return %c0_i32, %c0_i32_0 : i32, i32
  }
  func.func @transform_1(%arg0: i32) -> (i32, i32) {
    %c0_i32 = arith.constant 0 : i32
    %c0_i32_0 = arith.constant 0 : i32
    %c0_i32_1 = arith.constant 0 : i32
    return %c0_i32, %c0_i32_0 : i32, i32
  }
  func.func @transform_2(%arg0: i32) -> (i32, i32) {
    %c0_i32 = arith.constant 0 : i32
    %c0_i32_0 = arith.constant 0 : i32
    %c0_i32_1 = arith.constant 0 : i32
    return %c0_i32, %c0_i32_0 : i32, i32
  }
  func.func @transform_3(%arg0: i32) -> (i32, i32) {
    %c0_i32 = arith.constant 0 : i32
    %c0_i32_0 = arith.constant 0 : i32
    %c0_i32_1 = arith.constant 0 : i32
    return %c0_i32, %c0_i32_0 : i32, i32
  }
  func.func @transform_4(%arg0: i32) -> (i32, i32) {
    %c0_i32 = arith.constant 0 : i32
    %c0_i32_0 = arith.constant 0 : i32
    %c0_i32_1 = arith.constant 0 : i32
    return %c0_i32, %c0_i32_0 : i32, i32
  }
  func.func @transform_5(%arg0: i32) -> (i32, i32) {
    %c0_i32 = arith.constant 0 : i32
    %c0_i32_0 = arith.constant 0 : i32
    %c0_i32_1 = arith.constant 0 : i32
    return %c0_i32, %c0_i32_0 : i32, i32
  }
  func.func @transform_6(%arg0: i32) -> (i32, i32) {
    %c0_i32 = arith.constant 0 : i32
    %c0_i32_0 = arith.constant 0 : i32
    %c0_i32_1 = arith.constant 0 : i32
    return %c0_i32, %c0_i32_0 : i32, i32
  }
  func.func @transform_7(%arg0: i32) -> (i32, i32) {
    %c0_i32 = arith.constant 0 : i32
    %c0_i32_0 = arith.constant 0 : i32
    %c0_i32_1 = arith.constant 0 : i32
    return %c0_i32, %c0_i32_0 : i32, i32
  }
}

</mosaic_0001>

<llo_original>
// kernel: tpu_custom_call.1
$region0: #{tpu_custom_call.1}
  #allocation0 [shape = 'u32[]', space=smem, size = 0x4, offset = 0x4, fixed_abs, tag = 'smem constant byte address 0x4 - core index']
  #allocation1 [shape = 'u32[144,128]{1,0:T(1,128)}', space=vmem, size = 0x12000, scoped, tag = 'internal scratch']
  #allocation2 [shape = 'f32[32,256]{1,0:T(8,128)}', space=vmem, size = 0x8000, scoped, tag = 'scratch operand']
  %s0 = inlined_call_operand.vmem [shape: bf16[32,256], index: 0, kind: input, shape index: {}]
  %s1 = inlined_call_operand.vmem [shape: f32[32,3], index: 1, kind: input, shape index: {}]
  %s2 = inlined_call_operand.vmem [shape: bf16[256,160], index: 2, kind: input, shape index: {}]
  %s3 = inlined_call_operand.vmem [shape: bf16[64,192], index: 3, kind: input, shape index: {}]
  %s4 = inlined_call_operand.vmem [shape: bf16[256,256], index: 4, kind: input, shape index: {}]
  %s5 = inlined_call_operand.vmem [shape: f32[24,256], index: 5, kind: input, shape index: {}]
  %s6 = inlined_call_operand.vmem [shape: f32[32,32], index: 6, kind: input, shape index: {}]
  %s7 = inlined_call_operand.vmem [shape: f32[32,1], index: 7, kind: output, shape index: {}]
  %s8 = sld [smem:[#allocation0]]
  $region38: #{tpu_custom_call.1} parent=0
    _
  %s10 = ssub.s32 1, %s8
  %s11 = scalar_select 0, %s10, %s8
  // Predicated region
  $region2: #{tpu_custom_call.1} parent=0 // pred_check
    _
  $region3: #{tpu_custom_call.1} parent=0 // pred_check_branch
    %13 = sbr.rel (0) target = $region5
  $region4: #{tpu_custom_call.1} parent=0 // pred_region
    _
  $region5: #{tpu_custom_call.1} parent=0 // pred_fallthru
    _
  // Predicated region
  $region6: #{tpu_custom_call.1} parent=0 // pred_check
    _
  $region7: #{tpu_custom_call.1} parent=0 // pred_check_branch
    %15 = sbr.rel (0) target = $region9
  $region8: #{tpu_custom_call.1} parent=0 // pred_region
    _
  $region9: #{tpu_custom_call.1} parent=0 // pred_fallthru
    _
  // Predicated region
  $region10: #{tpu_custom_call.1} parent=0 // pred_check
    _
  $region11: #{tpu_custom_call.1} parent=0 // pred_check_branch
    %17 = sbr.rel (0) target = $region13
  $region12: #{tpu_custom_call.1} parent=0 // pred_region
    _
  $region13: #{tpu_custom_call.1} parent=0 // pred_fallthru
    _
  // Predicated region
  $region14: #{tpu_custom_call.1} parent=0 // pred_check
    _
  $region15: #{tpu_custom_call.1} parent=0 // pred_check_branch
    %19 = sbr.rel (0) target = $region17
  $region16: #{tpu_custom_call.1} parent=0 // pred_region
    _
  $region17: #{tpu_custom_call.1} parent=0 // pred_fallthru
    _
  // Predicated region
  $region18: #{tpu_custom_call.1} parent=0 // pred_check
    _
  $region19: #{tpu_custom_call.1} parent=0 // pred_check_branch
    %21 = sbr.rel (0) target = $region21
  $region20: #{tpu_custom_call.1} parent=0 // pred_region
    _
  $region21: #{tpu_custom_call.1} parent=0 // pred_fallthru
    _
  // Predicated region
  $region22: #{tpu_custom_call.1} parent=0 // pred_check
    _
  $region23: #{tpu_custom_call.1} parent=0 // pred_check_branch
    %23 = sbr.rel (0) target = $region25
  $region24: #{tpu_custom_call.1} parent=0 // pred_region
    _
  $region25: #{tpu_custom_call.1} parent=0 // pred_fallthru
    _
  // Predicated region
  $region26: #{tpu_custom_call.1} parent=0 // pred_check
    _
  $region27: #{tpu_custom_call.1} parent=0 // pred_check_branch
    %25 = sbr.rel (0) target = $region29
  $region28: #{tpu_custom_call.1} parent=0 // pred_region
    _
  $region29: #{tpu_custom_call.1} parent=0 // pred_fallthru
    _
  %v27 = vld [vmem:[%s5] sm:$0xff]
  %v28 = vld [vmem:[%s5 + $0x10] sm:$0xff]
  %v29 = vld [vmem:[%s5 + $0x18] sm:$0xff]
  %v30 = vld [vmem:[%s5 + $0x20] sm:$0xff]
  %v31 = vld [vmem:[%s5 + $0x28] sm:$0xff]
  %v32 = vld [vmem:[%s0] sm:$0xff]
  %v33 = vld [vmem:[%s0 + $0x8] sm:$0xff]
  %v34 = vld [vmem:[%s0 + $0x10] sm:$0xff]
  %v35 = vld [vmem:[%s0 + $0x18] sm:$0xff]
  %v36 = vld [vmem:[%s2] sm:$0xff]
  %v37 = vld [vmem:[%s2 + $0x8] sm:$0xff]
  %v38 = vld [vmem:[%s2 + $0x10] sm:$0xff]
  %v39 = vld [vmem:[%s2 + $0x18] sm:$0xff]
  %v40 = vld [vmem:[%s2 + $0x20] sm:$0xff]
  %v41 = vld [vmem:[%s2 + $0x28] sm:$0xff]
  %v42 = vld [vmem:[%s2 + $0x30] sm:$0xff]
  %v43 = vld [vmem:[%s2 + $0x38] sm:$0xff]
  %v44 = vld [vmem:[%s2 + $0x40] sm:$0xff]
  %v45 = vld [vmem:[%s2 + $0x48] sm:$0xff]
  %v46 = vld [vmem:[%s2 + $0x50] sm:$0xff]
  %v47 = vld [vmem:[%s2 + $0x58] sm:$0xff]
  %v48 = vld [vmem:[%s2 + $0x60] sm:$0xff]
  %v49 = vld [vmem:[%s2 + $0x68] sm:$0xff]
  %v50 = vld [vmem:[%s2 + $0x70] sm:$0xff]
  %v51 = vld [vmem:[%s2 + $0x78] sm:$0xff]
  %v52 = vld [vmem:[%s2 + $0x80] sm:$0xff]
  %v53 = vld [vmem:[%s2 + $0x88] sm:$0xff]
  %v54 = vld [vmem:[%s2 + $0x90] sm:$0xff]
  %v55 = vld [vmem:[%s2 + $0x98] sm:$0xff]
  %v56 = vld [vmem:[%s2 + $0xa0] sm:$0xff]
  %v57 = vld [vmem:[%s2 + $0xa8] sm:$0xff]
  %v58 = vld [vmem:[%s2 + $0xb0] sm:$0xff]
  %v59 = vld [vmem:[%s2 + $0xb8] sm:$0xff]
  %v60 = vld [vmem:[%s2 + $0xc0] sm:$0xff]
  %v61 = vld [vmem:[%s2 + $0xc8] sm:$0xff]
  %v62 = vld [vmem:[%s2 + $0xd0] sm:$0xff]
  %v63 = vld [vmem:[%s2 + $0xd8] sm:$0xff]
  %v64 = vld [vmem:[%s2 + $0xe0] sm:$0xff]
  %v65 = vld [vmem:[%s2 + $0xe8] sm:$0xff]
  %v66 = vld [vmem:[%s2 + $0xf0] sm:$0xff]
  %v67 = vld [vmem:[%s2 + $0xf8] sm:$0xff]
  %v72 = vunpack.c.l.b16 %v32
  %v73 = vunpack.c.h.b16 %v32
  %v74 = vunpack.c.l.b16 %v33
  %v75 = vunpack.c.h.b16 %v33
  %v76 = vunpack.c.l.b16 %v34
  %v77 = vunpack.c.h.b16 %v34
  %v78 = vunpack.c.l.b16 %v35
  %v79 = vunpack.c.h.b16 %v35
  %v80 = vpack.c.b16 %v74, %v72
  %v81 = vpack.c.b16 %v75, %v73
  %v82 = vpack.c.b16 %v78, %v76
  %v83 = vpack.c.b16 %v79, %v77
  %v120 = vunpack.c.l.b16 %v36
  %v121 = vunpack.c.h.b16 %v36
  %v122 = vunpack.c.l.b16 %v37
  %v123 = vunpack.c.h.b16 %v37
  %v124 = vunpack.c.l.b16 %v38
  %v125 = vunpack.c.h.b16 %v38
  %v126 = vunpack.c.l.b16 %v39
  %v127 = vunpack.c.h.b16 %v39
  %v128 = vunpack.c.l.b16 %v40
  %v129 = vunpack.c.h.b16 %v40
  %v130 = vunpack.c.l.b16 %v41
  %v131 = vunpack.c.h.b16 %v41
  %v132 = vunpack.c.l.b16 %v42
  %v133 = vunpack.c.h.b16 %v42
  %v134 = vunpack.c.l.b16 %v43
  %v135 = vunpack.c.h.b16 %v43
  %v136 = vunpack.c.l.b16 %v44
  %v137 = vunpack.c.h.b16 %v44
  %v138 = vunpack.c.l.b16 %v45
  %v139 = vunpack.c.h.b16 %v45
  %v140 = vunpack.c.l.b16 %v46
  %v141 = vunpack.c.h.b16 %v46
  %v142 = vunpack.c.l.b16 %v47
  %v143 = vunpack.c.h.b16 %v47
  %v144 = vunpack.c.l.b16 %v48
  %v145 = vunpack.c.h.b16 %v48
  %v146 = vunpack.c.l.b16 %v49
  %v147 = vunpack.c.h.b16 %v49
  %v148 = vunpack.c.l.b16 %v50
  %v149 = vunpack.c.h.b16 %v50
  %v150 = vunpack.c.l.b16 %v51
  %v151 = vunpack.c.h.b16 %v51
  %v152 = vunpack.c.l.b16 %v52
  %v153 = vunpack.c.h.b16 %v52
  %v154 = vunpack.c.l.b16 %v53
  %v155 = vunpack.c.h.b16 %v53
  %v156 = vunpack.c.l.b16 %v54
  %v157 = vunpack.c.h.b16 %v54
  %v158 = vunpack.c.l.b16 %v55
  %v159 = vunpack.c.h.b16 %v55
  %v160 = vunpack.c.l.b16 %v56
  %v161 = vunpack.c.h.b16 %v56
  %v162 = vunpack.c.l.b16 %v57
  %v163 = vunpack.c.h.b16 %v57
  %v164 = vunpack.c.l.b16 %v58
  %v165 = vunpack.c.h.b16 %v58
  %v166 = vunpack.c.l.b16 %v59
  %v167 = vunpack.c.h.b16 %v59
  %v168 = vunpack.c.l.b16 %v60
  %v169 = vunpack.c.h.b16 %v60
  %v170 = vunpack.c.l.b16 %v61
  %v171 = vunpack.c.h.b16 %v61
  %v172 = vunpack.c.l.b16 %v62
  %v173 = vunpack.c.h.b16 %v62
  %v174 = vunpack.c.l.b16 %v63
  %v175 = vunpack.c.h.b16 %v63
  %v176 = vunpack.c.l.b16 %v64
  %v177 = vunpack.c.h.b16 %v64
  %v178 = vunpack.c.l.b16 %v65
  %v179 = vunpack.c.h.b16 %v65
  %v180 = vunpack.c.l.b16 %v66
  %v181 = vunpack.c.h.b16 %v66
  %v182 = vunpack.c.l.b16 %v67
  %v183 = vunpack.c.h.b16 %v67
  %v184 = vpack.c.b16 %v122, %v120
  %v185 = vpack.c.b16 %v123, %v121
  %v186 = vpack.c.b16 %v126, %v124
  %v187 = vpack.c.b16 %v127, %v125
  %v188 = vpack.c.b16 %v130, %v128
  %v189 = vpack.c.b16 %v131, %v129
  %v190 = vpack.c.b16 %v134, %v132
  %v191 = vpack.c.b16 %v135, %v133
  %v192 = vpack.c.b16 %v138, %v136
  %v193 = vpack.c.b16 %v139, %v137
  %v194 = vpack.c.b16 %v142, %v140
  %v195 = vpack.c.b16 %v143, %v141
  %v196 = vpack.c.b16 %v146, %v144
  %v197 = vpack.c.b16 %v147, %v145
  %v198 = vpack.c.b16 %v150, %v148
  %v199 = vpack.c.b16 %v151, %v149
  %v200 = vpack.c.b16 %v154, %v152
  %v201 = vpack.c.b16 %v155, %v153
  %v202 = vpack.c.b16 %v158, %v156
  %v203 = vpack.c.b16 %v159, %v157
  %v204 = vpack.c.b16 %v162, %v160
  %v205 = vpack.c.b16 %v163, %v161
  %v206 = vpack.c.b16 %v166, %v164
  %v207 = vpack.c.b16 %v167, %v165
  %v208 = vpack.c.b16 %v170, %v168
  %v209 = vpack.c.b16 %v171, %v169
  %v210 = vpack.c.b16 %v174, %v172
  %v211 = vpack.c.b16 %v175, %v173
  %v212 = vpack.c.b16 %v178, %v176
  %v213 = vpack.c.b16 %v179, %v177
  %v214 = vpack.c.b16 %v182, %v180
  %v215 = vpack.c.b16 %v183, %v181
  %248 = vmatprep.subr.bf16.mxu0 %v199
  %249 = vmatpush1.bf16.msra.mxu0 %v198
  %250 = vmatprep.subr.bf16.mxu0 %v197
  %251 = vmatpush1.bf16.msra.mxu0 %v196
  %252 = vmatprep.subr.bf16.mxu0 %v195
  %253 = vmatpush1.bf16.msra.mxu0 %v194
  %254 = vmatprep.subr.bf16.mxu0 %v193
  %255 = vmatpush1.bf16.msra.mxu0 %v192
  %256 = vmatprep.subr.bf16.mxu0 %v191
  %257 = vmatpush1.bf16.msra.mxu0 %v190
  %258 = vmatprep.subr.bf16.mxu0 %v189
  %259 = vmatpush1.bf16.msra.mxu0 %v188
  %260 = vmatprep.subr.bf16.mxu0 %v187
  %261 = vmatpush1.bf16.msra.mxu0 %v186
  %262 = vmatprep.subr.bf16.mxu0 %v185
  %263 = vmatpush1.bf16.msra.mxu0 %v184
  %264 = vmatprep.subr.bf16.mxu0 %v215
  %265 = vmatpush2.bf16.msra.mxu0 %v214
  %266 = vmatprep.subr.bf16.mxu0 %v213
  %267 = vmatpush2.bf16.msra.mxu0 %v212
  %268 = vmatprep.subr.bf16.mxu0 %v211
  %269 = vmatpush2.bf16.msra.mxu0 %v210
  %270 = vmatprep.subr.bf16.mxu0 %v209
  %271 = vmatpush2.bf16.msra.mxu0 %v208
  %272 = vmatprep.subr.bf16.mxu0 %v207
  %273 = vmatpush2.bf16.msra.mxu0 %v206
  %274 = vmatprep.subr.bf16.mxu0 %v205
  %275 = vmatpush2.bf16.msra.mxu0 %v204
  %276 = vmatprep.subr.bf16.mxu0 %v203
  %277 = vmatpush2.bf16.msra.mxu0 %v202
  %278 = vmatprep.subr.bf16.mxu0 %v201
  %279 = vmatpush2.bf16.msra.mxu0 %v200
  %280 = vmatprep.mubr.bf16.mxu0 %v81
  %281 = vmatmul.mubr.bf16.gmra.mxu0 %v80
  %v282 = vpop.f32.mrf.mxu0
  %v283 = vadd.f32 0.0, %v282
  %v284 = vpop.f32.mrf.mxu0
  %v285 = vadd.f32 0.0, %v284
  %v286 = vpop.f32.mrf.mxu0
  %v287 = vadd.f32 0.0, %v286
  %v288 = vpop.f32.mrf.mxu0
  %v289 = vadd.f32 0.0, %v288
  %290 = vmatprep.mubr.bf16.mxu0 %v83
  %291 = vmatmul.mubr.bf16.gmra.mxu0 %v82
  %v292 = vpop.f32.mrf.mxu0
  %v293 = vadd.f32 0.0, %v292
  %v294 = vpop.f32.mrf.mxu0
  %v295 = vadd.f32 0.0, %v294
  %v296 = vpop.f32.mrf.mxu0
  %v297 = vadd.f32 0.0, %v296
  %v298 = vpop.f32.mrf.mxu0
  %v299 = vadd.f32 0.0, %v298
  %300 = vdwg.mxu0
  %v301 = vlaneseq
  %v302 = vshrl.u32 %v301, 7
  %v303 = vsub.s32 3, %v302
  %v304 = vrot.slane %v28, %v303
  %v305 = vadd.f32 %v283, %v304
  %v306 = vadd.f32 %v287, %v304
  %v307 = vadd.f32 %v293, %v304
  %v308 = vadd.f32 %v297, %v304
  %v309 = vlaneseq
  %v310 = vshrl.u32 %v309, 7
  %v311 = vsub.s32 0, %v310
  %v312 = vrot.slane %v27, %v311
  %v313 = vadd.f32 %v285, %v312
  %v314 = vadd.f32 %v289, %v312
  %v315 = vadd.f32 %v295, %v312
  %v316 = vadd.f32 %v299, %v312
  %vm317 = vcmask 261120
  %v318 = vsel %vm317, %v313, 0.0
  %319 = vadd.xlane.f32.xlu0 %v318
  %v320 = vpop.xlane.xlu0 %319
  %v321 = vsel %vm317, %v314, 0.0
  %322 = vadd.xlane.f32.xlu0 %v321
  %v323 = vpop.xlane.xlu0 %322
  %v324 = vsel %vm317, %v315, 0.0
  %325 = vadd.xlane.f32.xlu0 %v324
  %v326 = vpop.xlane.xlu0 %325
  %v327 = vsel %vm317, %v316, 0.0
  %328 = vadd.xlane.f32.xlu0 %v327
  %v329 = vpop.xlane.xlu0 %328
  %v330 = vrcp.pop 32.0
  %v331 = vmul.f32 %v320, %v330
  %v332 = vmul.f32 %v323, %v330
  %v333 = vmul.f32 %v326, %v330
  %v334 = vmul.f32 %v329, %v330
  %v335 = vsub.f32 %v313, %v331
  %v336 = vsub.f32 %v314, %v332
  %v337 = vsub.f32 %v315, %v333
  %v338 = vsub.f32 %v316, %v334
  %v339 = vmul.f32 %v335, %v335
  %v340 = vmul.f32 %v336, %v336
  %v341 = vmul.f32 %v337, %v337
  %v342 = vmul.f32 %v338, %v338
  %v343 = vsel %vm317, %v339, 0.0
  %344 = vadd.xlane.f32.xlu0 %v343
  %v345 = vpop.xlane.xlu0 %344
  %v346 = vsel %vm317, %v340, 0.0
  %347 = vadd.xlane.f32.xlu0 %v346
  %v348 = vpop.xlane.xlu0 %347
  %v349 = vsel %vm317, %v341, 0.0
  %350 = vadd.xlane.f32.xlu0 %v349
  %v351 = vpop.xlane.xlu0 %350
  %v352 = vsel %vm317, %v342, 0.0
  %353 = vadd.xlane.f32.xlu0 %v352
  %v354 = vpop.xlane.xlu0 %353
  %v355 = vmul.f32 %v345, %v330
  %v356 = vmul.f32 %v348, %v330
  %v357 = vmul.f32 %v351, %v330
  %v358 = vmul.f32 %v354, %v330
  %v359 = vadd.f32 %v355, 1e-06
  %v360 = vadd.f32 %v356, 1e-06
  %v361 = vadd.f32 %v357, 1e-06
  %v362 = vadd.f32 %v358, 1e-06
  %v363 = vrsqrt.pop %v359
  %v364 = vrsqrt.pop %v360
  %v365 = vrsqrt.pop %v361
  %v366 = vrsqrt.pop %v362
  %v367 = vmul.f32 %v335, %v363
  %v368 = vmul.f32 %v336, %v364
  %v369 = vmul.f32 %v337, %v365
  %v370 = vmul.f32 %v338, %v366
  %v371 = vlaneseq
  %v372 = vshrl.u32 %v371, 7
  %v373 = vsub.s32 1, %v372
  %v374 = vrot.slane %v27, %v373
  %v375 = vmul.f32 %v367, %v374
  %v376 = vmul.f32 %v368, %v374
  %v377 = vmul.f32 %v369, %v374
  %v378 = vmul.f32 %v370, %v374
  %v379 = vlaneseq
  %v380 = vshrl.u32 %v379, 7
  %v381 = vsub.s32 2, %v380
  %v382 = vrot.slane %v27, %v381
  %v383 = vadd.f32 %v375, %v382
  %v384 = vadd.f32 %v376, %v382
  %v385 = vadd.f32 %v377, %v382
  %v386 = vadd.f32 %v378, %v382
  %v387 = vld [vmem:[%s1] sm:$0xff]
  %v388 = vld [vmem:[%s1 + $0x8] sm:$0xff]
  %v389 = vld [vmem:[%s1 + $0x10] sm:$0xff]
  %v390 = vld [vmem:[%s1 + $0x18] sm:$0xff]
  %392 = vset.pattern.permute.xlu0 0
  %393 = vperm.xlu0 %392, %v387
  %v394 = vpop.permute.xlu0 %393
  %397 = vset.pattern.permute.xlu0 0
  %398 = vperm.xlu0 %397, %v388
  %v399 = vpop.permute.xlu0 %398
  %402 = vset.pattern.permute.xlu0 0
  %403 = vperm.xlu0 %402, %v389
  %v404 = vpop.permute.xlu0 %403
  %407 = vset.pattern.permute.xlu0 0
  %408 = vperm.xlu0 %407, %v390
  %v409 = vpop.permute.xlu0 %408
  %v411 = vlaneseq
  %v412 = vshrl.u32 %v411, 7
  %v413 = vsub.s32 3, %v412
  %v414 = vrot.slane %v27, %v413
  %v415 = vmul.f32 %v394, %v414
  %v416 = vmul.f32 %v399, %v414
  %v417 = vmul.f32 %v404, %v414
  %v418 = vmul.f32 %v409, %v414
  %419 = vset.pattern.permute.xlu0 1
  %420 = vperm.xlu0 %419, %v387
  %v421 = vpop.permute.xlu0 %420
  %423 = vset.pattern.permute.xlu0 1
  %424 = vperm.xlu0 %423, %v388
  %v425 = vpop.permute.xlu0 %424
  %427 = vset.pattern.permute.xlu0 1
  %428 = vperm.xlu0 %427, %v389
  %v429 = vpop.permute.xlu0 %428
  %431 = vset.pattern.permute.xlu0 1
  %432 = vperm.xlu0 %431, %v390
  %v433 = vpop.permute.xlu0 %432
  %v435 = vlaneseq
  %v436 = vshrl.u32 %v435, 7
  %v437 = vsub.s32 4, %v436
  %v438 = vrot.slane %v27, %v437
  %v439 = vmul.f32 %v421, %v438
  %v440 = vmul.f32 %v425, %v438
  %v441 = vmul.f32 %v429, %v438
  %v442 = vmul.f32 %v433, %v438
  %v443 = vadd.f32 %v415, %v439
  %v444 = vadd.f32 %v416, %v440
  %v445 = vadd.f32 %v417, %v441
  %v446 = vadd.f32 %v418, %v442
  %447 = vset.pattern.permute.xlu0 2
  %448 = vperm.xlu0 %447, %v387
  %v449 = vpop.permute.xlu0 %448
  %451 = vset.pattern.permute.xlu0 2
  %452 = vperm.xlu0 %451, %v388
  %v453 = vpop.permute.xlu0 %452
  %455 = vset.pattern.permute.xlu0 2
  %456 = vperm.xlu0 %455, %v389
  %v457 = vpop.permute.xlu0 %456
  %459 = vset.pattern.permute.xlu0 2
  %460 = vperm.xlu0 %459, %v390
  %v461 = vpop.permute.xlu0 %460
  %v463 = vlaneseq
  %v464 = vshrl.u32 %v463, 7
  %v465 = vsub.s32 5, %v464
  %v466 = vrot.slane %v27, %v465
  %v467 = vmul.f32 %v449, %v466
  %v468 = vmul.f32 %v453, %v466
  %v469 = vmul.f32 %v457, %v466
  %v470 = vmul.f32 %v461, %v466
  %v471 = vadd.f32 %v443, %v467
  %v472 = vadd.f32 %v444, %v468
  %v473 = vadd.f32 %v445, %v469
  %v474 = vadd.f32 %v446, %v470
  %v475 = vlaneseq
  %v476 = vshrl.u32 %v475, 7
  %v477 = vsub.s32 6, %v476
  %v478 = vrot.slane %v27, %v477
  %v479 = vadd.f32 %v471, %v478
  %v480 = vadd.f32 %v472, %v478
  %v481 = vadd.f32 %v473, %v478
  %v482 = vadd.f32 %v474, %v478
  %v483 = vsel %vm317, %v479, 0.0
  %484 = vadd.xlane.f32.xlu0 %v483
  %v485 = vpop.xlane.xlu0 %484
  %v486 = vsel %vm317, %v480, 0.0
  %487 = vadd.xlane.f32.xlu0 %v486
  %v488 = vpop.xlane.xlu0 %487
  %v489 = vsel %vm317, %v481, 0.0
  %490 = vadd.xlane.f32.xlu0 %v489
  %v491 = vpop.xlane.xlu0 %490
  %v492 = vsel %vm317, %v482, 0.0
  %493 = vadd.xlane.f32.xlu0 %v492
  %v494 = vpop.xlane.xlu0 %493
  %v495 = vmul.f32 %v485, %v330
  %v496 = vmul.f32 %v488, %v330
  %v497 = vmul.f32 %v491, %v330
  %v498 = vmul.f32 %v494, %v330
  %v499 = vsub.f32 %v479, %v495
  %v500 = vsub.f32 %v480, %v496
  %v501 = vsub.f32 %v481, %v497
  %v502 = vsub.f32 %v482, %v498
  %v503 = vmul.f32 %v499, %v499
  %v504 = vmul.f32 %v500, %v500
  %v505 = vmul.f32 %v501, %v501
  %v506 = vmul.f32 %v502, %v502
  %v507 = vsel %vm317, %v503, 0.0
  %508 = vadd.xlane.f32.xlu0 %v507
  %v509 = vpop.xlane.xlu0 %508
  %v510 = vsel %vm317, %v504, 0.0
  %511 = vadd.xlane.f32.xlu0 %v510
  %v512 = vpop.xlane.xlu0 %511
  %v513 = vsel %vm317, %v505, 0.0
  %514 = vadd.xlane.f32.xlu0 %v513
  %v515 = vpop.xlane.xlu0 %514
  %v516 = vsel %vm317, %v506, 0.0
  %517 = vadd.xlane.f32.xlu0 %v516
  %v518 = vpop.xlane.xlu0 %517
  %v519 = vmul.f32 %v509, %v330
  %v520 = vmul.f32 %v512, %v330
  %v521 = vmul.f32 %v515, %v330
  %v522 = vmul.f32 %v518, %v330
  %v523 = vadd.f32 %v519, 1e-06
  %v524 = vadd.f32 %v520, 1e-06
  %v525 = vadd.f32 %v521, 1e-06
  %v526 = vadd.f32 %v522, 1e-06
  %v527 = vrsqrt.pop %v523
  %v528 = vrsqrt.pop %v524
  %v529 = vrsqrt.pop %v525
  %v530 = vrsqrt.pop %v526
  %v531 = vmul.f32 %v499, %v527
  %v532 = vmul.f32 %v500, %v528
  %v533 = vmul.f32 %v501, %v529
  %v534 = vmul.f32 %v502, %v530
  %v535 = vlaneseq
  %v536 = vshrl.u32 %v535, 7
  %v537 = vsub.s32 7, %v536
  %v538 = vrot.slane %v27, %v537
  %v539 = vmul.f32 %v531, %v538
  %v540 = vmul.f32 %v532, %v538
  %v541 = vmul.f32 %v533, %v538
  %v542 = vmul.f32 %v534, %v538
  %v543 = vlaneseq
  %v544 = vshrl.u32 %v543, 7
  %v545 = vsub.s32 0, %v544
  %v546 = vrot.slane %v28, %v545
  %v547 = vadd.f32 %v539, %v546
  %v548 = vadd.f32 %v540, %v546
  %v549 = vadd.f32 %v541, %v546
  %v550 = vadd.f32 %v542, %v546
  %v551 = vpack.c.bf16 %v384, %v383
  %v552 = vpack.c.bf16 %v386, %v385
  %v553 = vld [vmem:[%s3] sm:$0xf]
  %v554 = vld [vmem:[%s3 + $0x8] sm:$0xf]
  %v555 = vld [vmem:[%s3 + $0x10] sm:$0xf]
  %v556 = vld [vmem:[%s3 + $0x18] sm:$0xf]
  %v557 = vpack.c.bf16 %v548, %v547
  %v558 = vpack.c.bf16 %v550, %v549
  %v559 = vld [vmem:[%s3 + $0x20] sm:$0xf]
  %v560 = vld [vmem:[%s3 + $0x28] sm:$0xf]
  %v561 = vld [vmem:[%s3 + $0x30] sm:$0xf]
  %v562 = vld [vmem:[%s3 + $0x38] sm:$0xf]
  %v567 = vunpack.c.l.b16 %v559
  %v568 = vunpack.c.l.b16 %v560
  %v569 = vunpack.c.l.b16 %v561
  %v570 = vunpack.c.l.b16 %v562
  %v571 = vpack.c.b16 %v568, %v567
  %v572 = vpack.c.b16 %v570, %v569
  %v576 = vsel %vm317, %v557, 0
  %v579 = vsel %vm317, %v558, 0
  %581 = vmatprep.subr.bf16.mxu0 0
  %582 = vmatpush1.bf16.msra.mxu0 0
  %583 = vmatprep.subr.bf16.mxu0 0
  %584 = vmatpush1.bf16.msra.mxu0 0
  %585 = vmatprep.subr.bf16.mxu0 0
  %586 = vmatpush1.bf16.msra.mxu0 0
  %587 = vmatprep.subr.bf16.mxu0 0
  %588 = vmatpush1.bf16.msra.mxu0 0
  %589 = vmatprep.subr.bf16.mxu0 0
  %590 = vmatpush1.bf16.msra.mxu0 0
  %591 = vmatprep.subr.bf16.mxu0 0
  %592 = vmatpush1.bf16.msra.mxu0 0
  %593 = vmatprep.subr.bf16.mxu0 0
  %594 = vmatpush1.bf16.msra.mxu0 %v572
  %595 = vmatprep.subr.bf16.mxu0 0
  %596 = vmatpush1.bf16.msra.mxu0 %v571
  %597 = vmatprep.subr.bf16.mxu0 0
  %598 = vmatpush2.bf16.msra.mxu0 0
  %599 = vmatprep.subr.bf16.mxu0 0
  %600 = vmatpush2.bf16.msra.mxu0 0
  %601 = vmatprep.subr.bf16.mxu0 0
  %602 = vmatpush2.bf16.msra.mxu0 0
  %603 = vmatprep.subr.bf16.mxu0 0
  %604 = vmatpush2.bf16.msra.mxu0 0
  %605 = vmatprep.subr.bf16.mxu0 0
  %606 = vmatpush2.bf16.msra.mxu0 0
  %607 = vmatprep.subr.bf16.mxu0 0
  %608 = vmatpush2.bf16.msra.mxu0 0
  %609 = vmatprep.subr.bf16.mxu0 0
  %610 = vmatpush2.bf16.msra.mxu0 0
  %611 = vmatprep.subr.bf16.mxu0 0
  %612 = vmatpush2.bf16.msra.mxu0 0
  %613 = vmatprep.mubr.bf16.mxu0 0
  %614 = vmatmul.mubr.bf16.gmra.mxu0 %v576
  %v615 = vpop.f32.mrf.mxu0
  %v616 = vadd.f32 0.0, %v615
  %v617 = vpop.f32.mrf.mxu0
  %v618 = vpop.f32.mrf.mxu0
  %v619 = vadd.f32 0.0, %v618
  %v620 = vpop.f32.mrf.mxu0
  %621 = vmatprep.mubr.bf16.mxu0 0
  %622 = vmatmul.mubr.bf16.gmra.mxu0 %v579
  %v623 = vpop.f32.mrf.mxu0
  %v624 = vadd.f32 0.0, %v623
  %v625 = vpop.f32.mrf.mxu0
  %v626 = vpop.f32.mrf.mxu0
  %v627 = vadd.f32 0.0, %v626
  %v628 = vpop.f32.mrf.mxu0
  %629 = vdwg.mxu0
  %v634 = vunpack.c.l.b16 %v553
  %v635 = vunpack.c.l.b16 %v554
  %v636 = vunpack.c.l.b16 %v555
  %v637 = vunpack.c.l.b16 %v556
  %v638 = vpack.c.b16 %v635, %v634
  %v639 = vpack.c.b16 %v637, %v636
  %v643 = vsel %vm317, %v551, 0
  %v646 = vsel %vm317, %v552, 0
  %648 = vmatprep.subr.bf16.mxu0 0
  %649 = vmatpush1.bf16.msra.mxu0 0
  %650 = vmatprep.subr.bf16.mxu0 0
  %651 = vmatpush1.bf16.msra.mxu0 0
  %652 = vmatprep.subr.bf16.mxu0 0
  %653 = vmatpush1.bf16.msra.mxu0 0
  %654 = vmatprep.subr.bf16.mxu0 0
  %655 = vmatpush1.bf16.msra.mxu0 0
  %656 = vmatprep.subr.bf16.mxu0 0
  %657 = vmatpush1.bf16.msra.mxu0 0
  %658 = vmatprep.subr.bf16.mxu0 0
  %659 = vmatpush1.bf16.msra.mxu0 0
  %660 = vmatprep.subr.bf16.mxu0 0
  %661 = vmatpush1.bf16.msra.mxu0 %v639
  %662 = vmatprep.subr.bf16.mxu0 0
  %663 = vmatpush1.bf16.msra.mxu0 %v638
  %664 = vmatprep.subr.bf16.mxu0 0
  %665 = vmatpush2.bf16.msra.mxu0 0
  %666 = vmatprep.subr.bf16.mxu0 0
  %667 = vmatpush2.bf16.msra.mxu0 0
  %668 = vmatprep.subr.bf16.mxu0 0
  %669 = vmatpush2.bf16.msra.mxu0 0
  %670 = vmatprep.subr.bf16.mxu0 0
  %671 = vmatpush2.bf16.msra.mxu0 0
  %672 = vmatprep.subr.bf16.mxu0 0
  %673 = vmatpush2.bf16.msra.mxu0 0
  %674 = vmatprep.subr.bf16.mxu0 0
  %675 = vmatpush2.bf16.msra.mxu0 0
  %676 = vmatprep.subr.bf16.mxu0 0
  %677 = vmatpush2.bf16.msra.mxu0 0
  %678 = vmatprep.subr.bf16.mxu0 0
  %679 = vmatpush2.bf16.msra.mxu0 0
  %680 = vmatprep.mubr.bf16.mxu0 0
  %681 = vmatmul.mubr.bf16.gmra.mxu0 %v643
  %v682 = vpop.f32.mrf.mxu0
  %v683 = vadd.f32 %v616, %v682
  %v684 = vpop.f32.mrf.mxu0
  %v685 = vpop.f32.mrf.mxu0
  %v686 = vadd.f32 %v619, %v685
  %v687 = vpop.f32.mrf.mxu0
  %688 = vmatprep.mubr.bf16.mxu0 0
  %689 = vmatmul.mubr.bf16.gmra.mxu0 %v646
  %v690 = vpop.f32.mrf.mxu0
  %v691 = vadd.f32 %v624, %v690
  %v692 = vpop.f32.mrf.mxu0
  %v693 = vpop.f32.mrf.mxu0
  %v694 = vadd.f32 %v627, %v693
  %v695 = vpop.f32.mrf.mxu0
  %696 = vdwg.mxu0
  %v697 = vlaneseq
  %v698 = vshrl.u32 %v697, 7
  %v699 = vsub.s32 1, %v698
  %v700 = vrot.slane %v28, %v699
  %v701 = vadd.f32 %v683, %v700
  %v702 = vadd.f32 %v686, %v700
  %v703 = vadd.f32 %v691, %v700
  %v704 = vadd.f32 %v694, %v700
  %v705 = vlaneseq
  %v706 = vshrl.u32 %v705, 7
  %v707 = vsub.s32 2, %v706
  %v708 = vrot.slane %v28, %v707
  %710 = vrot.lane.b32.xlu0 %v708, 64
  %v711 = vpop.permute.xlu0 %710
  %v713 = vadd.f32 %v683, %v711
  %v714 = vadd.f32 %v686, %v711
  %v715 = vadd.f32 %v691, %v711
  %v716 = vadd.f32 %v694, %v711
  %v717 = vld [vmem:[%s6] sm:$0xff]
  %v718 = vld [vmem:[%s6 + $0x8] sm:$0xff]
  %v719 = vld [vmem:[%s6 + $0x10] sm:$0xff]
  %v720 = vld [vmem:[%s6 + $0x18] sm:$0xff]
  %721 = vxpose.xlu0.b32.start [1/16] %v305, 128
  %722 = vxpose.xlu0.b32.cont [2/16] %v306, 128
  %723 = vxpose.xlu0.b32.cont [3/16] %v307, 128
  %724 = vxpose.xlu0.b32.cont [4/16] %v308, 128
  %725 = vxpose.xlu0.b32.cont [5/16] 0.0, 128
  %726 = vxpose.xlu0.b32.cont [6/16] 0.0, 128
  %727 = vxpose.xlu0.b32.cont [7/16] 0.0, 128
  %728 = vxpose.xlu0.b32.cont [8/16] 0.0, 128
  %729 = vxpose.xlu0.b32.cont [9/16] 0.0, 128
  %730 = vxpose.xlu0.b32.cont [10/16] 0.0, 128
  %731 = vxpose.xlu0.b32.cont [11/16] 0.0, 128
  %732 = vxpose.xlu0.b32.cont [12/16] 0.0, 128
  %733 = vxpose.xlu0.b32.cont [13/16] 0.0, 128
  %734 = vxpose.xlu0.b32.cont [14/16] 0.0, 128
  %735 = vxpose.xlu0.b32.cont [15/16] 0.0, 128
  %736 = vxpose.xlu0.b32.end [16/16] 0.0, 128
  %v737 = vpop.trf.xlu0
  %v738 = vpop.trf.xlu0
  %v739 = vpop.trf.xlu0
  %v740 = vpop.trf.xlu0
  %v741 = vpop.trf.xlu0
  %v742 = vpop.trf.xlu0
  %v743 = vpop.trf.xlu0
  %v744 = vpop.trf.xlu0
  %v745 = vpop.trf.xlu0
  %v746 = vpop.trf.xlu0
  %v747 = vpop.trf.xlu0
  %v748 = vpop.trf.xlu0
  %v749 = vpop.trf.xlu0
  %v750 = vpop.trf.xlu0
  %v751 = vpop.trf.xlu0
  %v752 = vpop.trf.xlu0
  %v753 = vpack.c.bf16 %v738, %v737
  %v754 = vpack.c.bf16 %v740, %v739
  %v755 = vpack.c.bf16 %v742, %v741
  %v756 = vpack.c.bf16 %v744, %v743
  %v757 = vpack.c.bf16 %v714, %v713
  %v758 = vpack.c.bf16 %v716, %v715
  %761 = vrot.lane.b32.xlu0 %v757, 64
  %v762 = vpop.permute.xlu0 %761
  %763 = vrot.lane.b32.xlu0 %v758, 64
  %v764 = vpop.permute.xlu0 %763
  %v766 = vsel %vm317, %v762, 0
  %v769 = vsel %vm317, %v764, 0
  %771 = vmatprep.subr.bf16.mxu0 0
  %772 = vmatpush1.bf16.msra.mxu0 0
  %773 = vmatprep.subr.bf16.mxu0 0
  %774 = vmatpush1.bf16.msra.mxu0 0
  %775 = vmatprep.subr.bf16.mxu0 0
  %776 = vmatpush1.bf16.msra.mxu0 0
  %777 = vmatprep.subr.bf16.mxu0 0
  %778 = vmatpush1.bf16.msra.mxu0 0
  %779 = vmatprep.subr.bf16.mxu0 0
  %780 = vmatpush1.bf16.msra.mxu0 0
  %781 = vmatprep.subr.bf16.mxu0 0
  %782 = vmatpush1.bf16.msra.mxu0 0
  %783 = vmatprep.subr.bf16.mxu0 0
  %784 = vmatpush1.bf16.msra.mxu0 %v754
  %785 = vmatprep.subr.bf16.mxu0 0
  %786 = vmatpush1.bf16.msra.mxu0 %v753
  %787 = vmatprep.subr.bf16.mxu0 0
  %788 = vmatpush2.bf16.msra.mxu0 0
  %789 = vmatprep.subr.bf16.mxu0 0
  %790 = vmatpush2.bf16.msra.mxu0 0
  %791 = vmatprep.subr.bf16.mxu0 0
  %792 = vmatpush2.bf16.msra.mxu0 0
  %793 = vmatprep.subr.bf16.mxu0 0
  %794 = vmatpush2.bf16.msra.mxu0 0
  %795 = vmatprep.subr.bf16.mxu0 0
  %796 = vmatpush2.bf16.msra.mxu0 0
  %797 = vmatprep.subr.bf16.mxu0 0
  %798 = vmatpush2.bf16.msra.mxu0 0
  %799 = vmatprep.subr.bf16.mxu0 0
  %800 = vmatpush2.bf16.msra.mxu0 0
  %801 = vmatprep.subr.bf16.mxu0 0
  %802 = vmatpush2.bf16.msra.mxu0 0
  %803 = vmatprep.mubr.bf16.mxu0 0
  %804 = vmatmul.mubr.bf16.gmra.mxu0 %v766
  %v805 = vpop.f32.mrf.mxu0
  %v806 = vadd.f32 %v717, %v805
  %v807 = vpop.f32.mrf.mxu0
  %v808 = vpop.f32.mrf.mxu0
  %v809 = vadd.f32 %v718, %v808
  %v810 = vpop.f32.mrf.mxu0
  %811 = vmatprep.mubr.bf16.mxu0 0
  %812 = vmatmul.mubr.bf16.gmra.mxu0 %v769
  %v813 = vpop.f32.mrf.mxu0
  %v814 = vadd.f32 %v719, %v813
  %v815 = vpop.f32.mrf.mxu0
  %v816 = vpop.f32.mrf.mxu0
  %v817 = vadd.f32 %v720, %v816
  %v818 = vpop.f32.mrf.mxu0
  %819 = vdwg.mxu0
  %v820 = vsel %vm317, %v806, -inf
  %821 = vmax.xlane.f32.xlu0 %v820
  %v822 = vpop.xlane.xlu0 %821
  %v823 = vsel %vm317, %v809, -inf
  %824 = vmax.xlane.f32.xlu0 %v823
  %v825 = vpop.xlane.xlu0 %824
  %v826 = vsel %vm317, %v814, -inf
  %827 = vmax.xlane.f32.xlu0 %v826
  %v828 = vpop.xlane.xlu0 %827
  %v829 = vsel %vm317, %v817, -inf
  %830 = vmax.xlane.f32.xlu0 %v829
  %v831 = vpop.xlane.xlu0 %830
  %v832 = vsub.f32 %v806, %v822
  %v833 = vsub.f32 %v809, %v825
  %v834 = vsub.f32 %v814, %v828
  %v835 = vsub.f32 %v817, %v831
  %v836 = vmul.f32 %v832, 1.442695
  %v837 = vpow.pop %v836
  %v838 = vmul.f32 %v833, 1.442695
  %v839 = vpow.pop %v838
  %v840 = vmul.f32 %v834, 1.442695
  %v841 = vpow.pop %v840
  %v842 = vmul.f32 %v835, 1.442695
  %v843 = vpow.pop %v842
  %v844 = vsel %vm317, %v837, 0.0
  %845 = vadd.xlane.f32.xlu0 %v844
  %v846 = vpop.xlane.xlu0 %845
  %v847 = vsel %vm317, %v839, 0.0
  %848 = vadd.xlane.f32.xlu0 %v847
  %v849 = vpop.xlane.xlu0 %848
  %v850 = vsel %vm317, %v841, 0.0
  %851 = vadd.xlane.f32.xlu0 %v850
  %v852 = vpop.xlane.xlu0 %851
  %v853 = vsel %vm317, %v843, 0.0
  %854 = vadd.xlane.f32.xlu0 %v853
  %v855 = vpop.xlane.xlu0 %854
  %v856 = vrcp.pop %v846
  %v857 = vrcp.pop %v849
  %v858 = vrcp.pop %v852
  %v859 = vrcp.pop %v855
  %v860 = vmul.f32 %v837, %v856
  %v861 = vmul.f32 %v839, %v857
  %v862 = vmul.f32 %v841, %v858
  %v863 = vmul.f32 %v843, %v859
  %v864 = vpack.c.bf16 %v861, %v860
  %v865 = vpack.c.bf16 %v863, %v862
  %v866 = vpack.c.bf16 %v306, %v305
  %v867 = vpack.c.bf16 %v308, %v307
  %870 = vrot.lane.b32.xlu0 %v866, 64
  %v871 = vpop.permute.xlu0 %870
  %872 = vrot.lane.b32.xlu0 %v867, 64
  %v873 = vpop.permute.xlu0 %872
  %v877 = vsel %vm317, %v864, 0
  %v880 = vsel %vm317, %v865, 0
  %882 = vmatprep.subr.bf16.mxu0 0
  %883 = vmatpush1.bf16.msra.mxu0 0
  %884 = vmatprep.subr.bf16.mxu0 0
  %885 = vmatpush1.bf16.msra.mxu0 0
  %886 = vmatprep.subr.bf16.mxu0 0
  %887 = vmatpush1.bf16.msra.mxu0 0
  %888 = vmatprep.subr.bf16.mxu0 0
  %889 = vmatpush1.bf16.msra.mxu0 0
  %890 = vmatprep.subr.bf16.mxu0 0
  %891 = vmatpush1.bf16.msra.mxu0 0
  %892 = vmatprep.subr.bf16.mxu0 0
  %893 = vmatpush1.bf16.msra.mxu0 0
  %894 = vmatprep.subr.bf16.mxu0 0
  %895 = vmatpush1.bf16.msra.mxu0 %v873
  %896 = vmatprep.subr.bf16.mxu0 0
  %897 = vmatpush1.bf16.msra.mxu0 %v871
  %898 = vmatprep.subr.bf16.mxu0 0
  %899 = vmatpush2.bf16.msra.mxu0 0
  %900 = vmatprep.subr.bf16.mxu0 0
  %901 = vmatpush2.bf16.msra.mxu0 0
  %902 = vmatprep.subr.bf16.mxu0 0
  %903 = vmatpush2.bf16.msra.mxu0 0
  %904 = vmatprep.subr.bf16.mxu0 0
  %905 = vmatpush2.bf16.msra.mxu0 0
  %906 = vmatprep.subr.bf16.mxu0 0
  %907 = vmatpush2.bf16.msra.mxu0 0
  %908 = vmatprep.subr.bf16.mxu0 0
  %909 = vmatpush2.bf16.msra.mxu0 0
  %910 = vmatprep.subr.bf16.mxu0 0
  %911 = vmatpush2.bf16.msra.mxu0 0
  %912 = vmatprep.subr.bf16.mxu0 0
  %913 = vmatpush2.bf16.msra.mxu0 0
  %914 = vmatprep.mubr.bf16.mxu0 0
  %915 = vmatmul.mubr.bf16.gmra.mxu0 %v877
  %v916 = vpop.f32.mrf.mxu0
  %v917 = vadd.f32 0.0, %v916
  %v918 = vpop.f32.mrf.mxu0
  %v919 = vpop.f32.mrf.mxu0
  %v920 = vadd.f32 0.0, %v919
  %v921 = vpop.f32.mrf.mxu0
  %922 = vmatprep.mubr.bf16.mxu0 0
  %923 = vmatmul.mubr.bf16.gmra.mxu0 %v880
  %v924 = vpop.f32.mrf.mxu0
  %v925 = vadd.f32 0.0, %v924
  %v926 = vpop.f32.mrf.mxu0
  %v927 = vpop.f32.mrf.mxu0
  %v928 = vadd.f32 0.0, %v927
  %v929 = vpop.f32.mrf.mxu0
  %930 = vdwg.mxu0
  %931 = vrot.lane.b32.xlu0 %v757, 32
  %v932 = vpop.permute.xlu0 %931
  %933 = vrot.lane.b32.xlu0 %v758, 32
  %v934 = vpop.permute.xlu0 %933
  %v936 = vsel %vm317, %v932, 0
  %v939 = vsel %vm317, %v934, 0
  %941 = vmatprep.subr.bf16.mxu0 0
  %942 = vmatpush1.bf16.msra.mxu0 0
  %943 = vmatprep.subr.bf16.mxu0 0
  %944 = vmatpush1.bf16.msra.mxu0 0
  %945 = vmatprep.subr.bf16.mxu0 0
  %946 = vmatpush1.bf16.msra.mxu0 0
  %947 = vmatprep.subr.bf16.mxu0 0
  %948 = vmatpush1.bf16.msra.mxu0 0
  %949 = vmatprep.subr.bf16.mxu0 0
  %950 = vmatpush1.bf16.msra.mxu0 0
  %951 = vmatprep.subr.bf16.mxu0 0
  %952 = vmatpush1.bf16.msra.mxu0 0
  %953 = vmatprep.subr.bf16.mxu0 0
  %954 = vmatpush1.bf16.msra.mxu0 %v756
  %955 = vmatprep.subr.bf16.mxu0 0
  %956 = vmatpush1.bf16.msra.mxu0 %v755
  %957 = vmatprep.subr.bf16.mxu0 0
  %958 = vmatpush2.bf16.msra.mxu0 0
  %959 = vmatprep.subr.bf16.mxu0 0
  %960 = vmatpush2.bf16.msra.mxu0 0
  %961 = vmatprep.subr.bf16.mxu0 0
  %962 = vmatpush2.bf16.msra.mxu0 0
  %963 = vmatprep.subr.bf16.mxu0 0
  %964 = vmatpush2.bf16.msra.mxu0 0
  %965 = vmatprep.subr.bf16.mxu0 0
  %966 = vmatpush2.bf16.msra.mxu0 0
  %967 = vmatprep.subr.bf16.mxu0 0
  %968 = vmatpush2.bf16.msra.mxu0 0
  %969 = vmatprep.subr.bf16.mxu0 0
  %970 = vmatpush2.bf16.msra.mxu0 0
  %971 = vmatprep.subr.bf16.mxu0 0
  %972 = vmatpush2.bf16.msra.mxu0 0
  %973 = vmatprep.mubr.bf16.mxu0 0
  %974 = vmatmul.mubr.bf16.gmra.mxu0 %v936
  %v975 = vpop.f32.mrf.mxu0
  %v976 = vadd.f32 %v717, %v975
  %v977 = vpop.f32.mrf.mxu0
  %v978 = vpop.f32.mrf.mxu0
  %v979 = vadd.f32 %v718, %v978
  %v980 = vpop.f32.mrf.mxu0
  %981 = vmatprep.mubr.bf16.mxu0 0
  %982 = vmatmul.mubr.bf16.gmra.mxu0 %v939
  %v983 = vpop.f32.mrf.mxu0
  %v984 = vadd.f32 %v719, %v983
  %v985 = vpop.f32.mrf.mxu0
  %v986 = vpop.f32.mrf.mxu0
  %v987 = vadd.f32 %v720, %v986
  %v988 = vpop.f32.mrf.mxu0
  %989 = vdwg.mxu0
  %v990 = vsel %vm317, %v976, -inf
  %991 = vmax.xlane.f32.xlu0 %v990
  %v992 = vpop.xlane.xlu0 %991
  %v993 = vsel %vm317, %v979, -inf
  %994 = vmax.xlane.f32.xlu0 %v993
  %v995 = vpop.xlane.xlu0 %994
  %v996 = vsel %vm317, %v984, -inf
  %997 = vmax.xlane.f32.xlu0 %v996
  %v998 = vpop.xlane.xlu0 %997
  %v999 = vsel %vm317, %v987, -inf
  %1000 = vmax.xlane.f32.xlu0 %v999
  %v1001 = vpop.xlane.xlu0 %1000
  %v1002 = vsub.f32 %v976, %v992
  %v1003 = vsub.f32 %v979, %v995
  %v1004 = vsub.f32 %v984, %v998
  %v1005 = vsub.f32 %v987, %v1001
  %v1006 = vmul.f32 %v1002, 1.442695
  %v1007 = vpow.pop %v1006
  %v1008 = vmul.f32 %v1003, 1.442695
  %v1009 = vpow.pop %v1008
  %v1010 = vmul.f32 %v1004, 1.442695
  %v1011 = vpow.pop %v1010
  %v1012 = vmul.f32 %v1005, 1.442695
  %v1013 = vpow.pop %v1012
  %v1014 = vsel %vm317, %v1007, 0.0
  %1015 = vadd.xlane.f32.xlu0 %v1014
  %v1016 = vpop.xlane.xlu0 %1015
  %v1017 = vsel %vm317, %v1009, 0.0
  %1018 = vadd.xlane.f32.xlu0 %v1017
  %v1019 = vpop.xlane.xlu0 %1018
  %v1020 = vsel %vm317, %v1011, 0.0
  %1021 = vadd.xlane.f32.xlu0 %v1020
  %v1022 = vpop.xlane.xlu0 %1021
  %v1023 = vsel %vm317, %v1013, 0.0
  %1024 = vadd.xlane.f32.xlu0 %v1023
  %v1025 = vpop.xlane.xlu0 %1024
  %v1026 = vrcp.pop %v1016
  %v1027 = vrcp.pop %v1019
  %v1028 = vrcp.pop %v1022
  %v1029 = vrcp.pop %v1025
  %v1030 = vmul.f32 %v1007, %v1026
  %v1031 = vmul.f32 %v1009, %v1027
  %v1032 = vmul.f32 %v1011, %v1028
  %v1033 = vmul.f32 %v1013, %v1029
  %v1034 = vpack.c.bf16 %v1031, %v1030
  %v1035 = vpack.c.bf16 %v1033, %v1032
  %1036 = vrot.lane.b32.xlu0 %v866, 32
  %v1037 = vpop.permute.xlu0 %1036
  %1038 = vrot.lane.b32.xlu0 %v867, 32
  %v1039 = vpop.permute.xlu0 %1038
  %v1043 = vsel %vm317, %v1034, 0
  %v1046 = vsel %vm317, %v1035, 0
  %1048 = vmatprep.subr.bf16.mxu0 0
  %1049 = vmatpush1.bf16.msra.mxu0 0
  %1050 = vmatprep.subr.bf16.mxu0 0
  %1051 = vmatpush1.bf16.msra.mxu0 0
  %1052 = vmatprep.subr.bf16.mxu0 0
  %1053 = vmatpush1.bf16.msra.mxu0 0
  %1054 = vmatprep.subr.bf16.mxu0 0
  %1055 = vmatpush1.bf16.msra.mxu0 0
  %1056 = vmatprep.subr.bf16.mxu0 0
  %1057 = vmatpush1.bf16.msra.mxu0 0
  %1058 = vmatprep.subr.bf16.mxu0 0
  %1059 = vmatpush1.bf16.msra.mxu0 0
  %1060 = vmatprep.subr.bf16.mxu0 0
  %1061 = vmatpush1.bf16.msra.mxu0 %v1039
  %1062 = vmatprep.subr.bf16.mxu0 0
  %1063 = vmatpush1.bf16.msra.mxu0 %v1037
  %1064 = vmatprep.subr.bf16.mxu0 0
  %1065 = vmatpush2.bf16.msra.mxu0 0
  %1066 = vmatprep.subr.bf16.mxu0 0
  %1067 = vmatpush2.bf16.msra.mxu0 0
  %1068 = vmatprep.subr.bf16.mxu0 0
  %1069 = vmatpush2.bf16.msra.mxu0 0
  %1070 = vmatprep.subr.bf16.mxu0 0
  %1071 = vmatpush2.bf16.msra.mxu0 0
  %1072 = vmatprep.subr.bf16.mxu0 0
  %1073 = vmatpush2.bf16.msra.mxu0 0
  %1074 = vmatprep.subr.bf16.mxu0 0
  %1075 = vmatpush2.bf16.msra.mxu0 0
  %1076 = vmatprep.subr.bf16.mxu0 0
  %1077 = vmatpush2.bf16.msra.mxu0 0
  %1078 = vmatprep.subr.bf16.mxu0 0
  %1079 = vmatpush2.bf16.msra.mxu0 0
  %1080 = vmatprep.mubr.bf16.mxu0 0
  %1081 = vmatmul.mubr.bf16.gmra.mxu0 %v1043
  %v1082 = vpop.f32.mrf.mxu0
  %v1083 = vadd.f32 0.0, %v1082
  %v1084 = vpop.f32.mrf.mxu0
  %v1085 = vpop.f32.mrf.mxu0
  %v1086 = vadd.f32 0.0, %v1085
  %v1087 = vpop.f32.mrf.mxu0
  %1088 = vmatprep.mubr.bf16.mxu0 0
  %1089 = vmatmul.mubr.bf16.gmra.mxu0 %v1046
  %v1090 = vpop.f32.mrf.mxu0
  %v1091 = vadd.f32 0.0, %v1090
  %v1092 = vpop.f32.mrf.mxu0
  %v1093 = vpop.f32.mrf.mxu0
  %v1094 = vadd.f32 0.0, %v1093
  %v1095 = vpop.f32.mrf.mxu0
  %1096 = vdwg.mxu0
  %1101 = vrot.lane.b32.xlu0 %v1083, 32
  %v1102 = vpop.permute.xlu0 %1101
  %1103 = vrot.lane.b32.xlu0 %v1086, 32
  %v1104 = vpop.permute.xlu0 %1103
  %1105 = vrot.lane.b32.xlu0 %v1091, 32
  %v1106 = vpop.permute.xlu0 %1105
  %1107 = vrot.lane.b32.xlu0 %v1094, 32
  %v1108 = vpop.permute.xlu0 %1107
  %v1113 = vsel %vm317, %v917, %v1102
  %v1114 = vsel %vm317, %v920, %v1104
  %v1115 = vsel %vm317, %v925, %v1106
  %v1116 = vsel %vm317, %v928, %v1108
  %v1117 = vpack.c.bf16 %v1114, %v1113
  %v1118 = vpack.c.bf16 %v1116, %v1115
  %v1119 = vld [vmem:[%s3 + $0x4] sm:$0xf]
  %v1120 = vld [vmem:[%s3 + $0xc] sm:$0xf]
  %v1121 = vld [vmem:[%s3 + $0x14] sm:$0xf]
  %v1122 = vld [vmem:[%s3 + $0x1c] sm:$0xf]
  %v1123 = vld [vmem:[%s3 + $0x24] sm:$0xf]
  %v1124 = vld [vmem:[%s3 + $0x2c] sm:$0xf]
  %v1125 = vld [vmem:[%s3 + $0x34] sm:$0xf]
  %v1126 = vld [vmem:[%s3 + $0x3c] sm:$0xf]
  %v1127 = vlaneseq
  %v1128 = vshrl.u32 %v1127, 7
  %v1129 = vsub.s32 4, %v1128
  %v1130 = vrot.slane %v28, %v1129
  %v1139 = vunpack.c.l.b16 %v1119
  %v1140 = vunpack.c.l.b16 %v1120
  %v1141 = vunpack.c.l.b16 %v1121
  %v1142 = vunpack.c.l.b16 %v1122
  %v1143 = vunpack.c.l.b16 %v1123
  %v1144 = vunpack.c.l.b16 %v1124
  %v1145 = vunpack.c.l.b16 %v1125
  %v1146 = vunpack.c.l.b16 %v1126
  %v1147 = vpack.c.b16 %v1140, %v1139
  %v1148 = vpack.c.b16 %v1142, %v1141
  %v1149 = vpack.c.b16 %v1144, %v1143
  %v1150 = vpack.c.b16 %v1146, %v1145
  %vm1155 = vcmask 523264
  %v1157 = vsel %vm1155, %v1117, 0
  %v1160 = vsel %vm1155, %v1118, 0
  %1162 = vmatprep.subr.bf16.mxu0 0
  %1163 = vmatpush1.bf16.msra.mxu0 0
  %1164 = vmatprep.subr.bf16.mxu0 0
  %1165 = vmatpush1.bf16.msra.mxu0 0
  %1166 = vmatprep.subr.bf16.mxu0 0
  %1167 = vmatpush1.bf16.msra.mxu0 0
  %1168 = vmatprep.subr.bf16.mxu0 0
  %1169 = vmatpush1.bf16.msra.mxu0 0
  %1170 = vmatprep.subr.bf16.mxu0 0
  %1171 = vmatpush1.bf16.msra.mxu0 %v1150
  %1172 = vmatprep.subr.bf16.mxu0 0
  %1173 = vmatpush1.bf16.msra.mxu0 %v1149
  %1174 = vmatprep.subr.bf16.mxu0 0
  %1175 = vmatpush1.bf16.msra.mxu0 %v1148
  %1176 = vmatprep.subr.bf16.mxu0 0
  %1177 = vmatpush1.bf16.msra.mxu0 %v1147
  %1178 = vmatprep.subr.bf16.mxu0 0
  %1179 = vmatpush2.bf16.msra.mxu0 0
  %1180 = vmatprep.subr.bf16.mxu0 0
  %1181 = vmatpush2.bf16.msra.mxu0 0
  %1182 = vmatprep.subr.bf16.mxu0 0
  %1183 = vmatpush2.bf16.msra.mxu0 0
  %1184 = vmatprep.subr.bf16.mxu0 0
  %1185 = vmatpush2.bf16.msra.mxu0 0
  %1186 = vmatprep.subr.bf16.mxu0 0
  %1187 = vmatpush2.bf16.msra.mxu0 0
  %1188 = vmatprep.subr.bf16.mxu0 0
  %1189 = vmatpush2.bf16.msra.mxu0 0
  %1190 = vmatprep.subr.bf16.mxu0 0
  %1191 = vmatpush2.bf16.msra.mxu0 0
  %1192 = vmatprep.subr.bf16.mxu0 0
  %1193 = vmatpush2.bf16.msra.mxu0 0
  %1194 = vmatprep.mubr.bf16.mxu0 0
  %1195 = vmatmul.mubr.bf16.gmra.mxu0 %v1157
  %v1196 = vpop.f32.mrf.mxu0
  %v1197 = vadd.f32 %v1130, %v1196
  %v1198 = vpop.f32.mrf.mxu0
  %v1199 = vpop.f32.mrf.mxu0
  %v1200 = vadd.f32 %v1130, %v1199
  %v1201 = vpop.f32.mrf.mxu0
  %1202 = vmatprep.mubr.bf16.mxu0 0
  %1203 = vmatmul.mubr.bf16.gmra.mxu0 %v1160
  %v1204 = vpop.f32.mrf.mxu0
  %v1205 = vadd.f32 %v1130, %v1204
  %v1206 = vpop.f32.mrf.mxu0
  %v1207 = vpop.f32.mrf.mxu0
  %v1208 = vadd.f32 %v1130, %v1207
  %v1209 = vpop.f32.mrf.mxu0
  %1210 = vdwg.mxu0
  %v1211 = vadd.f32 %v701, %v1197
  %v1212 = vadd.f32 %v702, %v1200
  %v1213 = vadd.f32 %v703, %v1205
  %v1214 = vadd.f32 %v704, %v1208
  %v1215 = vsel %vm1155, %v1211, 0.0
  %1216 = vadd.xlane.f32.xlu0 %v1215
  %v1217 = vpop.xlane.xlu0 %1216
  %v1218 = vsel %vm1155, %v1212, 0.0
  %1219 = vadd.xlane.f32.xlu0 %v1218
  %v1220 = vpop.xlane.xlu0 %1219
  %v1221 = vsel %vm1155, %v1213, 0.0
  %1222 = vadd.xlane.f32.xlu0 %v1221
  %v1223 = vpop.xlane.xlu0 %1222
  %v1224 = vsel %vm1155, %v1214, 0.0
  %1225 = vadd.xlane.f32.xlu0 %v1224
  %v1226 = vpop.xlane.xlu0 %1225
  %v1227 = vrcp.pop 64.0
  %v1228 = vmul.f32 %v1217, %v1227
  %v1229 = vmul.f32 %v1220, %v1227
  %v1230 = vmul.f32 %v1223, %v1227
  %v1231 = vmul.f32 %v1226, %v1227
  %v1232 = vsub.f32 %v1211, %v1228
  %v1233 = vsub.f32 %v1212, %v1229
  %v1234 = vsub.f32 %v1213, %v1230
  %v1235 = vsub.f32 %v1214, %v1231
  %v1236 = vmul.f32 %v1232, %v1232
  %v1237 = vmul.f32 %v1233, %v1233
  %v1238 = vmul.f32 %v1234, %v1234
  %v1239 = vmul.f32 %v1235, %v1235
  %v1240 = vsel %vm1155, %v1236, 0.0
  %1241 = vadd.xlane.f32.xlu0 %v1240
  %v1242 = vpop.xlane.xlu0 %1241
  %v1243 = vsel %vm1155, %v1237, 0.0
  %1244 = vadd.xlane.f32.xlu0 %v1243
  %v1245 = vpop.xlane.xlu0 %1244
  %v1246 = vsel %vm1155, %v1238, 0.0
  %1247 = vadd.xlane.f32.xlu0 %v1246
  %v1248 = vpop.xlane.xlu0 %1247
  %v1249 = vsel %vm1155, %v1239, 0.0
  %1250 = vadd.xlane.f32.xlu0 %v1249
  %v1251 = vpop.xlane.xlu0 %1250
  %v1252 = vmul.f32 %v1242, %v1227
  %v1253 = vmul.f32 %v1245, %v1227
  %v1254 = vmul.f32 %v1248, %v1227
  %v1255 = vmul.f32 %v1251, %v1227
  %v1256 = vadd.f32 %v1252, 1e-05
  %v1257 = vadd.f32 %v1253, 1e-05
  %v1258 = vadd.f32 %v1254, 1e-05
  %v1259 = vadd.f32 %v1255, 1e-05
  %v1260 = vrsqrt.pop %v1256
  %v1261 = vrsqrt.pop %v1257
  %v1262 = vrsqrt.pop %v1258
  %v1263 = vrsqrt.pop %v1259
  %v1264 = vmul.f32 %v1232, %v1260
  %v1265 = vmul.f32 %v1233, %v1261
  %v1266 = vmul.f32 %v1234, %v1262
  %v1267 = vmul.f32 %v1235, %v1263
  %v1268 = vlaneseq
  %v1269 = vshrl.u32 %v1268, 7
  %v1270 = vsub.s32 5, %v1269
  %v1271 = vrot.slane %v28, %v1270
  %v1272 = vmul.f32 %v1264, %v1271
  %v1273 = vmul.f32 %v1265, %v1271
  %v1274 = vmul.f32 %v1266, %v1271
  %v1275 = vmul.f32 %v1267, %v1271
  %v1276 = vlaneseq
  %v1277 = vshrl.u32 %v1276, 7
  %v1278 = vsub.s32 6, %v1277
  %v1279 = vrot.slane %v28, %v1278
  %v1280 = vadd.f32 %v1272, %v1279
  %v1281 = vadd.f32 %v1273, %v1279
  %v1282 = vadd.f32 %v1274, %v1279
  %v1283 = vadd.f32 %v1275, %v1279
  %v1284 = vpack.c.bf16 %v1281, %v1280
  %v1285 = vpack.c.bf16 %v1283, %v1282
  %v1286 = vld [vmem:[%s4] sm:$0xff]
  %v1287 = vld [vmem:[%s4 + $0x8] sm:$0xff]
  %v1288 = vld [vmem:[%s4 + $0x10] sm:$0xff]
  %v1289 = vld [vmem:[%s4 + $0x18] sm:$0xff]
  %v1290 = vld [vmem:[%s4 + $0x20] sm:$0xff]
  %v1291 = vld [vmem:[%s4 + $0x28] sm:$0xff]
  %v1292 = vld [vmem:[%s4 + $0x30] sm:$0xff]
  %v1293 = vld [vmem:[%s4 + $0x38] sm:$0xff]
  %v1294 = vlaneseq
  %v1295 = vshrl.u32 %v1294, 7
  %v1296 = vsub.s32 7, %v1295
  %v1297 = vrot.slane %v28, %v1296
  %v1298 = vlaneseq
  %v1299 = vshrl.u32 %v1298, 7
  %v1300 = vsub.s32 7, %v1299
  %v1301 = vrot.slane %v29, %v1300
  %v1310 = vunpack.c.l.b16 %v1286
  %v1311 = vunpack.c.h.b16 %v1286
  %v1312 = vunpack.c.l.b16 %v1287
  %v1313 = vunpack.c.h.b16 %v1287
  %v1314 = vunpack.c.l.b16 %v1288
  %v1315 = vunpack.c.h.b16 %v1288
  %v1316 = vunpack.c.l.b16 %v1289
  %v1317 = vunpack.c.h.b16 %v1289
  %v1318 = vunpack.c.l.b16 %v1290
  %v1319 = vunpack.c.h.b16 %v1290
  %v1320 = vunpack.c.l.b16 %v1291
  %v1321 = vunpack.c.h.b16 %v1291
  %v1322 = vunpack.c.l.b16 %v1292
  %v1323 = vunpack.c.h.b16 %v1292
  %v1324 = vunpack.c.l.b16 %v1293
  %v1325 = vunpack.c.h.b16 %v1293
  %v1326 = vpack.c.b16 %v1312, %v1310
  %v1327 = vpack.c.b16 %v1313, %v1311
  %v1328 = vpack.c.b16 %v1316, %v1314
  %v1329 = vpack.c.b16 %v1317, %v1315
  %v1330 = vpack.c.b16 %v1320, %v1318
  %v1331 = vpack.c.b16 %v1321, %v1319
  %v1332 = vpack.c.b16 %v1324, %v1322
  %v1333 = vpack.c.b16 %v1325, %v1323
  %v1343 = vsel %vm1155, %v1284, 0
  %v1346 = vsel %vm1155, %v1285, 0
  %1348 = vmatprep.subr.bf16.mxu0 0
  %1349 = vmatpush1.bf16.msra.mxu0 0
  %1350 = vmatprep.subr.bf16.mxu0 0
  %1351 = vmatpush1.bf16.msra.mxu0 0
  %1352 = vmatprep.subr.bf16.mxu0 0
  %1353 = vmatpush1.bf16.msra.mxu0 0
  %1354 = vmatprep.subr.bf16.mxu0 0
  %1355 = vmatpush1.bf16.msra.mxu0 0
  %1356 = vmatprep.subr.bf16.mxu0 %v1333
  %1357 = vmatpush1.bf16.msra.mxu0 %v1332
  %1358 = vmatprep.subr.bf16.mxu0 %v1331
  %1359 = vmatpush1.bf16.msra.mxu0 %v1330
  %1360 = vmatprep.subr.bf16.mxu0 %v1329
  %1361 = vmatpush1.bf16.msra.mxu0 %v1328
  %1362 = vmatprep.subr.bf16.mxu0 %v1327
  %1363 = vmatpush1.bf16.msra.mxu0 %v1326
  %1364 = vmatprep.subr.bf16.mxu0 0
  %1365 = vmatpush2.bf16.msra.mxu0 0
  %1366 = vmatprep.subr.bf16.mxu0 0
  %1367 = vmatpush2.bf16.msra.mxu0 0
  %1368 = vmatprep.subr.bf16.mxu0 0
  %1369 = vmatpush2.bf16.msra.mxu0 0
  %1370 = vmatprep.subr.bf16.mxu0 0
  %1371 = vmatpush2.bf16.msra.mxu0 0
  %1372 = vmatprep.subr.bf16.mxu0 0
  %1373 = vmatpush2.bf16.msra.mxu0 0
  %1374 = vmatprep.subr.bf16.mxu0 0
  %1375 = vmatpush2.bf16.msra.mxu0 0
  %1376 = vmatprep.subr.bf16.mxu0 0
  %1377 = vmatpush2.bf16.msra.mxu0 0
  %1378 = vmatprep.subr.bf16.mxu0 0
  %1379 = vmatpush2.bf16.msra.mxu0 0
  %1380 = vmatprep.mubr.bf16.mxu0 0
  %1381 = vmatmul.mubr.bf16.gmra.mxu0 %v1343
  %v1382 = vpop.f32.mrf.mxu0
  %v1383 = vadd.f32 %v1297, %v1382
  %v1384 = vpop.f32.mrf.mxu0
  %v1385 = vadd.f32 %v1301, %v1384
  %v1386 = vpop.f32.mrf.mxu0
  %v1387 = vadd.f32 %v1297, %v1386
  %v1388 = vpop.f32.mrf.mxu0
  %v1389 = vadd.f32 %v1301, %v1388
  %1390 = vmatprep.mubr.bf16.mxu0 0
  %1391 = vmatmul.mubr.bf16.gmra.mxu0 %v1346
  %v1392 = vpop.f32.mrf.mxu0
  %v1393 = vadd.f32 %v1297, %v1392
  %v1394 = vpop.f32.mrf.mxu0
  %v1395 = vadd.f32 %v1301, %v1394
  %v1396 = vpop.f32.mrf.mxu0
  %v1397 = vadd.f32 %v1297, %v1396
  %v1398 = vpop.f32.mrf.mxu0
  %v1399 = vadd.f32 %v1301, %v1398
  %1400 = vdwg.mxu0
  %1401 = vst [vmem:[#allocation2] sm:$0xff] %v1383
  %1402 = vst [vmem:[#allocation2 + $0x8] sm:$0xff] %v1385
  %1403 = vst [vmem:[#allocation2 + $0x10] sm:$0xff] %v1387
  %1404 = vst [vmem:[#allocation2 + $0x18] sm:$0xff] %v1389
  %1405 = vst [vmem:[#allocation2 + $0x20] sm:$0xff] %v1393
  %1406 = vst [vmem:[#allocation2 + $0x28] sm:$0xff] %v1395
  %1407 = vst [vmem:[#allocation2 + $0x30] sm:$0xff] %v1397
  %1408 = vst [vmem:[#allocation2 + $0x38] sm:$0xff] %v1399
  %v1409 = vld [vmem:[%s4 + $0x40] sm:$0xff]
  %v1410 = vld [vmem:[%s4 + $0x48] sm:$0xff]
  %v1411 = vld [vmem:[%s4 + $0x50] sm:$0xff]
  %v1412 = vld [vmem:[%s4 + $0x58] sm:$0xff]
  %v1413 = vld [vmem:[%s4 + $0x60] sm:$0xff]
  %v1414 = vld [vmem:[%s4 + $0x68] sm:$0xff]
  %v1415 = vld [vmem:[%s4 + $0x70] sm:$0xff]
  %v1416 = vld [vmem:[%s4 + $0x78] sm:$0xff]
  %v1417 = vld [vmem:[%s4 + $0x80] sm:$0xff]
  %v1418 = vld [vmem:[%s4 + $0x88] sm:$0xff]
  %v1419 = vld [vmem:[%s4 + $0x90] sm:$0xff]
  %v1420 = vld [vmem:[%s4 + $0x98] sm:$0xff]
  %v1421 = vld [vmem:[%s4 + $0xa0] sm:$0xff]
  %v1422 = vld [vmem:[%s4 + $0xa8] sm:$0xff]
  %v1423 = vld [vmem:[%s4 + $0xb0] sm:$0xff]
  %v1424 = vld [vmem:[%s4 + $0xb8] sm:$0xff]
  %v1425 = vld [vmem:[%s4 + $0xc0] sm:$0xff]
  %v1426 = vld [vmem:[%s4 + $0xc8] sm:$0xff]
  %v1427 = vld [vmem:[%s4 + $0xd0] sm:$0xff]
  %v1428 = vld [vmem:[%s4 + $0xd8] sm:$0xff]
  %v1429 = vld [vmem:[%s4 + $0xe0] sm:$0xff]
  %v1430 = vld [vmem:[%s4 + $0xe8] sm:$0xff]
  %v1431 = vld [vmem:[%s4 + $0xf0] sm:$0xff]
  %v1432 = vld [vmem:[%s4 + $0xf8] sm:$0xff]
  %v1433 = vld [vmem:[#allocation2] sm:$0x3]
  %v1434 = vld [vmem:[#allocation2 + $0x8] sm:$0x3]
  %v1443 = vunpack.c.l.b16 %v1409
  %v1444 = vunpack.c.h.b16 %v1409
  %v1445 = vunpack.c.l.b16 %v1410
  %v1446 = vunpack.c.h.b16 %v1410
  %v1447 = vunpack.c.l.b16 %v1411
  %v1448 = vunpack.c.h.b16 %v1411
  %v1449 = vunpack.c.l.b16 %v1412
  %v1450 = vunpack.c.h.b16 %v1412
  %v1451 = vunpack.c.l.b16 %v1413
  %v1452 = vunpack.c.h.b16 %v1413
  %v1453 = vunpack.c.l.b16 %v1414
  %v1454 = vunpack.c.h.b16 %v1414
  %v1455 = vunpack.c.l.b16 %v1415
  %v1456 = vunpack.c.h.b16 %v1415
  %v1457 = vunpack.c.l.b16 %v1416
  %v1458 = vunpack.c.h.b16 %v1416
  %v1459 = vpack.c.b16 %v1445, %v1443
  %v1460 = vpack.c.b16 %v1446, %v1444
  %v1461 = vpack.c.b16 %v1449, %v1447
  %v1462 = vpack.c.b16 %v1450, %v1448
  %v1463 = vpack.c.b16 %v1453, %v1451
  %v1464 = vpack.c.b16 %v1454, %v1452
  %v1465 = vpack.c.b16 %v1457, %v1455
  %v1466 = vpack.c.b16 %v1458, %v1456
  %v1476 = vsel %vm1155, 0, 0
  %1478 = vmatprep.subr.bf16.mxu0 0
  %1479 = vmatpush1.bf16.msra.mxu0 0
  %1480 = vmatprep.subr.bf16.mxu0 0
  %1481 = vmatpush1.bf16.msra.mxu0 0
  %1482 = vmatprep.subr.bf16.mxu0 0
  %1483 = vmatpush1.bf16.msra.mxu0 0
  %1484 = vmatprep.subr.bf16.mxu0 0
  %1485 = vmatpush1.bf16.msra.mxu0 0
  %1486 = vmatprep.subr.bf16.mxu0 %v1466
  %1487 = vmatpush1.bf16.msra.mxu0 %v1465
  %1488 = vmatprep.subr.bf16.mxu0 %v1464
  %1489 = vmatpush1.bf16.msra.mxu0 %v1463
  %1490 = vmatprep.subr.bf16.mxu0 %v1462
  %1491 = vmatpush1.bf16.msra.mxu0 %v1461
  %1492 = vmatprep.subr.bf16.mxu0 %v1460
  %1493 = vmatpush1.bf16.msra.mxu0 %v1459
  %1494 = vmatprep.subr.bf16.mxu0 0
  %1495 = vmatpush2.bf16.msra.mxu0 0
  %1496 = vmatprep.subr.bf16.mxu0 0
  %1497 = vmatpush2.bf16.msra.mxu0 0
  %1498 = vmatprep.subr.bf16.mxu0 0
  %1499 = vmatpush2.bf16.msra.mxu0 0
  %1500 = vmatprep.subr.bf16.mxu0 0
  %1501 = vmatpush2.bf16.msra.mxu0 0
  %1502 = vmatprep.subr.bf16.mxu0 0
  %1503 = vmatpush2.bf16.msra.mxu0 0
  %1504 = vmatprep.subr.bf16.mxu0 0
  %1505 = vmatpush2.bf16.msra.mxu0 0
  %1506 = vmatprep.subr.bf16.mxu0 0
  %1507 = vmatpush2.bf16.msra.mxu0 0
  %1508 = vmatprep.subr.bf16.mxu0 0
  %1509 = vmatpush2.bf16.msra.mxu0 0
  %1510 = vmatprep.mubr.bf16.mxu0 0
  %1511 = vmatmul.mubr.bf16.gmra.mxu0 %v1476
  %v1512 = vpop.f32.mrf.mxu0
  %v1513 = vadd.f32 0.0, %v1512
  %v1514 = vpop.f32.mrf.mxu0
  %v1515 = vadd.f32 0.0, %v1514
  %v1516 = vpop.f32.mrf.mxu0
  %v1517 = vpop.f32.mrf.mxu0
  %1518 = vdwg.mxu0
  %v1519 = vadd.f32 %v1433, %v1513
  %v1520 = vadd.f32 %v1434, %v1515
  %v1521 = vmul.f32 %v1519, 0.5
  %v1522 = vmul.f32 %v1520, 0.5
  %v1523 = vtanh.pop %v1521
  %v1524 = vtanh.pop %v1522
  %v1525 = vmul.f32 %v1523, 0.5
  %v1526 = vmul.f32 %v1524, 0.5
  %v1527 = vadd.f32 %v1525, 0.5
  %v1528 = vadd.f32 %v1526, 0.5
  %v1529 = vtanh.pop %v1520
  %v1530 = vmul.f32 %v1527, 0.0
  %1532 = vrot.lane.b32.xlu0 %v1529, 64
  %v1533 = vpop.permute.xlu0 %1532
  %v1535 = vmul.f32 %v1527, %v1533
  %1537 = vrot.lane.b32.xlu0 %v1535, 64
  %v1538 = vpop.permute.xlu0 %1537
  %v1540 = vadd.f32 %v1530, %v1538
  %v1541 = vtanh.pop %v1540
  %1543 = vrot.lane.b32.xlu0 %v1541, 64
  %v1544 = vpop.permute.xlu0 %1543
  %v1546 = vmul.f32 %v1528, %v1544
  %v1547 = vsel %vm1155, %v1546, 0.0
  %v1548 = vpack.c.bf16 %v1547, %v1547
  %v1549 = vlaneseq
  %v1550 = vshrl.u32 %v1549, 7
  %v1551 = vsub.s32 0, %v1550
  %v1552 = vrot.slane %v30, %v1551
  %v1553 = vlaneseq
  %v1554 = vshrl.u32 %v1553, 7
  %v1555 = vsub.s32 0, %v1554
  %v1556 = vrot.slane %v31, %v1555
  %v1573 = vunpack.c.l.b16 %v1417
  %v1574 = vunpack.c.h.b16 %v1417
  %v1575 = vunpack.c.l.b16 %v1418
  %v1576 = vunpack.c.h.b16 %v1418
  %v1577 = vunpack.c.l.b16 %v1419
  %v1578 = vunpack.c.h.b16 %v1419
  %v1579 = vunpack.c.l.b16 %v1420
  %v1580 = vunpack.c.h.b16 %v1420
  %v1581 = vunpack.c.l.b16 %v1421
  %v1582 = vunpack.c.h.b16 %v1421
  %v1583 = vunpack.c.l.b16 %v1422
  %v1584 = vunpack.c.h.b16 %v1422
  %v1585 = vunpack.c.l.b16 %v1423
  %v1586 = vunpack.c.h.b16 %v1423
  %v1587 = vunpack.c.l.b16 %v1424
  %v1588 = vunpack.c.h.b16 %v1424
  %v1589 = vunpack.c.l.b16 %v1425
  %v1590 = vunpack.c.h.b16 %v1425
  %v1591 = vunpack.c.l.b16 %v1426
  %v1592 = vunpack.c.h.b16 %v1426
  %v1593 = vunpack.c.l.b16 %v1427
  %v1594 = vunpack.c.h.b16 %v1427
  %v1595 = vunpack.c.l.b16 %v1428
  %v1596 = vunpack.c.h.b16 %v1428
  %v1597 = vunpack.c.l.b16 %v1429
  %v1598 = vunpack.c.h.b16 %v1429
  %v1599 = vunpack.c.l.b16 %v1430
  %v1600 = vunpack.c.h.b16 %v1430
  %v1601 = vunpack.c.l.b16 %v1431
  %v1602 = vunpack.c.h.b16 %v1431
  %v1603 = vunpack.c.l.b16 %v1432
  %v1604 = vunpack.c.h.b16 %v1432
  %v1605 = vpack.c.b16 %v1575, %v1573
  %v1606 = vpack.c.b16 %v1576, %v1574
  %v1607 = vpack.c.b16 %v1579, %v1577
  %v1608 = vpack.c.b16 %v1580, %v1578
  %v1609 = vpack.c.b16 %v1583, %v1581
  %v1610 = vpack.c.b16 %v1584, %v1582
  %v1611 = vpack.c.b16 %v1587, %v1585
  %v1612 = vpack.c.b16 %v1588, %v1586
  %v1613 = vpack.c.b16 %v1591, %v1589
  %v1614 = vpack.c.b16 %v1592, %v1590
  %v1615 = vpack.c.b16 %v1595, %v1593
  %v1616 = vpack.c.b16 %v1596, %v1594
  %v1617 = vpack.c.b16 %v1599, %v1597
  %v1618 = vpack.c.b16 %v1600, %v1598
  %v1619 = vpack.c.b16 %v1603, %v1601
  %v1620 = vpack.c.b16 %v1604, %v1602
  %1637 = vmatprep.subr.bf16.mxu0 %v1620
  %1638 = vmatpush1.bf16.msra.mxu0 %v1619
  %1639 = vmatprep.subr.bf16.mxu0 %v1618
  %1640 = vmatpush1.bf16.msra.mxu0 %v1617
  %1641 = vmatprep.subr.bf16.mxu0 %v1616
  %1642 = vmatpush1.bf16.msra.mxu0 %v1615
  %1643 = vmatprep.subr.bf16.mxu0 %v1614
  %1644 = vmatpush1.bf16.msra.mxu0 %v1613
  %1645 = vmatprep.subr.bf16.mxu0 %v1612
  %1646 = vmatpush1.bf16.msra.mxu0 %v1611
  %1647 = vmatprep.subr.bf16.mxu0 %v1610
  %1648 = vmatpush1.bf16.msra.mxu0 %v1609
  %1649 = vmatprep.subr.bf16.mxu0 %v1608
  %1650 = vmatpush1.bf16.msra.mxu0 %v1607
  %1651 = vmatprep.subr.bf16.mxu0 %v1606
  %1652 = vmatpush1.bf16.msra.mxu0 %v1605
  %1653 = vmatprep.subr.bf16.mxu0 0
  %1654 = vmatpush2.bf16.msra.mxu0 0
  %1655 = vmatprep.subr.bf16.mxu0 0
  %1656 = vmatpush2.bf16.msra.mxu0 0
  %1657 = vmatprep.subr.bf16.mxu0 0
  %1658 = vmatpush2.bf16.msra.mxu0 0
  %1659 = vmatprep.subr.bf16.mxu0 0
  %1660 = vmatpush2.bf16.msra.mxu0 0
  %1661 = vmatprep.subr.bf16.mxu0 0
  %1662 = vmatpush2.bf16.msra.mxu0 0
  %1663 = vmatprep.subr.bf16.mxu0 0
  %1664 = vmatpush2.bf16.msra.mxu0 0
  %1665 = vmatprep.subr.bf16.mxu0 0
  %1666 = vmatpush2.bf16.msra.mxu0 0
  %1667 = vmatprep.subr.bf16.mxu0 0
  %1668 = vmatpush2.bf16.msra.mxu0 0
  %1669 = vmatprep.mubr.bf16.mxu0 0
  %1670 = vmatmul.mubr.bf16.gmra.mxu0 %v1548
  %v1671 = vpop.f32.mrf.mxu0
  %v1672 = vadd.f32 %v1552, %v1671
  %v1673 = vpop.f32.mrf.mxu0
  %v1674 = vadd.f32 %v1556, %v1673
  %v1675 = vpop.f32.mrf.mxu0
  %v1676 = vpop.f32.mrf.mxu0
  %1677 = vdwg.mxu0
  %v1678 = vmul.f32 %v1672, 0.5
  %v1679 = vmul.f32 %v1674, 0.5
  %v1680 = vtanh.pop %v1678
  %v1681 = vtanh.pop %v1679
  %v1682 = vmul.f32 %v1680, 0.5
  %v1683 = vmul.f32 %v1681, 0.5
  %v1684 = vadd.f32 %v1682, 0.5
  %v1685 = vadd.f32 %v1683, 0.5
  %v1686 = vtanh.pop %v1674
  %v1687 = vmul.f32 %v1684, 0.0
  %1689 = vrot.lane.b32.xlu0 %v1686, 64
  %v1690 = vpop.permute.xlu0 %1689
  %v1692 = vmul.f32 %v1684, %v1690
  %1694 = vrot.lane.b32.xlu0 %v1692, 64
  %v1695 = vpop.permute.xlu0 %1694
  %v1697 = vadd.f32 %v1687, %v1695
  %v1698 = vtanh.pop %v1697
  %1700 = vrot.lane.b32.xlu0 %v1698, 64
  %v1701 = vpop.permute.xlu0 %1700
  %v1703 = vmul.f32 %v1685, %v1701
  %v1704 = vlaneseq
  %v1705 = vshrl.u32 %v1704, 7
  %v1706 = vsub.s32 1, %v1705
  %v1707 = vrot.slane %v30, %v1706
  %v1708 = vmul.f32 %v1703, %v1707
  %vm1709 = vcmask 517120
  %v1710 = vsel %vm1709, %v1708, 0.0
  %1711 = vadd.xlane.f32.xlu0 %v1710
  %v1712 = vpop.xlane.xlu0 %1711
  %v1713 = vlaneseq
  %v1714 = vshrl.u32 %v1713, 7
  %v1715 = vsub.s32 2, %v1714
  %v1716 = vrot.slane %v30, %v1715
  %v1717 = vadd.f32 %v1712, %v1716
  %vm1718 = vcmask 1024
  %1719 = vst.msk [vmem:[%s7] sm:$0x3] %vm1718, %v1717
  %v1720 = vld [vmem:[#allocation2] sm:$0xc]
  %v1721 = vld [vmem:[#allocation2 + $0x8] sm:$0xc]
  %v1722 = vpack.c.bf16 %v1546, %v1546
  %v1724 = vsel %vm1155, %v1722, 0
  %1726 = vmatprep.subr.bf16.mxu0 0
  %1727 = vmatpush1.bf16.msra.mxu0 0
  %1728 = vmatprep.subr.bf16.mxu0 0
  %1729 = vmatpush1.bf16.msra.mxu0 0
  %1730 = vmatprep.subr.bf16.mxu0 0
  %1731 = vmatpush1.bf16.msra.mxu0 0
  %1732 = vmatprep.subr.bf16.mxu0 0
  %1733 = vmatpush1.bf16.msra.mxu0 0
  %1734 = vmatprep.subr.bf16.mxu0 %v1466
  %1735 = vmatpush1.bf16.msra.mxu0 %v1465
  %1736 = vmatprep.subr.bf16.mxu0 %v1464
  %1737 = vmatpush1.bf16.msra.mxu0 %v1463
  %1738 = vmatprep.subr.bf16.mxu0 %v1462
  %1739 = vmatpush1.bf16.msra.mxu0 %v1461
  %1740 = vmatprep.subr.bf16.mxu0 %v1460
  %1741 = vmatpush1.bf16.msra.mxu0 %v1459
  %1742 = vmatprep.subr.bf16.mxu0 0
  %1743 = vmatpush2.bf16.msra.mxu0 0
  %1744 = vmatprep.subr.bf16.mxu0 0
  %1745 = vmatpush2.bf16.msra.mxu0 0
  %1746 = vmatprep.subr.bf16.mxu0 0
  %1747 = vmatpush2.bf16.msra.mxu0 0
  %1748 = vmatprep.subr.bf16.mxu0 0
  %1749 = vmatpush2.bf16.msra.mxu0 0
  %1750 = vmatprep.subr.bf16.mxu0 0
  %1751 = vmatpush2.bf16.msra.mxu0 0
  %1752 = vmatprep.subr.bf16.mxu0 0
  %1753 = vmatpush2.bf16.msra.mxu0 0
  %1754 = vmatprep.subr.bf16.mxu0 0
  %1755 = vmatpush2.bf16.msra.mxu0 0
  %1756 = vmatprep.subr.bf16.mxu0 0
  %1757 = vmatpush2.bf16.msra.mxu0 0
  %1758 = vmatprep.mubr.bf16.mxu0 0
  %1759 = vmatmul.mubr.bf16.gmra.mxu0 %v1724
  %v1760 = vpop.f32.mrf.mxu0
  %v1761 = vadd.f32 0.0, %v1760
  %v1762 = vpop.f32.mrf.mxu0
  %v1763 = vadd.f32 0.0, %v1762
  %v1764 = vpop.f32.mrf.mxu0
  %v1765 = vpop.f32.mrf.mxu0
  %1766 = vdwg.mxu0
  %v1769 = vrot.slane %v1761, 6
  %v1770 = vrot.slane %v1763, 6
  %v1773 = vadd.f32 %v1720, %v1769
  %v1774 = vadd.f32 %v1721, %v1770
  %v1775 = vmul.f32 %v1773, 0.5
  %v1776 = vmul.f32 %v1774, 0.5
  %v1777 = vtanh.pop %v1775
  %v1778 = vtanh.pop %v1776
  %v1779 = vmul.f32 %v1777, 0.5
  %v1780 = vmul.f32 %v1778, 0.5
  %v1781 = vadd.f32 %v1779, 0.5
  %v1782 = vadd.f32 %v1780, 0.5
  %v1783 = vtanh.pop %v1774
  %v1785 = vrot.slane %v1540, 6
  %v1787 = vmul.f32 %v1781, %v1785
  %1789 = vrot.lane.b32.xlu0 %v1783, 64
  %v1790 = vpop.permute.xlu0 %1789
  %v1792 = vmul.f32 %v1781, %v1790
  %1794 = vrot.lane.b32.xlu0 %v1792, 64
  %v1795 = vpop.permute.xlu0 %1794
  %v1797 = vadd.f32 %v1787, %v1795
  %v1798 = vtanh.pop %v1797
  %1800 = vrot.lane.b32.xlu0 %v1798, 64
  %v1801 = vpop.permute.xlu0 %1800
  %v1803 = vmul.f32 %v1782, %v1801
  %v1805 = vrot.slane %v1703, 6
  %1806 = vrot.lane.b32.xlu0 %v1805, 64
  %v1807 = vpop.permute.xlu0 %1806
  %v1809 = vsel %vm1155, %v1803, %v1807
  %v1810 = vpack.c.bf16 %v1809, %v1809
  %v1812 = vrot.slane %v1810, 1
  %1814 = vmatprep.subr.bf16.mxu0 %v1620
  %1815 = vmatpush1.bf16.msra.mxu0 %v1619
  %1816 = vmatprep.subr.bf16.mxu0 %v1618
  %1817 = vmatpush1.bf16.msra.mxu0 %v1617
  %1818 = vmatprep.subr.bf16.mxu0 %v1616
  %1819 = vmatpush1.bf16.msra.mxu0 %v1615
  %1820 = vmatprep.subr.bf16.mxu0 %v1614
  %1821 = vmatpush1.bf16.msra.mxu0 %v1613
  %1822 = vmatprep.subr.bf16.mxu0 %v1612
  %1823 = vmatpush1.bf16.msra.mxu0 %v1611
  %1824 = vmatprep.subr.bf16.mxu0 %v1610
  %1825 = vmatpush1.bf16.msra.mxu0 %v1609
  %1826 = vmatprep.subr.bf16.mxu0 %v1608
  %1827 = vmatpush1.bf16.msra.mxu0 %v1607
  %1828 = vmatprep.subr.bf16.mxu0 %v1606
  %1829 = vmatpush1.bf16.msra.mxu0 %v1605
  %1830 = vmatprep.subr.bf16.mxu0 0
  %1831 = vmatpush2.bf16.msra.mxu0 0
  %1832 = vmatprep.subr.bf16.mxu0 0
  %1833 = vmatpush2.bf16.msra.mxu0 0
  %1834 = vmatprep.subr.bf16.mxu0 0
  %1835 = vmatpush2.bf16.msra.mxu0 0
  %1836 = vmatprep.subr.bf16.mxu0 0
  %1837 = vmatpush2.bf16.msra.mxu0 0
  %1838 = vmatprep.subr.bf16.mxu0 0
  %1839 = vmatpush2.bf16.msra.mxu0 0
  %1840 = vmatprep.subr.bf16.mxu0 0
  %1841 = vmatpush2.bf16.msra.mxu0 0
  %1842 = vmatprep.subr.bf16.mxu0 0
  %1843 = vmatpush2.bf16.msra.mxu0 0
  %1844 = vmatprep.subr.bf16.mxu0 0
  %1845 = vmatpush2.bf16.msra.mxu0 0
  %1846 = vmatprep.mubr.bf16.mxu0 0
  %1847 = vmatmul.mubr.bf16.gmra.mxu0 %v1812
  %v1848 = vpop.f32.mrf.mxu0
  %v1849 = vadd.f32 %v1552, %v1848
  %v1850 = vpop.f32.mrf.mxu0
  %v1851 = vadd.f32 %v1556, %v1850
  %v1852 = vpop.f32.mrf.mxu0
  %v1853 = vpop.f32.mrf.mxu0
  %1854 = vdwg.mxu0
  %v1855 = vmul.f32 %v1849, 0.5
  %v1856 = vmul.f32 %v1851, 0.5
  %v1857 = vtanh.pop %v1855
  %v1858 = vtanh.pop %v1856
  %v1859 = vmul.f32 %v1857, 0.5
  %v1860 = vmul.f32 %v1858, 0.5
  %v1861 = vadd.f32 %v1859, 0.5
  %v1862 = vadd.f32 %v1860, 0.5
  %v1863 = vtanh.pop %v1851
  %v1864 = vmul.f32 %v1861, %v1697
  %1866 = vrot.lane.b32.xlu0 %v1863, 64
  %v1867 = vpop.permute.xlu0 %1866
  %v1869 = vmul.f32 %v1861, %v1867
  %1871 = vrot.lane.b32.xlu0 %v1869, 64
  %v1872 = vpop.permute.xlu0 %1871
  %v1874 = vadd.f32 %v1864, %v1872
  %v1875 = vtanh.pop %v1874
  %1877 = vrot.lane.b32.xlu0 %v1875, 64
  %v1878 = vpop.permute.xlu0 %1877
  %v1880 = vmul.f32 %v1862, %v1878
  %v1881 = vmul.f32 %v1880, %v1707
  %v1882 = vsel %vm1709, %v1881, 0.0
  %1883 = vadd.xlane.f32.xlu0 %v1882
  %v1884 = vpop.xlane.xlu0 %1883
  %v1885 = vadd.f32 %v1884, %v1716
  %1886 = vst.msk [vmem:[%s7 + $0x2] sm:$0x3] %vm1718, %v1885
  %v1887 = vld [vmem:[#allocation2] sm:$0x30]
  %v1888 = vld [vmem:[#allocation2 + $0x8] sm:$0x30]
  %v1889 = vpack.c.bf16 %v1803, %v1803
  %v1891 = vrot.slane %v1889, 1
  %v1893 = vsel %vm1155, %v1891, 0
  %1895 = vmatprep.subr.bf16.mxu0 0
  %1896 = vmatpush1.bf16.msra.mxu0 0
  %1897 = vmatprep.subr.bf16.mxu0 0
  %1898 = vmatpush1.bf16.msra.mxu0 0
  %1899 = vmatprep.subr.bf16.mxu0 0
  %1900 = vmatpush1.bf16.msra.mxu0 0
  %1901 = vmatprep.subr.bf16.mxu0 0
  %1902 = vmatpush1.bf16.msra.mxu0 0
  %1903 = vmatprep.subr.bf16.mxu0 %v1466
  %1904 = vmatpush1.bf16.msra.mxu0 %v1465
  %1905 = vmatprep.subr.bf16.mxu0 %v1464
  %1906 = vmatpush1.bf16.msra.mxu0 %v1463
  %1907 = vmatprep.subr.bf16.mxu0 %v1462
  %1908 = vmatpush1.bf16.msra.mxu0 %v1461
  %1909 = vmatprep.subr.bf16.mxu0 %v1460
  %1910 = vmatpush1.bf16.msra.mxu0 %v1459
  %1911 = vmatprep.subr.bf16.mxu0 0
  %1912 = vmatpush2.bf16.msra.mxu0 0
  %1913 = vmatprep.subr.bf16.mxu0 0
  %1914 = vmatpush2.bf16.msra.mxu0 0
  %1915 = vmatprep.subr.bf16.mxu0 0
  %1916 = vmatpush2.bf16.msra.mxu0 0
  %1917 = vmatprep.subr.bf16.mxu0 0
  %1918 = vmatpush2.bf16.msra.mxu0 0
  %1919 = vmatprep.subr.bf16.mxu0 0
  %1920 = vmatpush2.bf16.msra.mxu0 0
  %1921 = vmatprep.subr.bf16.mxu0 0
  %1922 = vmatpush2.bf16.msra.mxu0 0
  %1923 = vmatprep.subr.bf16.mxu0 0
  %1924 = vmatpush2.bf16.msra.mxu0 0
  %1925 = vmatprep.subr.bf16.mxu0 0
  %1926 = vmatpush2.bf16.msra.mxu0 0
  %1927 = vmatprep.mubr.bf16.mxu0 0
  %1928 = vmatmul.mubr.bf16.gmra.mxu0 %v1893
  %v1929 = vpop.f32.mrf.mxu0
  %v1930 = vadd.f32 0.0, %v1929
  %v1931 = vpop.f32.mrf.mxu0
  %v1932 = vadd.f32 0.0, %v1931
  %v1933 = vpop.f32.mrf.mxu0
  %v1934 = vpop.f32.mrf.mxu0
  %1935 = vdwg.mxu0
  %v1938 = vrot.slane %v1930, 4
  %v1939 = vrot.slane %v1932, 4
  %v1942 = vadd.f32 %v1887, %v1938
  %v1943 = vadd.f32 %v1888, %v1939
  %v1944 = vmul.f32 %v1942, 0.5
  %v1945 = vmul.f32 %v1943, 0.5
  %v1946 = vtanh.pop %v1944
  %v1947 = vtanh.pop %v1945
  %v1948 = vmul.f32 %v1946, 0.5
  %v1949 = vmul.f32 %v1947, 0.5
  %v1950 = vadd.f32 %v1948, 0.5
  %v1951 = vadd.f32 %v1949, 0.5
  %v1952 = vtanh.pop %v1943
  %v1954 = vrot.slane %v1797, 6
  %v1956 = vmul.f32 %v1950, %v1954
  %1958 = vrot.lane.b32.xlu0 %v1952, 64
  %v1959 = vpop.permute.xlu0 %1958
  %v1961 = vmul.f32 %v1950, %v1959
  %1963 = vrot.lane.b32.xlu0 %v1961, 64
  %v1964 = vpop.permute.xlu0 %1963
  %v1966 = vadd.f32 %v1956, %v1964
  %v1967 = vtanh.pop %v1966
  %1969 = vrot.lane.b32.xlu0 %v1967, 64
  %v1970 = vpop.permute.xlu0 %1969
  %v1972 = vmul.f32 %v1951, %v1970
  %v1974 = vrot.slane %v1880, 4
  %1975 = vrot.lane.b32.xlu0 %v1974, 64
  %v1976 = vpop.permute.xlu0 %1975
  %v1978 = vsel %vm1155, %v1972, %v1976
  %v1979 = vpack.c.bf16 %v1978, %v1978
  %v1981 = vrot.slane %v1979, 2
  %1983 = vmatprep.subr.bf16.mxu0 %v1620
  %1984 = vmatpush1.bf16.msra.mxu0 %v1619
  %1985 = vmatprep.subr.bf16.mxu0 %v1618
  %1986 = vmatpush1.bf16.msra.mxu0 %v1617
  %1987 = vmatprep.subr.bf16.mxu0 %v1616
  %1988 = vmatpush1.bf16.msra.mxu0 %v1615
  %1989 = vmatprep.subr.bf16.mxu0 %v1614
  %1990 = vmatpush1.bf16.msra.mxu0 %v1613
  %1991 = vmatprep.subr.bf16.mxu0 %v1612
  %1992 = vmatpush1.bf16.msra.mxu0 %v1611
  %1993 = vmatprep.subr.bf16.mxu0 %v1610
  %1994 = vmatpush1.bf16.msra.mxu0 %v1609
  %1995 = vmatprep.subr.bf16.mxu0 %v1608
  %1996 = vmatpush1.bf16.msra.mxu0 %v1607
  %1997 = vmatprep.subr.bf16.mxu0 %v1606
  %1998 = vmatpush1.bf16.msra.mxu0 %v1605
  %1999 = vmatprep.subr.bf16.mxu0 0
  %2000 = vmatpush2.bf16.msra.mxu0 0
  %2001 = vmatprep.subr.bf16.mxu0 0
  %2002 = vmatpush2.bf16.msra.mxu0 0
  %2003 = vmatprep.subr.bf16.mxu0 0
  %2004 = vmatpush2.bf16.msra.mxu0 0
  %2005 = vmatprep.subr.bf16.mxu0 0
  %2006 = vmatpush2.bf16.msra.mxu0 0
  %2007 = vmatprep.subr.bf16.mxu0 0
  %2008 = vmatpush2.bf16.msra.mxu0 0
  %2009 = vmatprep.subr.bf16.mxu0 0
  %2010 = vmatpush2.bf16.msra.mxu0 0
  %2011 = vmatprep.subr.bf16.mxu0 0
  %2012 = vmatpush2.bf16.msra.mxu0 0
  %2013 = vmatprep.subr.bf16.mxu0 0
  %2014 = vmatpush2.bf16.msra.mxu0 0
  %2015 = vmatprep.mubr.bf16.mxu0 0
  %2016 = vmatmul.mubr.bf16.gmra.mxu0 %v1981
  %v2017 = vpop.f32.mrf.mxu0
  %v2018 = vadd.f32 %v1552, %v2017
  %v2019 = vpop.f32.mrf.mxu0
  %v2020 = vadd.f32 %v1556, %v2019
  %v2021 = vpop.f32.mrf.mxu0
  %v2022 = vpop.f32.mrf.mxu0
  %2023 = vdwg.mxu0
  %v2024 = vmul.f32 %v2018, 0.5
  %v2025 = vmul.f32 %v2020, 0.5
  %v2026 = vtanh.pop %v2024
  %v2027 = vtanh.pop %v2025
  %v2028 = vmul.f32 %v2026, 0.5
  %v2029 = vmul.f32 %v2027, 0.5
  %v2030 = vadd.f32 %v2028, 0.5
  %v2031 = vadd.f32 %v2029, 0.5
  %v2032 = vtanh.pop %v2020
  %v2033 = vmul.f32 %v2030, %v1874
  %2035 = vrot.lane.b32.xlu0 %v2032, 64
  %v2036 = vpop.permute.xlu0 %2035
  %v2038 = vmul.f32 %v2030, %v2036
  %2040 = vrot.lane.b32.xlu0 %v2038, 64
  %v2041 = vpop.permute.xlu0 %2040
  %v2043 = vadd.f32 %v2033, %v2041
  %v2044 = vtanh.pop %v2043
  %2046 = vrot.lane.b32.xlu0 %v2044, 64
  %v2047 = vpop.permute.xlu0 %2046
  %v2049 = vmul.f32 %v2031, %v2047
  %v2050 = vmul.f32 %v2049, %v1707
  %v2051 = vsel %vm1709, %v2050, 0.0
  %2052 = vadd.xlane.f32.xlu0 %v2051
  %v2053 = vpop.xlane.xlu0 %2052
  %v2054 = vadd.f32 %v2053, %v1716
  %2055 = vst.msk [vmem:[%s7 + $0x4] sm:$0x3] %vm1718, %v2054
  %v2056 = vld [vmem:[#allocation2] sm:$0xc0]
  %v2057 = vld [vmem:[#allocation2 + $0x8] sm:$0xc0]
  %v2058 = vpack.c.bf16 %v1972, %v1972
  %v2060 = vrot.slane %v2058, 2
  %v2062 = vsel %vm1155, %v2060, 0
  %2064 = vmatprep.subr.bf16.mxu0 0
  %2065 = vmatpush1.bf16.msra.mxu0 0
  %2066 = vmatprep.subr.bf16.mxu0 0
  %2067 = vmatpush1.bf16.msra.mxu0 0
  %2068 = vmatprep.subr.bf16.mxu0 0
  %2069 = vmatpush1.bf16.msra.mxu0 0
  %2070 = vmatprep.subr.bf16.mxu0 0
  %2071 = vmatpush1.bf16.msra.mxu0 0
  %2072 = vmatprep.subr.bf16.mxu0 %v1466
  %2073 = vmatpush1.bf16.msra.mxu0 %v1465
  %2074 = vmatprep.subr.bf16.mxu0 %v1464
  %2075 = vmatpush1.bf16.msra.mxu0 %v1463
  %2076 = vmatprep.subr.bf16.mxu0 %v1462
  %2077 = vmatpush1.bf16.msra.mxu0 %v1461
  %2078 = vmatprep.subr.bf16.mxu0 %v1460
  %2079 = vmatpush1.bf16.msra.mxu0 %v1459
  %2080 = vmatprep.subr.bf16.mxu0 0
  %2081 = vmatpush2.bf16.msra.mxu0 0
  %2082 = vmatprep.subr.bf16.mxu0 0
  %2083 = vmatpush2.bf16.msra.mxu0 0
  %2084 = vmatprep.subr.bf16.mxu0 0
  %2085 = vmatpush2.bf16.msra.mxu0 0
  %2086 = vmatprep.subr.bf16.mxu0 0
  %2087 = vmatpush2.bf16.msra.mxu0 0
  %2088 = vmatprep.subr.bf16.mxu0 0
  %2089 = vmatpush2.bf16.msra.mxu0 0
  %2090 = vmatprep.subr.bf16.mxu0 0
  %2091 = vmatpush2.bf16.msra.mxu0 0
  %2092 = vmatprep.subr.bf16.mxu0 0
  %2093 = vmatpush2.bf16.msra.mxu0 0
  %2094 = vmatprep.subr.bf16.mxu0 0
  %2095 = vmatpush2.bf16.msra.mxu0 0
  %2096 = vmatprep.mubr.bf16.mxu0 0
  %2097 = vmatmul.mubr.bf16.gmra.mxu0 %v2062
  %v2098 = vpop.f32.mrf.mxu0
  %v2099 = vadd.f32 0.0, %v2098
  %v2100 = vpop.f32.mrf.mxu0
  %v2101 = vadd.f32 0.0, %v2100
  %v2102 = vpop.f32.mrf.mxu0
  %v2103 = vpop.f32.mrf.mxu0
  %2104 = vdwg.mxu0
  %v2107 = vrot.slane %v2099, 2
  %v2108 = vrot.slane %v2101, 2
  %v2111 = vadd.f32 %v2056, %v2107
  %v2112 = vadd.f32 %v2057, %v2108
  %v2113 = vmul.f32 %v2111, 0.5
  %v2114 = vmul.f32 %v2112, 0.5
  %v2115 = vtanh.pop %v2113
  %v2116 = vtanh.pop %v2114
  %v2117 = vmul.f32 %v2115, 0.5
  %v2118 = vmul.f32 %v2116, 0.5
  %v2119 = vadd.f32 %v2117, 0.5
  %v2120 = vadd.f32 %v2118, 0.5
  %v2121 = vtanh.pop %v2112
  %v2123 = vrot.slane %v1966, 6
  %v2125 = vmul.f32 %v2119, %v2123
  %2127 = vrot.lane.b32.xlu0 %v2121, 64
  %v2128 = vpop.permute.xlu0 %2127
  %v2130 = vmul.f32 %v2119, %v2128
  %2132 = vrot.lane.b32.xlu0 %v2130, 64
  %v2133 = vpop.permute.xlu0 %2132
  %v2135 = vadd.f32 %v2125, %v2133
  %v2136 = vtanh.pop %v2135
  %2138 = vrot.lane.b32.xlu0 %v2136, 64
  %v2139 = vpop.permute.xlu0 %2138
  %v2141 = vmul.f32 %v2120, %v2139
  %v2143 = vrot.slane %v2049, 2
  %2144 = vrot.lane.b32.xlu0 %v2143, 64
  %v2145 = vpop.permute.xlu0 %2144
  %v2147 = vsel %vm1155, %v2141, %v2145
  %v2148 = vpack.c.bf16 %v2147, %v2147
  %v2150 = vrot.slane %v2148, 3
  %2152 = vmatprep.subr.bf16.mxu0 %v1620
  %2153 = vmatpush1.bf16.msra.mxu0 %v1619
  %2154 = vmatprep.subr.bf16.mxu0 %v1618
  %2155 = vmatpush1.bf16.msra.mxu0 %v1617
  %2156 = vmatprep.subr.bf16.mxu0 %v1616
  %2157 = vmatpush1.bf16.msra.mxu0 %v1615
  %2158 = vmatprep.subr.bf16.mxu0 %v1614
  %2159 = vmatpush1.bf16.msra.mxu0 %v1613
  %2160 = vmatprep.subr.bf16.mxu0 %v1612
  %2161 = vmatpush1.bf16.msra.mxu0 %v1611
  %2162 = vmatprep.subr.bf16.mxu0 %v1610
  %2163 = vmatpush1.bf16.msra.mxu0 %v1609
  %2164 = vmatprep.subr.bf16.mxu0 %v1608
  %2165 = vmatpush1.bf16.msra.mxu0 %v1607
  %2166 = vmatprep.subr.bf16.mxu0 %v1606
  %2167 = vmatpush1.bf16.msra.mxu0 %v1605
  %2168 = vmatprep.subr.bf16.mxu0 0
  %2169 = vmatpush2.bf16.msra.mxu0 0
  %2170 = vmatprep.subr.bf16.mxu0 0
  %2171 = vmatpush2.bf16.msra.mxu0 0
  %2172 = vmatprep.subr.bf16.mxu0 0
  %2173 = vmatpush2.bf16.msra.mxu0 0
  %2174 = vmatprep.subr.bf16.mxu0 0
  %2175 = vmatpush2.bf16.msra.mxu0 0
  %2176 = vmatprep.subr.bf16.mxu0 0
  %2177 = vmatpush2.bf16.msra.mxu0 0
  %2178 = vmatprep.subr.bf16.mxu0 0
  %2179 = vmatpush2.bf16.msra.mxu0 0
  %2180 = vmatprep.subr.bf16.mxu0 0
  %2181 = vmatpush2.bf16.msra.mxu0 0
  %2182 = vmatprep.subr.bf16.mxu0 0
  %2183 = vmatpush2.bf16.msra.mxu0 0
  %2184 = vmatprep.mubr.bf16.mxu0 0
  %2185 = vmatmul.mubr.bf16.gmra.mxu0 %v2150
  %v2186 = vpop.f32.mrf.mxu0
  %v2187 = vadd.f32 %v1552, %v2186
  %v2188 = vpop.f32.mrf.mxu0
  %v2189 = vadd.f32 %v1556, %v2188
  %v2190 = vpop.f32.mrf.mxu0
  %v2191 = vpop.f32.mrf.mxu0
  %2192 = vdwg.mxu0
  %v2193 = vmul.f32 %v2187, 0.5
  %v2194 = vmul.f32 %v2189, 0.5
  %v2195 = vtanh.pop %v2193
  %v2196 = vtanh.pop %v2194
  %v2197 = vmul.f32 %v2195, 0.5
  %v2198 = vmul.f32 %v2196, 0.5
  %v2199 = vadd.f32 %v2197, 0.5
  %v2200 = vadd.f32 %v2198, 0.5
  %v2201 = vtanh.pop %v2189
  %v2202 = vmul.f32 %v2199, %v2043
  %2204 = vrot.lane.b32.xlu0 %v2201, 64
  %v2205 = vpop.permute.xlu0 %2204
  %v2207 = vmul.f32 %v2199, %v2205
  %2209 = vrot.lane.b32.xlu0 %v2207, 64
  %v2210 = vpop.permute.xlu0 %2209
  %v2212 = vadd.f32 %v2202, %v2210
  %v2213 = vtanh.pop %v2212
  %2215 = vrot.lane.b32.xlu0 %v2213, 64
  %v2216 = vpop.permute.xlu0 %2215
  %v2218 = vmul.f32 %v2200, %v2216
  %v2219 = vmul.f32 %v2218, %v1707
  %v2220 = vsel %vm1709, %v2219, 0.0
  %2221 = vadd.xlane.f32.xlu0 %v2220
  %v2222 = vpop.xlane.xlu0 %2221
  %v2223 = vadd.f32 %v2222, %v1716
  %2224 = vst.msk [vmem:[%s7 + $0x6] sm:$0x3] %vm1718, %v2223
  %v2225 = vld [vmem:[#allocation2 + $0x10] sm:$0x3]
  %v2226 = vld [vmem:[#allocation2 + $0x18] sm:$0x3]
  %v2227 = vpack.c.bf16 %v2141, %v2141
  %v2229 = vrot.slane %v2227, 3
  %v2231 = vsel %vm1155, %v2229, 0
  %2233 = vmatprep.subr.bf16.mxu0 0
  %2234 = vmatpush1.bf16.msra.mxu0 0
  %2235 = vmatprep.subr.bf16.mxu0 0
  %2236 = vmatpush1.bf16.msra.mxu0 0
  %2237 = vmatprep.subr.bf16.mxu0 0
  %2238 = vmatpush1.bf16.msra.mxu0 0
  %2239 = vmatprep.subr.bf16.mxu0 0
  %2240 = vmatpush1.bf16.msra.mxu0 0
  %2241 = vmatprep.subr.bf16.mxu0 %v1466
  %2242 = vmatpush1.bf16.msra.mxu0 %v1465
  %2243 = vmatprep.subr.bf16.mxu0 %v1464
  %2244 = vmatpush1.bf16.msra.mxu0 %v1463
  %2245 = vmatprep.subr.bf16.mxu0 %v1462
  %2246 = vmatpush1.bf16.msra.mxu0 %v1461
  %2247 = vmatprep.subr.bf16.mxu0 %v1460
  %2248 = vmatpush1.bf16.msra.mxu0 %v1459
  %2249 = vmatprep.subr.bf16.mxu0 0
  %2250 = vmatpush2.bf16.msra.mxu0 0
  %2251 = vmatprep.subr.bf16.mxu0 0
  %2252 = vmatpush2.bf16.msra.mxu0 0
  %2253 = vmatprep.subr.bf16.mxu0 0
  %2254 = vmatpush2.bf16.msra.mxu0 0
  %2255 = vmatprep.subr.bf16.mxu0 0
  %2256 = vmatpush2.bf16.msra.mxu0 0
  %2257 = vmatprep.subr.bf16.mxu0 0
  %2258 = vmatpush2.bf16.msra.mxu0 0
  %2259 = vmatprep.subr.bf16.mxu0 0
  %2260 = vmatpush2.bf16.msra.mxu0 0
  %2261 = vmatprep.subr.bf16.mxu0 0
  %2262 = vmatpush2.bf16.msra.mxu0 0
  %2263 = vmatprep.subr.bf16.mxu0 0
  %2264 = vmatpush2.bf16.msra.mxu0 0
  %2265 = vmatprep.mubr.bf16.mxu0 0
  %2266 = vmatmul.mubr.bf16.gmra.mxu0 %v2231
  %v2267 = vpop.f32.mrf.mxu0
  %v2268 = vadd.f32 0.0, %v2267
  %v2269 = vpop.f32.mrf.mxu0
  %v2270 = vadd.f32 0.0, %v2269
  %v2271 = vpop.f32.mrf.mxu0
  %v2272 = vpop.f32.mrf.mxu0
  %2273 = vdwg.mxu0
  %v2274 = vadd.f32 %v2225, %v2268
  %v2275 = vadd.f32 %v2226, %v2270
  %v2276 = vmul.f32 %v2274, 0.5
  %v2277 = vmul.f32 %v2275, 0.5
  %v2278 = vtanh.pop %v2276
  %v2279 = vtanh.pop %v2277
  %v2280 = vmul.f32 %v2278, 0.5
  %v2281 = vmul.f32 %v2279, 0.5
  %v2282 = vadd.f32 %v2280, 0.5
  %v2283 = vadd.f32 %v2281, 0.5
  %v2284 = vtanh.pop %v2275
  %v2286 = vrot.slane %v2135, 6
  %v2288 = vmul.f32 %v2282, %v2286
  %2290 = vrot.lane.b32.xlu0 %v2284, 64
  %v2291 = vpop.permute.xlu0 %2290
  %v2293 = vmul.f32 %v2282, %v2291
  %2295 = vrot.lane.b32.xlu0 %v2293, 64
  %v2296 = vpop.permute.xlu0 %2295
  %v2298 = vadd.f32 %v2288, %v2296
  %v2299 = vtanh.pop %v2298
  %2301 = vrot.lane.b32.xlu0 %v2299, 64
  %v2302 = vpop.permute.xlu0 %2301
  %v2304 = vmul.f32 %v2283, %v2302
  %2306 = vrot.lane.b32.xlu0 %v2218, 64
  %v2307 = vpop.permute.xlu0 %2306
  %v2309 = vsel %vm1155, %v2304, %v2307
  %v2310 = vpack.c.bf16 %v2309, %v2309
  %2311 = vmatprep.subr.bf16.mxu0 %v1620
  %2312 = vmatpush1.bf16.msra.mxu0 %v1619
  %2313 = vmatprep.subr.bf16.mxu0 %v1618
  %2314 = vmatpush1.bf16.msra.mxu0 %v1617
  %2315 = vmatprep.subr.bf16.mxu0 %v1616
  %2316 = vmatpush1.bf16.msra.mxu0 %v1615
  %2317 = vmatprep.subr.bf16.mxu0 %v1614
  %2318 = vmatpush1.bf16.msra.mxu0 %v1613
  %2319 = vmatprep.subr.bf16.mxu0 %v1612
  %2320 = vmatpush1.bf16.msra.mxu0 %v1611
  %2321 = vmatprep.subr.bf16.mxu0 %v1610
  %2322 = vmatpush1.bf16.msra.mxu0 %v1609
  %2323 = vmatprep.subr.bf16.mxu0 %v1608
  %2324 = vmatpush1.bf16.msra.mxu0 %v1607
  %2325 = vmatprep.subr.bf16.mxu0 %v1606
  %2326 = vmatpush1.bf16.msra.mxu0 %v1605
  %2327 = vmatprep.subr.bf16.mxu0 0
  %2328 = vmatpush2.bf16.msra.mxu0 0
  %2329 = vmatprep.subr.bf16.mxu0 0
  %2330 = vmatpush2.bf16.msra.mxu0 0
  %2331 = vmatprep.subr.bf16.mxu0 0
  %2332 = vmatpush2.bf16.msra.mxu0 0
  %2333 = vmatprep.subr.bf16.mxu0 0
  %2334 = vmatpush2.bf16.msra.mxu0 0
  %2335 = vmatprep.subr.bf16.mxu0 0
  %2336 = vmatpush2.bf16.msra.mxu0 0
  %2337 = vmatprep.subr.bf16.mxu0 0
  %2338 = vmatpush2.bf16.msra.mxu0 0
  %2339 = vmatprep.subr.bf16.mxu0 0
  %2340 = vmatpush2.bf16.msra.mxu0 0
  %2341 = vmatprep.subr.bf16.mxu0 0
  %2342 = vmatpush2.bf16.msra.mxu0 0
  %2343 = vmatprep.mubr.bf16.mxu0 0
  %2344 = vmatmul.mubr.bf16.gmra.mxu0 %v2310
  %v2345 = vpop.f32.mrf.mxu0
  %v2346 = vadd.f32 %v1552, %v2345
  %v2347 = vpop.f32.mrf.mxu0
  %v2348 = vadd.f32 %v1556, %v2347
  %v2349 = vpop.f32.mrf.mxu0
  %v2350 = vpop.f32.mrf.mxu0
  %2351 = vdwg.mxu0
  %v2352 = vmul.f32 %v2346, 0.5
  %v2353 = vmul.f32 %v2348, 0.5
  %v2354 = vtanh.pop %v2352
  %v2355 = vtanh.pop %v2353
  %v2356 = vmul.f32 %v2354, 0.5
  %v2357 = vmul.f32 %v2355, 0.5
  %v2358 = vadd.f32 %v2356, 0.5
  %v2359 = vadd.f32 %v2357, 0.5
  %v2360 = vtanh.pop %v2348
  %v2361 = vmul.f32 %v2358, %v2212
  %2363 = vrot.lane.b32.xlu0 %v2360, 64
  %v2364 = vpop.permute.xlu0 %2363
  %v2366 = vmul.f32 %v2358, %v2364
  %2368 = vrot.lane.b32.xlu0 %v2366, 64
  %v2369 = vpop.permute.xlu0 %2368
  %v2371 = vadd.f32 %v2361, %v2369
  %v2372 = vtanh.pop %v2371
  %2374 = vrot.lane.b32.xlu0 %v2372, 64
  %v2375 = vpop.permute.xlu0 %2374
  %v2377 = vmul.f32 %v2359, %v2375
  %v2378 = vmul.f32 %v2377, %v1707
  %v2379 = vsel %vm1709, %v2378, 0.0
  %2380 = vadd.xlane.f32.xlu0 %v2379
  %v2381 = vpop.xlane.xlu0 %2380
  %v2382 = vadd.f32 %v2381, %v1716
  %2383 = vst.msk [vmem:[%s7 + $0x8] sm:$0x3] %vm1718, %v2382
  %v2384 = vld [vmem:[#allocation2 + $0x10] sm:$0xc]
  %v2385 = vld [vmem:[#allocation2 + $0x18] sm:$0xc]
  %v2386 = vpack.c.bf16 %v2304, %v2304
  %v2388 = vsel %vm1155, %v2386, 0
  %2390 = vmatprep.subr.bf16.mxu0 0
  %2391 = vmatpush1.bf16.msra.mxu0 0
  %2392 = vmatprep.subr.bf16.mxu0 0
  %2393 = vmatpush1.bf16.msra.mxu0 0
  %2394 = vmatprep.subr.bf16.mxu0 0
  %2395 = vmatpush1.bf16.msra.mxu0 0
  %2396 = vmatprep.subr.bf16.mxu0 0
  %2397 = vmatpush1.bf16.msra.mxu0 0
  %2398 = vmatprep.subr.bf16.mxu0 %v1466
  %2399 = vmatpush1.bf16.msra.mxu0 %v1465
  %2400 = vmatprep.subr.bf16.mxu0 %v1464
  %2401 = vmatpush1.bf16.msra.mxu0 %v1463
  %2402 = vmatprep.subr.bf16.mxu0 %v1462
  %2403 = vmatpush1.bf16.msra.mxu0 %v1461
  %2404 = vmatprep.subr.bf16.mxu0 %v1460
  %2405 = vmatpush1.bf16.msra.mxu0 %v1459
  %2406 = vmatprep.subr.bf16.mxu0 0
  %2407 = vmatpush2.bf16.msra.mxu0 0
  %2408 = vmatprep.subr.bf16.mxu0 0
  %2409 = vmatpush2.bf16.msra.mxu0 0
  %2410 = vmatprep.subr.bf16.mxu0 0
  %2411 = vmatpush2.bf16.msra.mxu0 0
  %2412 = vmatprep.subr.bf16.mxu0 0
  %2413 = vmatpush2.bf16.msra.mxu0 0
  %2414 = vmatprep.subr.bf16.mxu0 0
  %2415 = vmatpush2.bf16.msra.mxu0 0
  %2416 = vmatprep.subr.bf16.mxu0 0
  %2417 = vmatpush2.bf16.msra.mxu0 0
  %2418 = vmatprep.subr.bf16.mxu0 0
  %2419 = vmatpush2.bf16.msra.mxu0 0
  %2420 = vmatprep.subr.bf16.mxu0 0
  %2421 = vmatpush2.bf16.msra.mxu0 0
  %2422 = vmatprep.mubr.bf16.mxu0 0
  %2423 = vmatmul.mubr.bf16.gmra.mxu0 %v2388
  %v2424 = vpop.f32.mrf.mxu0
  %v2425 = vadd.f32 0.0, %v2424
  %v2426 = vpop.f32.mrf.mxu0
  %v2427 = vadd.f32 0.0, %v2426
  %v2428 = vpop.f32.mrf.mxu0
  %v2429 = vpop.f32.mrf.mxu0
  %2430 = vdwg.mxu0
  %v2433 = vrot.slane %v2425, 6
  %v2434 = vrot.slane %v2427, 6
  %v2437 = vadd.f32 %v2384, %v2433
  %v2438 = vadd.f32 %v2385, %v2434
  %v2439 = vmul.f32 %v2437, 0.5
  %v2440 = vmul.f32 %v2438, 0.5
  %v2441 = vtanh.pop %v2439
  %v2442 = vtanh.pop %v2440
  %v2443 = vmul.f32 %v2441, 0.5
  %v2444 = vmul.f32 %v2442, 0.5
  %v2445 = vadd.f32 %v2443, 0.5
  %v2446 = vadd.f32 %v2444, 0.5
  %v2447 = vtanh.pop %v2438
  %v2449 = vrot.slane %v2298, 6
  %v2451 = vmul.f32 %v2445, %v2449
  %2453 = vrot.lane.b32.xlu0 %v2447, 64
  %v2454 = vpop.permute.xlu0 %2453
  %v2456 = vmul.f32 %v2445, %v2454
  %2458 = vrot.lane.b32.xlu0 %v2456, 64
  %v2459 = vpop.permute.xlu0 %2458
  %v2461 = vadd.f32 %v2451, %v2459
  %v2462 = vtanh.pop %v2461
  %2464 = vrot.lane.b32.xlu0 %v2462, 64
  %v2465 = vpop.permute.xlu0 %2464
  %v2467 = vmul.f32 %v2446, %v2465
  %v2469 = vrot.slane %v2377, 6
  %2470 = vrot.lane.b32.xlu0 %v2469, 64
  %v2471 = vpop.permute.xlu0 %2470
  %v2473 = vsel %vm1155, %v2467, %v2471
  %v2474 = vpack.c.bf16 %v2473, %v2473
  %v2476 = vrot.slane %v2474, 1
  %2478 = vmatprep.subr.bf16.mxu0 %v1620
  %2479 = vmatpush1.bf16.msra.mxu0 %v1619
  %2480 = vmatprep.subr.bf16.mxu0 %v1618
  %2481 = vmatpush1.bf16.msra.mxu0 %v1617
  %2482 = vmatprep.subr.bf16.mxu0 %v1616
  %2483 = vmatpush1.bf16.msra.mxu0 %v1615
  %2484 = vmatprep.subr.bf16.mxu0 %v1614
  %2485 = vmatpush1.bf16.msra.mxu0 %v1613
  %2486 = vmatprep.subr.bf16.mxu0 %v1612
  %2487 = vmatpush1.bf16.msra.mxu0 %v1611
  %2488 = vmatprep.subr.bf16.mxu0 %v1610
  %2489 = vmatpush1.bf16.msra.mxu0 %v1609
  %2490 = vmatprep.subr.bf16.mxu0 %v1608
  %2491 = vmatpush1.bf16.msra.mxu0 %v1607
  %2492 = vmatprep.subr.bf16.mxu0 %v1606
  %2493 = vmatpush1.bf16.msra.mxu0 %v1605
  %2494 = vmatprep.subr.bf16.mxu0 0
  %2495 = vmatpush2.bf16.msra.mxu0 0
  %2496 = vmatprep.subr.bf16.mxu0 0
  %2497 = vmatpush2.bf16.msra.mxu0 0
  %2498 = vmatprep.subr.bf16.mxu0 0
  %2499 = vmatpush2.bf16.msra.mxu0 0
  %2500 = vmatprep.subr.bf16.mxu0 0
  %2501 = vmatpush2.bf16.msra.mxu0 0
  %2502 = vmatprep.subr.bf16.mxu0 0
  %2503 = vmatpush2.bf16.msra.mxu0 0
  %2504 = vmatprep.subr.bf16.mxu0 0
  %2505 = vmatpush2.bf16.msra.mxu0 0
  %2506 = vmatprep.subr.bf16.mxu0 0
  %2507 = vmatpush2.bf16.msra.mxu0 0
  %2508 = vmatprep.subr.bf16.mxu0 0
  %2509 = vmatpush2.bf16.msra.mxu0 0
  %2510 = vmatprep.mubr.bf16.mxu0 0
  %2511 = vmatmul.mubr.bf16.gmra.mxu0 %v2476
  %v2512 = vpop.f32.mrf.mxu0
  %v2513 = vadd.f32 %v1552, %v2512
  %v2514 = vpop.f32.mrf.mxu0
  %v2515 = vadd.f32 %v1556, %v2514
  %v2516 = vpop.f32.mrf.mxu0
  %v2517 = vpop.f32.mrf.mxu0
  %2518 = vdwg.mxu0
  %v2519 = vmul.f32 %v2513, 0.5
  %v2520 = vmul.f32 %v2515, 0.5
  %v2521 = vtanh.pop %v2519
  %v2522 = vtanh.pop %v2520
  %v2523 = vmul.f32 %v2521, 0.5
  %v2524 = vmul.f32 %v2522, 0.5
  %v2525 = vadd.f32 %v2523, 0.5
  %v2526 = vadd.f32 %v2524, 0.5
  %v2527 = vtanh.pop %v2515
  %v2528 = vmul.f32 %v2525, %v2371
  %2530 = vrot.lane.b32.xlu0 %v2527, 64
  %v2531 = vpop.permute.xlu0 %2530
  %v2533 = vmul.f32 %v2525, %v2531
  %2535 = vrot.lane.b32.xlu0 %v2533, 64
  %v2536 = vpop.permute.xlu0 %2535
  %v2538 = vadd.f32 %v2528, %v2536
  %v2539 = vtanh.pop %v2538
  %2541 = vrot.lane.b32.xlu0 %v2539, 64
  %v2542 = vpop.permute.xlu0 %2541
  %v2544 = vmul.f32 %v2526, %v2542
  %v2545 = vmul.f32 %v2544, %v1707
  %v2546 = vsel %vm1709, %v2545, 0.0
  %2547 = vadd.xlane.f32.xlu0 %v2546
  %v2548 = vpop.xlane.xlu0 %2547
  %v2549 = vadd.f32 %v2548, %v1716
  %2550 = vst.msk [vmem:[%s7 + $0xa] sm:$0x3] %vm1718, %v2549
  %v2551 = vld [vmem:[#allocation2 + $0x10] sm:$0x30]
  %v2552 = vld [vmem:[#allocation2 + $0x18] sm:$0x30]
  %v2553 = vpack.c.bf16 %v2467, %v2467
  %v2555 = vrot.slane %v2553, 1
  %v2557 = vsel %vm1155, %v2555, 0
  %2559 = vmatprep.subr.bf16.mxu0 0
  %2560 = vmatpush1.bf16.msra.mxu0 0
  %2561 = vmatprep.subr.bf16.mxu0 0
  %2562 = vmatpush1.bf16.msra.mxu0 0
  %2563 = vmatprep.subr.bf16.mxu0 0
  %2564 = vmatpush1.bf16.msra.mxu0 0
  %2565 = vmatprep.subr.bf16.mxu0 0
  %2566 = vmatpush1.bf16.msra.mxu0 0
  %2567 = vmatprep.subr.bf16.mxu0 %v1466
  %2568 = vmatpush1.bf16.msra.mxu0 %v1465
  %2569 = vmatprep.subr.bf16.mxu0 %v1464
  %2570 = vmatpush1.bf16.msra.mxu0 %v1463
  %2571 = vmatprep.subr.bf16.mxu0 %v1462
  %2572 = vmatpush1.bf16.msra.mxu0 %v1461
  %2573 = vmatprep.subr.bf16.mxu0 %v1460
  %2574 = vmatpush1.bf16.msra.mxu0 %v1459
  %2575 = vmatprep.subr.bf16.mxu0 0
  %2576 = vmatpush2.bf16.msra.mxu0 0
  %2577 = vmatprep.subr.bf16.mxu0 0
  %2578 = vmatpush2.bf16.msra.mxu0 0
  %2579 = vmatprep.subr.bf16.mxu0 0
  %2580 = vmatpush2.bf16.msra.mxu0 0
  %2581 = vmatprep.subr.bf16.mxu0 0
  %2582 = vmatpush2.bf16.msra.mxu0 0
  %2583 = vmatprep.subr.bf16.mxu0 0
  %2584 = vmatpush2.bf16.msra.mxu0 0
  %2585 = vmatprep.subr.bf16.mxu0 0
  %2586 = vmatpush2.bf16.msra.mxu0 0
  %2587 = vmatprep.subr.bf16.mxu0 0
  %2588 = vmatpush2.bf16.msra.mxu0 0
  %2589 = vmatprep.subr.bf16.mxu0 0
  %2590 = vmatpush2.bf16.msra.mxu0 0
  %2591 = vmatprep.mubr.bf16.mxu0 0
  %2592 = vmatmul.mubr.bf16.gmra.mxu0 %v2557
  %v2593 = vpop.f32.mrf.mxu0
  %v2594 = vadd.f32 0.0, %v2593
  %v2595 = vpop.f32.mrf.mxu0
  %v2596 = vadd.f32 0.0, %v2595
  %v2597 = vpop.f32.mrf.mxu0
  %v2598 = vpop.f32.mrf.mxu0
  %2599 = vdwg.mxu0
  %v2602 = vrot.slane %v2594, 4
  %v2603 = vrot.slane %v2596, 4
  %v2606 = vadd.f32 %v2551, %v2602
  %v2607 = vadd.f32 %v2552, %v2603
  %v2608 = vmul.f32 %v2606, 0.5
  %v2609 = vmul.f32 %v2607, 0.5
  %v2610 = vtanh.pop %v2608
  %v2611 = vtanh.pop %v2609
  %v2612 = vmul.f32 %v2610, 0.5
  %v2613 = vmul.f32 %v2611, 0.5
  %v2614 = vadd.f32 %v2612, 0.5
  %v2615 = vadd.f32 %v2613, 0.5
  %v2616 = vtanh.pop %v2607
  %v2618 = vrot.slane %v2461, 6
  %v2620 = vmul.f32 %v2614, %v2618
  %2622 = vrot.lane.b32.xlu0 %v2616, 64
  %v2623 = vpop.permute.xlu0 %2622
  %v2625 = vmul.f32 %v2614, %v2623
  %2627 = vrot.lane.b32.xlu0 %v2625, 64
  %v2628 = vpop.permute.xlu0 %2627
  %v2630 = vadd.f32 %v2620, %v2628
  %v2631 = vtanh.pop %v2630
  %2633 = vrot.lane.b32.xlu0 %v2631, 64
  %v2634 = vpop.permute.xlu0 %2633
  %v2636 = vmul.f32 %v2615, %v2634
  %v2638 = vrot.slane %v2544, 4
  %2639 = vrot.lane.b32.xlu0 %v2638, 64
  %v2640 = vpop.permute.xlu0 %2639
  %v2642 = vsel %vm1155, %v2636, %v2640
  %v2643 = vpack.c.bf16 %v2642, %v2642
  %v2645 = vrot.slane %v2643, 2
  %2647 = vmatprep.subr.bf16.mxu0 %v1620
  %2648 = vmatpush1.bf16.msra.mxu0 %v1619
  %2649 = vmatprep.subr.bf16.mxu0 %v1618
  %2650 = vmatpush1.bf16.msra.mxu0 %v1617
  %2651 = vmatprep.subr.bf16.mxu0 %v1616
  %2652 = vmatpush1.bf16.msra.mxu0 %v1615
  %2653 = vmatprep.subr.bf16.mxu0 %v1614
  %2654 = vmatpush1.bf16.msra.mxu0 %v1613
  %2655 = vmatprep.subr.bf16.mxu0 %v1612
  %2656 = vmatpush1.bf16.msra.mxu0 %v1611
  %2657 = vmatprep.subr.bf16.mxu0 %v1610
  %2658 = vmatpush1.bf16.msra.mxu0 %v1609
  %2659 = vmatprep.subr.bf16.mxu0 %v1608
  %2660 = vmatpush1.bf16.msra.mxu0 %v1607
  %2661 = vmatprep.subr.bf16.mxu0 %v1606
  %2662 = vmatpush1.bf16.msra.mxu0 %v1605
  %2663 = vmatprep.subr.bf16.mxu0 0
  %2664 = vmatpush2.bf16.msra.mxu0 0
  %2665 = vmatprep.subr.bf16.mxu0 0
  %2666 = vmatpush2.bf16.msra.mxu0 0
  %2667 = vmatprep.subr.bf16.mxu0 0
  %2668 = vmatpush2.bf16.msra.mxu0 0
  %2669 = vmatprep.subr.bf16.mxu0 0
  %2670 = vmatpush2.bf16.msra.mxu0 0
  %2671 = vmatprep.subr.bf16.mxu0 0
  %2672 = vmatpush2.bf16.msra.mxu0 0
  %2673 = vmatprep.subr.bf16.mxu0 0
  %2674 = vmatpush2.bf16.msra.mxu0 0
  %2675 = vmatprep.subr.bf16.mxu0 0
  %2676 = vmatpush2.bf16.msra.mxu0 0
  %2677 = vmatprep.subr.bf16.mxu0 0
  %2678 = vmatpush2.bf16.msra.mxu0 0
  %2679 = vmatprep.mubr.bf16.mxu0 0
  %2680 = vmatmul.mubr.bf16.gmra.mxu0 %v2645
  %v2681 = vpop.f32.mrf.mxu0
  %v2682 = vadd.f32 %v1552, %v2681
  %v2683 = vpop.f32.mrf.mxu0
  %v2684 = vadd.f32 %v1556, %v2683
  %v2685 = vpop.f32.mrf.mxu0
  %v2686 = vpop.f32.mrf.mxu0
  %2687 = vdwg.mxu0
  %v2688 = vmul.f32 %v2682, 0.5
  %v2689 = vmul.f32 %v2684, 0.5
  %v2690 = vtanh.pop %v2688
  %v2691 = vtanh.pop %v2689
  %v2692 = vmul.f32 %v2690, 0.5
  %v2693 = vmul.f32 %v2691, 0.5
  %v2694 = vadd.f32 %v2692, 0.5
  %v2695 = vadd.f32 %v2693, 0.5
  %v2696 = vtanh.pop %v2684
  %v2697 = vmul.f32 %v2694, %v2538
  %2699 = vrot.lane.b32.xlu0 %v2696, 64
  %v2700 = vpop.permute.xlu0 %2699
  %v2702 = vmul.f32 %v2694, %v2700
  %2704 = vrot.lane.b32.xlu0 %v2702, 64
  %v2705 = vpop.permute.xlu0 %2704
  %v2707 = vadd.f32 %v2697, %v2705
  %v2708 = vtanh.pop %v2707
  %2710 = vrot.lane.b32.xlu0 %v2708, 64
  %v2711 = vpop.permute.xlu0 %2710
  %v2713 = vmul.f32 %v2695, %v2711
  %v2714 = vmul.f32 %v2713, %v1707
  %v2715 = vsel %vm1709, %v2714, 0.0
  %2716 = vadd.xlane.f32.xlu0 %v2715
  %v2717 = vpop.xlane.xlu0 %2716
  %v2718 = vadd.f32 %v2717, %v1716
  %2719 = vst.msk [vmem:[%s7 + $0xc] sm:$0x3] %vm1718, %v2718
  %v2720 = vld [vmem:[#allocation2 + $0x10] sm:$0xc0]
  %v2721 = vld [vmem:[#allocation2 + $0x18] sm:$0xc0]
  %v2722 = vpack.c.bf16 %v2636, %v2636
  %v2724 = vrot.slane %v2722, 2
  %v2726 = vsel %vm1155, %v2724, 0
  %2728 = vmatprep.subr.bf16.mxu0 0
  %2729 = vmatpush1.bf16.msra.mxu0 0
  %2730 = vmatprep.subr.bf16.mxu0 0
  %2731 = vmatpush1.bf16.msra.mxu0 0
  %2732 = vmatprep.subr.bf16.mxu0 0
  %2733 = vmatpush1.bf16.msra.mxu0 0
  %2734 = vmatprep.subr.bf16.mxu0 0
  %2735 = vmatpush1.bf16.msra.mxu0 0
  %2736 = vmatprep.subr.bf16.mxu0 %v1466
  %2737 = vmatpush1.bf16.msra.mxu0 %v1465
  %2738 = vmatprep.subr.bf16.mxu0 %v1464
  %2739 = vmatpush1.bf16.msra.mxu0 %v1463
  %2740 = vmatprep.subr.bf16.mxu0 %v1462
  %2741 = vmatpush1.bf16.msra.mxu0 %v1461
  %2742 = vmatprep.subr.bf16.mxu0 %v1460
  %2743 = vmatpush1.bf16.msra.mxu0 %v1459
  %2744 = vmatprep.subr.bf16.mxu0 0
  %2745 = vmatpush2.bf16.msra.mxu0 0
  %2746 = vmatprep.subr.bf16.mxu0 0
  %2747 = vmatpush2.bf16.msra.mxu0 0
  %2748 = vmatprep.subr.bf16.mxu0 0
  %2749 = vmatpush2.bf16.msra.mxu0 0
  %2750 = vmatprep.subr.bf16.mxu0 0
  %2751 = vmatpush2.bf16.msra.mxu0 0
  %2752 = vmatprep.subr.bf16.mxu0 0
  %2753 = vmatpush2.bf16.msra.mxu0 0
  %2754 = vmatprep.subr.bf16.mxu0 0
  %2755 = vmatpush2.bf16.msra.mxu0 0
  %2756 = vmatprep.subr.bf16.mxu0 0
  %2757 = vmatpush2.bf16.msra.mxu0 0
  %2758 = vmatprep.subr.bf16.mxu0 0
  %2759 = vmatpush2.bf16.msra.mxu0 0
  %2760 = vmatprep.mubr.bf16.mxu0 0
  %2761 = vmatmul.mubr.bf16.gmra.mxu0 %v2726
  %v2762 = vpop.f32.mrf.mxu0
  %v2763 = vadd.f32 0.0, %v2762
  %v2764 = vpop.f32.mrf.mxu0
  %v2765 = vadd.f32 0.0, %v2764
  %v2766 = vpop.f32.mrf.mxu0
  %v2767 = vpop.f32.mrf.mxu0
  %2768 = vdwg.mxu0
  %v2771 = vrot.slane %v2763, 2
  %v2772 = vrot.slane %v2765, 2
  %v2775 = vadd.f32 %v2720, %v2771
  %v2776 = vadd.f32 %v2721, %v2772
  %v2777 = vmul.f32 %v2775, 0.5
  %v2778 = vmul.f32 %v2776, 0.5
  %v2779 = vtanh.pop %v2777
  %v2780 = vtanh.pop %v2778
  %v2781 = vmul.f32 %v2779, 0.5
  %v2782 = vmul.f32 %v2780, 0.5
  %v2783 = vadd.f32 %v2781, 0.5
  %v2784 = vadd.f32 %v2782, 0.5
  %v2785 = vtanh.pop %v2776
  %v2787 = vrot.slane %v2630, 6
  %v2789 = vmul.f32 %v2783, %v2787
  %2791 = vrot.lane.b32.xlu0 %v2785, 64
  %v2792 = vpop.permute.xlu0 %2791
  %v2794 = vmul.f32 %v2783, %v2792
  %2796 = vrot.lane.b32.xlu0 %v2794, 64
  %v2797 = vpop.permute.xlu0 %2796
  %v2799 = vadd.f32 %v2789, %v2797
  %v2800 = vtanh.pop %v2799
  %2802 = vrot.lane.b32.xlu0 %v2800, 64
  %v2803 = vpop.permute.xlu0 %2802
  %v2805 = vmul.f32 %v2784, %v2803
  %v2807 = vrot.slane %v2713, 2
  %2808 = vrot.lane.b32.xlu0 %v2807, 64
  %v2809 = vpop.permute.xlu0 %2808
  %v2811 = vsel %vm1155, %v2805, %v2809
  %v2812 = vpack.c.bf16 %v2811, %v2811
  %v2814 = vrot.slane %v2812, 3
  %2816 = vmatprep.subr.bf16.mxu0 %v1620
  %2817 = vmatpush1.bf16.msra.mxu0 %v1619
  %2818 = vmatprep.subr.bf16.mxu0 %v1618
  %2819 = vmatpush1.bf16.msra.mxu0 %v1617
  %2820 = vmatprep.subr.bf16.mxu0 %v1616
  %2821 = vmatpush1.bf16.msra.mxu0 %v1615
  %2822 = vmatprep.subr.bf16.mxu0 %v1614
  %2823 = vmatpush1.bf16.msra.mxu0 %v1613
  %2824 = vmatprep.subr.bf16.mxu0 %v1612
  %2825 = vmatpush1.bf16.msra.mxu0 %v1611
  %2826 = vmatprep.subr.bf16.mxu0 %v1610
  %2827 = vmatpush1.bf16.msra.mxu0 %v1609
  %2828 = vmatprep.subr.bf16.mxu0 %v1608
  %2829 = vmatpush1.bf16.msra.mxu0 %v1607
  %2830 = vmatprep.subr.bf16.mxu0 %v1606
  %2831 = vmatpush1.bf16.msra.mxu0 %v1605
  %2832 = vmatprep.subr.bf16.mxu0 0
  %2833 = vmatpush2.bf16.msra.mxu0 0
  %2834 = vmatprep.subr.bf16.mxu0 0
  %2835 = vmatpush2.bf16.msra.mxu0 0
  %2836 = vmatprep.subr.bf16.mxu0 0
  %2837 = vmatpush2.bf16.msra.mxu0 0
  %2838 = vmatprep.subr.bf16.mxu0 0
  %2839 = vmatpush2.bf16.msra.mxu0 0
  %2840 = vmatprep.subr.bf16.mxu0 0
  %2841 = vmatpush2.bf16.msra.mxu0 0
  %2842 = vmatprep.subr.bf16.mxu0 0
  %2843 = vmatpush2.bf16.msra.mxu0 0
  %2844 = vmatprep.subr.bf16.mxu0 0
  %2845 = vmatpush2.bf16.msra.mxu0 0
  %2846 = vmatprep.subr.bf16.mxu0 0
  %2847 = vmatpush2.bf16.msra.mxu0 0
  %2848 = vmatprep.mubr.bf16.mxu0 0
  %2849 = vmatmul.mubr.bf16.gmra.mxu0 %v2814
  %v2850 = vpop.f32.mrf.mxu0
  %v2851 = vadd.f32 %v1552, %v2850
  %v2852 = vpop.f32.mrf.mxu0
  %v2853 = vadd.f32 %v1556, %v2852
  %v2854 = vpop.f32.mrf.mxu0
  %v2855 = vpop.f32.mrf.mxu0
  %2856 = vdwg.mxu0
  %v2857 = vmul.f32 %v2851, 0.5
  %v2858 = vmul.f32 %v2853, 0.5
  %v2859 = vtanh.pop %v2857
  %v2860 = vtanh.pop %v2858
  %v2861 = vmul.f32 %v2859, 0.5
  %v2862 = vmul.f32 %v2860, 0.5
  %v2863 = vadd.f32 %v2861, 0.5
  %v2864 = vadd.f32 %v2862, 0.5
  %v2865 = vtanh.pop %v2853
  %v2866 = vmul.f32 %v2863, %v2707
  %2868 = vrot.lane.b32.xlu0 %v2865, 64
  %v2869 = vpop.permute.xlu0 %2868
  %v2871 = vmul.f32 %v2863, %v2869
  %2873 = vrot.lane.b32.xlu0 %v2871, 64
  %v2874 = vpop.permute.xlu0 %2873
  %v2876 = vadd.f32 %v2866, %v2874
  %v2877 = vtanh.pop %v2876
  %2879 = vrot.lane.b32.xlu0 %v2877, 64
  %v2880 = vpop.permute.xlu0 %2879
  %v2882 = vmul.f32 %v2864, %v2880
  %v2883 = vmul.f32 %v2882, %v1707
  %v2884 = vsel %vm1709, %v2883, 0.0
  %2885 = vadd.xlane.f32.xlu0 %v2884
  %v2886 = vpop.xlane.xlu0 %2885
  %v2887 = vadd.f32 %v2886, %v1716
  %2888 = vst.msk [vmem:[%s7 + $0xe] sm:$0x3] %vm1718, %v2887
  %v2889 = vld [vmem:[#allocation2 + $0x20] sm:$0x3]
  %v2890 = vld [vmem:[#allocation2 + $0x28] sm:$0x3]
  %v2891 = vpack.c.bf16 %v2805, %v2805
  %v2893 = vrot.slane %v2891, 3
  %v2895 = vsel %vm1155, %v2893, 0
  %2897 = vmatprep.subr.bf16.mxu0 0
  %2898 = vmatpush1.bf16.msra.mxu0 0
  %2899 = vmatprep.subr.bf16.mxu0 0
  %2900 = vmatpush1.bf16.msra.mxu0 0
  %2901 = vmatprep.subr.bf16.mxu0 0
  %2902 = vmatpush1.bf16.msra.mxu0 0
  %2903 = vmatprep.subr.bf16.mxu0 0
  %2904 = vmatpush1.bf16.msra.mxu0 0
  %2905 = vmatprep.subr.bf16.mxu0 %v1466
  %2906 = vmatpush1.bf16.msra.mxu0 %v1465
  %2907 = vmatprep.subr.bf16.mxu0 %v1464
  %2908 = vmatpush1.bf16.msra.mxu0 %v1463
  %2909 = vmatprep.subr.bf16.mxu0 %v1462
  %2910 = vmatpush1.bf16.msra.mxu0 %v1461
  %2911 = vmatprep.subr.bf16.mxu0 %v1460
  %2912 = vmatpush1.bf16.msra.mxu0 %v1459
  %2913 = vmatprep.subr.bf16.mxu0 0
  %2914 = vmatpush2.bf16.msra.mxu0 0
  %2915 = vmatprep.subr.bf16.mxu0 0
  %2916 = vmatpush2.bf16.msra.mxu0 0
  %2917 = vmatprep.subr.bf16.mxu0 0
  %2918 = vmatpush2.bf16.msra.mxu0 0
  %2919 = vmatprep.subr.bf16.mxu0 0
  %2920 = vmatpush2.bf16.msra.mxu0 0
  %2921 = vmatprep.subr.bf16.mxu0 0
  %2922 = vmatpush2.bf16.msra.mxu0 0
  %2923 = vmatprep.subr.bf16.mxu0 0
  %2924 = vmatpush2.bf16.msra.mxu0 0
  %2925 = vmatprep.subr.bf16.mxu0 0
  %2926 = vmatpush2.bf16.msra.mxu0 0
  %2927 = vmatprep.subr.bf16.mxu0 0
  %2928 = vmatpush2.bf16.msra.mxu0 0
  %2929 = vmatprep.mubr.bf16.mxu0 0
  %2930 = vmatmul.mubr.bf16.gmra.mxu0 %v2895
  %v2931 = vpop.f32.mrf.mxu0
  %v2932 = vadd.f32 0.0, %v2931
  %v2933 = vpop.f32.mrf.mxu0
  %v2934 = vadd.f32 0.0, %v2933
  %v2935 = vpop.f32.mrf.mxu0
  %v2936 = vpop.f32.mrf.mxu0
  %2937 = vdwg.mxu0
  %v2938 = vadd.f32 %v2889, %v2932
  %v2939 = vadd.f32 %v2890, %v2934
  %v2940 = vmul.f32 %v2938, 0.5
  %v2941 = vmul.f32 %v2939, 0.5
  %v2942 = vtanh.pop %v2940
  %v2943 = vtanh.pop %v2941
  %v2944 = vmul.f32 %v2942, 0.5
  %v2945 = vmul.f32 %v2943, 0.5
  %v2946 = vadd.f32 %v2944, 0.5
  %v2947 = vadd.f32 %v2945, 0.5
  %v2948 = vtanh.pop %v2939
  %v2950 = vrot.slane %v2799, 6
  %v2952 = vmul.f32 %v2946, %v2950
  %2954 = vrot.lane.b32.xlu0 %v2948, 64
  %v2955 = vpop.permute.xlu0 %2954
  %v2957 = vmul.f32 %v2946, %v2955
  %2959 = vrot.lane.b32.xlu0 %v2957, 64
  %v2960 = vpop.permute.xlu0 %2959
  %v2962 = vadd.f32 %v2952, %v2960
  %v2963 = vtanh.pop %v2962
  %2965 = vrot.lane.b32.xlu0 %v2963, 64
  %v2966 = vpop.permute.xlu0 %2965
  %v2968 = vmul.f32 %v2947, %v2966
  %2970 = vrot.lane.b32.xlu0 %v2882, 64
  %v2971 = vpop.permute.xlu0 %2970
  %v2973 = vsel %vm1155, %v2968, %v2971
  %v2974 = vpack.c.bf16 %v2973, %v2973
  %2975 = vmatprep.subr.bf16.mxu0 %v1620
  %2976 = vmatpush1.bf16.msra.mxu0 %v1619
  %2977 = vmatprep.subr.bf16.mxu0 %v1618
  %2978 = vmatpush1.bf16.msra.mxu0 %v1617
  %2979 = vmatprep.subr.bf16.mxu0 %v1616
  %2980 = vmatpush1.bf16.msra.mxu0 %v1615
  %2981 = vmatprep.subr.bf16.mxu0 %v1614
  %2982 = vmatpush1.bf16.msra.mxu0 %v1613
  %2983 = vmatprep.subr.bf16.mxu0 %v1612
  %2984 = vmatpush1.bf16.msra.mxu0 %v1611
  %2985 = vmatprep.subr.bf16.mxu0 %v1610
  %2986 = vmatpush1.bf16.msra.mxu0 %v1609
  %2987 = vmatprep.subr.bf16.mxu0 %v1608
  %2988 = vmatpush1.bf16.msra.mxu0 %v1607
  %2989 = vmatprep.subr.bf16.mxu0 %v1606
  %2990 = vmatpush1.bf16.msra.mxu0 %v1605
  %2991 = vmatprep.subr.bf16.mxu0 0
  %2992 = vmatpush2.bf16.msra.mxu0 0
  %2993 = vmatprep.subr.bf16.mxu0 0
  %2994 = vmatpush2.bf16.msra.mxu0 0
  %2995 = vmatprep.subr.bf16.mxu0 0
  %2996 = vmatpush2.bf16.msra.mxu0 0
  %2997 = vmatprep.subr.bf16.mxu0 0
  %2998 = vmatpush2.bf16.msra.mxu0 0
  %2999 = vmatprep.subr.bf16.mxu0 0
  %3000 = vmatpush2.bf16.msra.mxu0 0
  %3001 = vmatprep.subr.bf16.mxu0 0
  %3002 = vmatpush2.bf16.msra.mxu0 0
  %3003 = vmatprep.subr.bf16.mxu0 0
  %3004 = vmatpush2.bf16.msra.mxu0 0
  %3005 = vmatprep.subr.bf16.mxu0 0
  %3006 = vmatpush2.bf16.msra.mxu0 0
  %3007 = vmatprep.mubr.bf16.mxu0 0
  %3008 = vmatmul.mubr.bf16.gmra.mxu0 %v2974
  %v3009 = vpop.f32.mrf.mxu0
  %v3010 = vadd.f32 %v1552, %v3009
  %v3011 = vpop.f32.mrf.mxu0
  %v3012 = vadd.f32 %v1556, %v3011
  %v3013 = vpop.f32.mrf.mxu0
  %v3014 = vpop.f32.mrf.mxu0
  %3015 = vdwg.mxu0
  %v3016 = vmul.f32 %v3010, 0.5
  %v3017 = vmul.f32 %v3012, 0.5
  %v3018 = vtanh.pop %v3016
  %v3019 = vtanh.pop %v3017
  %v3020 = vmul.f32 %v3018, 0.5
  %v3021 = vmul.f32 %v3019, 0.5
  %v3022 = vadd.f32 %v3020, 0.5
  %v3023 = vadd.f32 %v3021, 0.5
  %v3024 = vtanh.pop %v3012
  %v3025 = vmul.f32 %v3022, %v2876
  %3027 = vrot.lane.b32.xlu0 %v3024, 64
  %v3028 = vpop.permute.xlu0 %3027
  %v3030 = vmul.f32 %v3022, %v3028
  %3032 = vrot.lane.b32.xlu0 %v3030, 64
  %v3033 = vpop.permute.xlu0 %3032
  %v3035 = vadd.f32 %v3025, %v3033
  %v3036 = vtanh.pop %v3035
  %3038 = vrot.lane.b32.xlu0 %v3036, 64
  %v3039 = vpop.permute.xlu0 %3038
  %v3041 = vmul.f32 %v3023, %v3039
  %v3042 = vmul.f32 %v3041, %v1707
  %v3043 = vsel %vm1709, %v3042, 0.0
  %3044 = vadd.xlane.f32.xlu0 %v3043
  %v3045 = vpop.xlane.xlu0 %3044
  %v3046 = vadd.f32 %v3045, %v1716
  %3047 = vst.msk [vmem:[%s7 + $0x10] sm:$0x3] %vm1718, %v3046
  %v3048 = vld [vmem:[#allocation2 + $0x20] sm:$0xc]
  %v3049 = vld [vmem:[#allocation2 + $0x28] sm:$0xc]
  %v3050 = vpack.c.bf16 %v2968, %v2968
  %v3052 = vsel %vm1155, %v3050, 0
  %3054 = vmatprep.subr.bf16.mxu0 0
  %3055 = vmatpush1.bf16.msra.mxu0 0
  %3056 = vmatprep.subr.bf16.mxu0 0
  %3057 = vmatpush1.bf16.msra.mxu0 0
  %3058 = vmatprep.subr.bf16.mxu0 0
  %3059 = vmatpush1.bf16.msra.mxu0 0
  %3060 = vmatprep.subr.bf16.mxu0 0
  %3061 = vmatpush1.bf16.msra.mxu0 0
  %3062 = vmatprep.subr.bf16.mxu0 %v1466
  %3063 = vmatpush1.bf16.msra.mxu0 %v1465
  %3064 = vmatprep.subr.bf16.mxu0 %v1464
  %3065 = vmatpush1.bf16.msra.mxu0 %v1463
  %3066 = vmatprep.subr.bf16.mxu0 %v1462
  %3067 = vmatpush1.bf16.msra.mxu0 %v1461
  %3068 = vmatprep.subr.bf16.mxu0 %v1460
  %3069 = vmatpush1.bf16.msra.mxu0 %v1459
  %3070 = vmatprep.subr.bf16.mxu0 0
  %3071 = vmatpush2.bf16.msra.mxu0 0
  %3072 = vmatprep.subr.bf16.mxu0 0
  %3073 = vmatpush2.bf16.msra.mxu0 0
  %3074 = vmatprep.subr.bf16.mxu0 0
  %3075 = vmatpush2.bf16.msra.mxu0 0
  %3076 = vmatprep.subr.bf16.mxu0 0
  %3077 = vmatpush2.bf16.msra.mxu0 0
  %3078 = vmatprep.subr.bf16.mxu0 0
  %3079 = vmatpush2.bf16.msra.mxu0 0
  %3080 = vmatprep.subr.bf16.mxu0 0
  %3081 = vmatpush2.bf16.msra.mxu0 0
  %3082 = vmatprep.subr.bf16.mxu0 0
  %3083 = vmatpush2.bf16.msra.mxu0 0
  %3084 = vmatprep.subr.bf16.mxu0 0
  %3085 = vmatpush2.bf16.msra.mxu0 0
  %3086 = vmatprep.mubr.bf16.mxu0 0
  %3087 = vmatmul.mubr.bf16.gmra.mxu0 %v3052
  %v3088 = vpop.f32.mrf.mxu0
  %v3089 = vadd.f32 0.0, %v3088
  %v3090 = vpop.f32.mrf.mxu0
  %v3091 = vadd.f32 0.0, %v3090
  %v3092 = vpop.f32.mrf.mxu0
  %v3093 = vpop.f32.mrf.mxu0
  %3094 = vdwg.mxu0
  %v3097 = vrot.slane %v3089, 6
  %v3098 = vrot.slane %v3091, 6
  %v3101 = vadd.f32 %v3048, %v3097
  %v3102 = vadd.f32 %v3049, %v3098
  %v3103 = vmul.f32 %v3101, 0.5
  %v3104 = vmul.f32 %v3102, 0.5
  %v3105 = vtanh.pop %v3103
  %v3106 = vtanh.pop %v3104
  %v3107 = vmul.f32 %v3105, 0.5
  %v3108 = vmul.f32 %v3106, 0.5
  %v3109 = vadd.f32 %v3107, 0.5
  %v3110 = vadd.f32 %v3108, 0.5
  %v3111 = vtanh.pop %v3102
  %v3113 = vrot.slane %v2962, 6
  %v3115 = vmul.f32 %v3109, %v3113
  %3117 = vrot.lane.b32.xlu0 %v3111, 64
  %v3118 = vpop.permute.xlu0 %3117
  %v3120 = vmul.f32 %v3109, %v3118
  %3122 = vrot.lane.b32.xlu0 %v3120, 64
  %v3123 = vpop.permute.xlu0 %3122
  %v3125 = vadd.f32 %v3115, %v3123
  %v3126 = vtanh.pop %v3125
  %3128 = vrot.lane.b32.xlu0 %v3126, 64
  %v3129 = vpop.permute.xlu0 %3128
  %v3131 = vmul.f32 %v3110, %v3129
  %v3133 = vrot.slane %v3041, 6
  %3134 = vrot.lane.b32.xlu0 %v3133, 64
  %v3135 = vpop.permute.xlu0 %3134
  %v3137 = vsel %vm1155, %v3131, %v3135
  %v3138 = vpack.c.bf16 %v3137, %v3137
  %v3140 = vrot.slane %v3138, 1
  %3142 = vmatprep.subr.bf16.mxu0 %v1620
  %3143 = vmatpush1.bf16.msra.mxu0 %v1619
  %3144 = vmatprep.subr.bf16.mxu0 %v1618
  %3145 = vmatpush1.bf16.msra.mxu0 %v1617
  %3146 = vmatprep.subr.bf16.mxu0 %v1616
  %3147 = vmatpush1.bf16.msra.mxu0 %v1615
  %3148 = vmatprep.subr.bf16.mxu0 %v1614
  %3149 = vmatpush1.bf16.msra.mxu0 %v1613
  %3150 = vmatprep.subr.bf16.mxu0 %v1612
  %3151 = vmatpush1.bf16.msra.mxu0 %v1611
  %3152 = vmatprep.subr.bf16.mxu0 %v1610
  %3153 = vmatpush1.bf16.msra.mxu0 %v1609
  %3154 = vmatprep.subr.bf16.mxu0 %v1608
  %3155 = vmatpush1.bf16.msra.mxu0 %v1607
  %3156 = vmatprep.subr.bf16.mxu0 %v1606
  %3157 = vmatpush1.bf16.msra.mxu0 %v1605
  %3158 = vmatprep.subr.bf16.mxu0 0
  %3159 = vmatpush2.bf16.msra.mxu0 0
  %3160 = vmatprep.subr.bf16.mxu0 0
  %3161 = vmatpush2.bf16.msra.mxu0 0
  %3162 = vmatprep.subr.bf16.mxu0 0
  %3163 = vmatpush2.bf16.msra.mxu0 0
  %3164 = vmatprep.subr.bf16.mxu0 0
  %3165 = vmatpush2.bf16.msra.mxu0 0
  %3166 = vmatprep.subr.bf16.mxu0 0
  %3167 = vmatpush2.bf16.msra.mxu0 0
  %3168 = vmatprep.subr.bf16.mxu0 0
  %3169 = vmatpush2.bf16.msra.mxu0 0
  %3170 = vmatprep.subr.bf16.mxu0 0
  %3171 = vmatpush2.bf16.msra.mxu0 0
  %3172 = vmatprep.subr.bf16.mxu0 0
  %3173 = vmatpush2.bf16.msra.mxu0 0
  %3174 = vmatprep.mubr.bf16.mxu0 0
  %3175 = vmatmul.mubr.bf16.gmra.mxu0 %v3140
  %v3176 = vpop.f32.mrf.mxu0
  %v3177 = vadd.f32 %v1552, %v3176
  %v3178 = vpop.f32.mrf.mxu0
  %v3179 = vadd.f32 %v1556, %v3178
  %v3180 = vpop.f32.mrf.mxu0
  %v3181 = vpop.f32.mrf.mxu0
  %3182 = vdwg.mxu0
  %v3183 = vmul.f32 %v3177, 0.5
  %v3184 = vmul.f32 %v3179, 0.5
  %v3185 = vtanh.pop %v3183
  %v3186 = vtanh.pop %v3184
  %v3187 = vmul.f32 %v3185, 0.5
  %v3188 = vmul.f32 %v3186, 0.5
  %v3189 = vadd.f32 %v3187, 0.5
  %v3190 = vadd.f32 %v3188, 0.5
  %v3191 = vtanh.pop %v3179
  %v3192 = vmul.f32 %v3189, %v3035
  %3194 = vrot.lane.b32.xlu0 %v3191, 64
  %v3195 = vpop.permute.xlu0 %3194
  %v3197 = vmul.f32 %v3189, %v3195
  %3199 = vrot.lane.b32.xlu0 %v3197, 64
  %v3200 = vpop.permute.xlu0 %3199
  %v3202 = vadd.f32 %v3192, %v3200
  %v3203 = vtanh.pop %v3202
  %3205 = vrot.lane.b32.xlu0 %v3203, 64
  %v3206 = vpop.permute.xlu0 %3205
  %v3208 = vmul.f32 %v3190, %v3206
  %v3209 = vmul.f32 %v3208, %v1707
  %v3210 = vsel %vm1709, %v3209, 0.0
  %3211 = vadd.xlane.f32.xlu0 %v3210
  %v3212 = vpop.xlane.xlu0 %3211
  %v3213 = vadd.f32 %v3212, %v1716
  %3214 = vst.msk [vmem:[%s7 + $0x12] sm:$0x3] %vm1718, %v3213
  %v3215 = vld [vmem:[#allocation2 + $0x20] sm:$0x30]
  %v3216 = vld [vmem:[#allocation2 + $0x28] sm:$0x30]
  %v3217 = vpack.c.bf16 %v3131, %v3131
  %v3219 = vrot.slane %v3217, 1
  %v3221 = vsel %vm1155, %v3219, 0
  %3223 = vmatprep.subr.bf16.mxu0 0
  %3224 = vmatpush1.bf16.msra.mxu0 0
  %3225 = vmatprep.subr.bf16.mxu0 0
  %3226 = vmatpush1.bf16.msra.mxu0 0
  %3227 = vmatprep.subr.bf16.mxu0 0
  %3228 = vmatpush1.bf16.msra.mxu0 0
  %3229 = vmatprep.subr.bf16.mxu0 0
  %3230 = vmatpush1.bf16.msra.mxu0 0
  %3231 = vmatprep.subr.bf16.mxu0 %v1466
  %3232 = vmatpush1.bf16.msra.mxu0 %v1465
  %3233 = vmatprep.subr.bf16.mxu0 %v1464
  %3234 = vmatpush1.bf16.msra.mxu0 %v1463
  %3235 = vmatprep.subr.bf16.mxu0 %v1462
  %3236 = vmatpush1.bf16.msra.mxu0 %v1461
  %3237 = vmatprep.subr.bf16.mxu0 %v1460
  %3238 = vmatpush1.bf16.msra.mxu0 %v1459
  %3239 = vmatprep.subr.bf16.mxu0 0
  %3240 = vmatpush2.bf16.msra.mxu0 0
  %3241 = vmatprep.subr.bf16.mxu0 0
  %3242 = vmatpush2.bf16.msra.mxu0 0
  %3243 = vmatprep.subr.bf16.mxu0 0
  %3244 = vmatpush2.bf16.msra.mxu0 0
  %3245 = vmatprep.subr.bf16.mxu0 0
  %3246 = vmatpush2.bf16.msra.mxu0 0
  %3247 = vmatprep.subr.bf16.mxu0 0
  %3248 = vmatpush2.bf16.msra.mxu0 0
  %3249 = vmatprep.subr.bf16.mxu0 0
  %3250 = vmatpush2.bf16.msra.mxu0 0
  %3251 = vmatprep.subr.bf16.mxu0 0
  %3252 = vmatpush2.bf16.msra.mxu0 0
  %3253 = vmatprep.subr.bf16.mxu0 0
  %3254 = vmatpush2.bf16.msra.mxu0 0
  %3255 = vmatprep.mubr.bf16.mxu0 0
  %3256 = vmatmul.mubr.bf16.gmra.mxu0 %v3221
  %v3257 = vpop.f32.mrf.mxu0
  %v3258 = vadd.f32 0.0, %v3257
  %v3259 = vpop.f32.mrf.mxu0
  %v3260 = vadd.f32 0.0, %v3259
  %v3261 = vpop.f32.mrf.mxu0
  %v3262 = vpop.f32.mrf.mxu0
  %3263 = vdwg.mxu0
  %v3266 = vrot.slane %v3258, 4
  %v3267 = vrot.slane %v3260, 4
  %v3270 = vadd.f32 %v3215, %v3266
  %v3271 = vadd.f32 %v3216, %v3267
  %v3272 = vmul.f32 %v3270, 0.5
  %v3273 = vmul.f32 %v3271, 0.5
  %v3274 = vtanh.pop %v3272
  %v3275 = vtanh.pop %v3273
  %v3276 = vmul.f32 %v3274, 0.5
  %v3277 = vmul.f32 %v3275, 0.5
  %v3278 = vadd.f32 %v3276, 0.5
  %v3279 = vadd.f32 %v3277, 0.5
  %v3280 = vtanh.pop %v3271
  %v3282 = vrot.slane %v3125, 6
  %v3284 = vmul.f32 %v3278, %v3282
  %3286 = vrot.lane.b32.xlu0 %v3280, 64
  %v3287 = vpop.permute.xlu0 %3286
  %v3289 = vmul.f32 %v3278, %v3287
  %3291 = vrot.lane.b32.xlu0 %v3289, 64
  %v3292 = vpop.permute.xlu0 %3291
  %v3294 = vadd.f32 %v3284, %v3292
  %v3295 = vtanh.pop %v3294
  %3297 = vrot.lane.b32.xlu0 %v3295, 64
  %v3298 = vpop.permute.xlu0 %3297
  %v3300 = vmul.f32 %v3279, %v3298
  %v3302 = vrot.slane %v3208, 4
  %3303 = vrot.lane.b32.xlu0 %v3302, 64
  %v3304 = vpop.permute.xlu0 %3303
  %v3306 = vsel %vm1155, %v3300, %v3304
  %v3307 = vpack.c.bf16 %v3306, %v3306
  %v3309 = vrot.slane %v3307, 2
  %3311 = vmatprep.subr.bf16.mxu0 %v1620
  %3312 = vmatpush1.bf16.msra.mxu0 %v1619
  %3313 = vmatprep.subr.bf16.mxu0 %v1618
  %3314 = vmatpush1.bf16.msra.mxu0 %v1617
  %3315 = vmatprep.subr.bf16.mxu0 %v1616
  %3316 = vmatpush1.bf16.msra.mxu0 %v1615
  %3317 = vmatprep.subr.bf16.mxu0 %v1614
  %3318 = vmatpush1.bf16.msra.mxu0 %v1613
  %3319 = vmatprep.subr.bf16.mxu0 %v1612
  %3320 = vmatpush1.bf16.msra.mxu0 %v1611
  %3321 = vmatprep.subr.bf16.mxu0 %v1610
  %3322 = vmatpush1.bf16.msra.mxu0 %v1609
  %3323 = vmatprep.subr.bf16.mxu0 %v1608
  %3324 = vmatpush1.bf16.msra.mxu0 %v1607
  %3325 = vmatprep.subr.bf16.mxu0 %v1606
  %3326 = vmatpush1.bf16.msra.mxu0 %v1605
  %3327 = vmatprep.subr.bf16.mxu0 0
  %3328 = vmatpush2.bf16.msra.mxu0 0
  %3329 = vmatprep.subr.bf16.mxu0 0
  %3330 = vmatpush2.bf16.msra.mxu0 0
  %3331 = vmatprep.subr.bf16.mxu0 0
  %3332 = vmatpush2.bf16.msra.mxu0 0
  %3333 = vmatprep.subr.bf16.mxu0 0
  %3334 = vmatpush2.bf16.msra.mxu0 0
  %3335 = vmatprep.subr.bf16.mxu0 0
  %3336 = vmatpush2.bf16.msra.mxu0 0
  %3337 = vmatprep.subr.bf16.mxu0 0
  %3338 = vmatpush2.bf16.msra.mxu0 0
  %3339 = vmatprep.subr.bf16.mxu0 0
  %3340 = vmatpush2.bf16.msra.mxu0 0
  %3341 = vmatprep.subr.bf16.mxu0 0
  %3342 = vmatpush2.bf16.msra.mxu0 0
  %3343 = vmatprep.mubr.bf16.mxu0 0
  %3344 = vmatmul.mubr.bf16.gmra.mxu0 %v3309
  %v3345 = vpop.f32.mrf.mxu0
  %v3346 = vadd.f32 %v1552, %v3345
  %v3347 = vpop.f32.mrf.mxu0
  %v3348 = vadd.f32 %v1556, %v3347
  %v3349 = vpop.f32.mrf.mxu0
  %v3350 = vpop.f32.mrf.mxu0
  %3351 = vdwg.mxu0
  %v3352 = vmul.f32 %v3346, 0.5
  %v3353 = vmul.f32 %v3348, 0.5
  %v3354 = vtanh.pop %v3352
  %v3355 = vtanh.pop %v3353
  %v3356 = vmul.f32 %v3354, 0.5
  %v3357 = vmul.f32 %v3355, 0.5
  %v3358 = vadd.f32 %v3356, 0.5
  %v3359 = vadd.f32 %v3357, 0.5
  %v3360 = vtanh.pop %v3348
  %v3361 = vmul.f32 %v3358, %v3202
  %3363 = vrot.lane.b32.xlu0 %v3360, 64
  %v3364 = vpop.permute.xlu0 %3363
  %v3366 = vmul.f32 %v3358, %v3364
  %3368 = vrot.lane.b32.xlu0 %v3366, 64
  %v3369 = vpop.permute.xlu0 %3368
  %v3371 = vadd.f32 %v3361, %v3369
  %v3372 = vtanh.pop %v3371
  %3374 = vrot.lane.b32.xlu0 %v3372, 64
  %v3375 = vpop.permute.xlu0 %3374
  %v3377 = vmul.f32 %v3359, %v3375
  %v3378 = vmul.f32 %v3377, %v1707
  %v3379 = vsel %vm1709, %v3378, 0.0
  %3380 = vadd.xlane.f32.xlu0 %v3379
  %v3381 = vpop.xlane.xlu0 %3380
  %v3382 = vadd.f32 %v3381, %v1716
  %3383 = vst.msk [vmem:[%s7 + $0x14] sm:$0x3] %vm1718, %v3382
  %v3384 = vld [vmem:[#allocation2 + $0x20] sm:$0xc0]
  %v3385 = vld [vmem:[#allocation2 + $0x28] sm:$0xc0]
  %v3386 = vpack.c.bf16 %v3300, %v3300
  %v3388 = vrot.slane %v3386, 2
  %v3390 = vsel %vm1155, %v3388, 0
  %3392 = vmatprep.subr.bf16.mxu0 0
  %3393 = vmatpush1.bf16.msra.mxu0 0
  %3394 = vmatprep.subr.bf16.mxu0 0
  %3395 = vmatpush1.bf16.msra.mxu0 0
  %3396 = vmatprep.subr.bf16.mxu0 0
  %3397 = vmatpush1.bf16.msra.mxu0 0
  %3398 = vmatprep.subr.bf16.mxu0 0
  %3399 = vmatpush1.bf16.msra.mxu0 0
  %3400 = vmatprep.subr.bf16.mxu0 %v1466
  %3401 = vmatpush1.bf16.msra.mxu0 %v1465
  %3402 = vmatprep.subr.bf16.mxu0 %v1464
  %3403 = vmatpush1.bf16.msra.mxu0 %v1463
  %3404 = vmatprep.subr.bf16.mxu0 %v1462
  %3405 = vmatpush1.bf16.msra.mxu0 %v1461
  %3406 = vmatprep.subr.bf16.mxu0 %v1460
  %3407 = vmatpush1.bf16.msra.mxu0 %v1459
  %3408 = vmatprep.subr.bf16.mxu0 0
  %3409 = vmatpush2.bf16.msra.mxu0 0
  %3410 = vmatprep.subr.bf16.mxu0 0
  %3411 = vmatpush2.bf16.msra.mxu0 0
  %3412 = vmatprep.subr.bf16.mxu0 0
  %3413 = vmatpush2.bf16.msra.mxu0 0
  %3414 = vmatprep.subr.bf16.mxu0 0
  %3415 = vmatpush2.bf16.msra.mxu0 0
  %3416 = vmatprep.subr.bf16.mxu0 0
  %3417 = vmatpush2.bf16.msra.mxu0 0
  %3418 = vmatprep.subr.bf16.mxu0 0
  %3419 = vmatpush2.bf16.msra.mxu0 0
  %3420 = vmatprep.subr.bf16.mxu0 0
  %3421 = vmatpush2.bf16.msra.mxu0 0
  %3422 = vmatprep.subr.bf16.mxu0 0
  %3423 = vmatpush2.bf16.msra.mxu0 0
  %3424 = vmatprep.mubr.bf16.mxu0 0
  %3425 = vmatmul.mubr.bf16.gmra.mxu0 %v3390
  %v3426 = vpop.f32.mrf.mxu0
  %v3427 = vadd.f32 0.0, %v3426
  %v3428 = vpop.f32.mrf.mxu0
  %v3429 = vadd.f32 0.0, %v3428
  %v3430 = vpop.f32.mrf.mxu0
  %v3431 = vpop.f32.mrf.mxu0
  %3432 = vdwg.mxu0
  %v3435 = vrot.slane %v3427, 2
  %v3436 = vrot.slane %v3429, 2
  %v3439 = vadd.f32 %v3384, %v3435
  %v3440 = vadd.f32 %v3385, %v3436
  %v3441 = vmul.f32 %v3439, 0.5
  %v3442 = vmul.f32 %v3440, 0.5
  %v3443 = vtanh.pop %v3441
  %v3444 = vtanh.pop %v3442
  %v3445 = vmul.f32 %v3443, 0.5
  %v3446 = vmul.f32 %v3444, 0.5
  %v3447 = vadd.f32 %v3445, 0.5
  %v3448 = vadd.f32 %v3446, 0.5
  %v3449 = vtanh.pop %v3440
  %v3451 = vrot.slane %v3294, 6
  %v3453 = vmul.f32 %v3447, %v3451
  %3455 = vrot.lane.b32.xlu0 %v3449, 64
  %v3456 = vpop.permute.xlu0 %3455
  %v3458 = vmul.f32 %v3447, %v3456
  %3460 = vrot.lane.b32.xlu0 %v3458, 64
  %v3461 = vpop.permute.xlu0 %3460
  %v3463 = vadd.f32 %v3453, %v3461
  %v3464 = vtanh.pop %v3463
  %3466 = vrot.lane.b32.xlu0 %v3464, 64
  %v3467 = vpop.permute.xlu0 %3466
  %v3469 = vmul.f32 %v3448, %v3467
  %v3471 = vrot.slane %v3377, 2
  %3472 = vrot.lane.b32.xlu0 %v3471, 64
  %v3473 = vpop.permute.xlu0 %3472
  %v3475 = vsel %vm1155, %v3469, %v3473
  %v3476 = vpack.c.bf16 %v3475, %v3475
  %v3478 = vrot.slane %v3476, 3
  %3480 = vmatprep.subr.bf16.mxu0 %v1620
  %3481 = vmatpush1.bf16.msra.mxu0 %v1619
  %3482 = vmatprep.subr.bf16.mxu0 %v1618
  %3483 = vmatpush1.bf16.msra.mxu0 %v1617
  %3484 = vmatprep.subr.bf16.mxu0 %v1616
  %3485 = vmatpush1.bf16.msra.mxu0 %v1615
  %3486 = vmatprep.subr.bf16.mxu0 %v1614
  %3487 = vmatpush1.bf16.msra.mxu0 %v1613
  %3488 = vmatprep.subr.bf16.mxu0 %v1612
  %3489 = vmatpush1.bf16.msra.mxu0 %v1611
  %3490 = vmatprep.subr.bf16.mxu0 %v1610
  %3491 = vmatpush1.bf16.msra.mxu0 %v1609
  %3492 = vmatprep.subr.bf16.mxu0 %v1608
  %3493 = vmatpush1.bf16.msra.mxu0 %v1607
  %3494 = vmatprep.subr.bf16.mxu0 %v1606
  %3495 = vmatpush1.bf16.msra.mxu0 %v1605
  %3496 = vmatprep.subr.bf16.mxu0 0
  %3497 = vmatpush2.bf16.msra.mxu0 0
  %3498 = vmatprep.subr.bf16.mxu0 0
  %3499 = vmatpush2.bf16.msra.mxu0 0
  %3500 = vmatprep.subr.bf16.mxu0 0
  %3501 = vmatpush2.bf16.msra.mxu0 0
  %3502 = vmatprep.subr.bf16.mxu0 0
  %3503 = vmatpush2.bf16.msra.mxu0 0
  %3504 = vmatprep.subr.bf16.mxu0 0
  %3505 = vmatpush2.bf16.msra.mxu0 0
  %3506 = vmatprep.subr.bf16.mxu0 0
  %3507 = vmatpush2.bf16.msra.mxu0 0
  %3508 = vmatprep.subr.bf16.mxu0 0
  %3509 = vmatpush2.bf16.msra.mxu0 0
  %3510 = vmatprep.subr.bf16.mxu0 0
  %3511 = vmatpush2.bf16.msra.mxu0 0
  %3512 = vmatprep.mubr.bf16.mxu0 0
  %3513 = vmatmul.mubr.bf16.gmra.mxu0 %v3478
  %v3514 = vpop.f32.mrf.mxu0
  %v3515 = vadd.f32 %v1552, %v3514
  %v3516 = vpop.f32.mrf.mxu0
  %v3517 = vadd.f32 %v1556, %v3516
  %v3518 = vpop.f32.mrf.mxu0
  %v3519 = vpop.f32.mrf.mxu0
  %3520 = vdwg.mxu0
  %v3521 = vmul.f32 %v3515, 0.5
  %v3522 = vmul.f32 %v3517, 0.5
  %v3523 = vtanh.pop %v3521
  %v3524 = vtanh.pop %v3522
  %v3525 = vmul.f32 %v3523, 0.5
  %v3526 = vmul.f32 %v3524, 0.5
  %v3527 = vadd.f32 %v3525, 0.5
  %v3528 = vadd.f32 %v3526, 0.5
  %v3529 = vtanh.pop %v3517
  %v3530 = vmul.f32 %v3527, %v3371
  %3532 = vrot.lane.b32.xlu0 %v3529, 64
  %v3533 = vpop.permute.xlu0 %3532
  %v3535 = vmul.f32 %v3527, %v3533
  %3537 = vrot.lane.b32.xlu0 %v3535, 64
  %v3538 = vpop.permute.xlu0 %3537
  %v3540 = vadd.f32 %v3530, %v3538
  %v3541 = vtanh.pop %v3540
  %3543 = vrot.lane.b32.xlu0 %v3541, 64
  %v3544 = vpop.permute.xlu0 %3543
  %v3546 = vmul.f32 %v3528, %v3544
  %v3547 = vmul.f32 %v3546, %v1707
  %v3548 = vsel %vm1709, %v3547, 0.0
  %3549 = vadd.xlane.f32.xlu0 %v3548
  %v3550 = vpop.xlane.xlu0 %3549
  %v3551 = vadd.f32 %v3550, %v1716
  %3552 = vst.msk [vmem:[%s7 + $0x16] sm:$0x3] %vm1718, %v3551
  %v3553 = vld [vmem:[#allocation2 + $0x30] sm:$0x3]
  %v3554 = vld [vmem:[#allocation2 + $0x38] sm:$0x3]
  %v3555 = vpack.c.bf16 %v3469, %v3469
  %v3557 = vrot.slane %v3555, 3
  %v3559 = vsel %vm1155, %v3557, 0
  %3561 = vmatprep.subr.bf16.mxu0 0
  %3562 = vmatpush1.bf16.msra.mxu0 0
  %3563 = vmatprep.subr.bf16.mxu0 0
  %3564 = vmatpush1.bf16.msra.mxu0 0
  %3565 = vmatprep.subr.bf16.mxu0 0
  %3566 = vmatpush1.bf16.msra.mxu0 0
  %3567 = vmatprep.subr.bf16.mxu0 0
  %3568 = vmatpush1.bf16.msra.mxu0 0
  %3569 = vmatprep.subr.bf16.mxu0 %v1466
  %3570 = vmatpush1.bf16.msra.mxu0 %v1465
  %3571 = vmatprep.subr.bf16.mxu0 %v1464
  %3572 = vmatpush1.bf16.msra.mxu0 %v1463
  %3573 = vmatprep.subr.bf16.mxu0 %v1462
  %3574 = vmatpush1.bf16.msra.mxu0 %v1461
  %3575 = vmatprep.subr.bf16.mxu0 %v1460
  %3576 = vmatpush1.bf16.msra.mxu0 %v1459
  %3577 = vmatprep.subr.bf16.mxu0 0
  %3578 = vmatpush2.bf16.msra.mxu0 0
  %3579 = vmatprep.subr.bf16.mxu0 0
  %3580 = vmatpush2.bf16.msra.mxu0 0
  %3581 = vmatprep.subr.bf16.mxu0 0
  %3582 = vmatpush2.bf16.msra.mxu0 0
  %3583 = vmatprep.subr.bf16.mxu0 0
  %3584 = vmatpush2.bf16.msra.mxu0 0
  %3585 = vmatprep.subr.bf16.mxu0 0
  %3586 = vmatpush2.bf16.msra.mxu0 0
  %3587 = vmatprep.subr.bf16.mxu0 0
  %3588 = vmatpush2.bf16.msra.mxu0 0
  %3589 = vmatprep.subr.bf16.mxu0 0
  %3590 = vmatpush2.bf16.msra.mxu0 0
  %3591 = vmatprep.subr.bf16.mxu0 0
  %3592 = vmatpush2.bf16.msra.mxu0 0
  %3593 = vmatprep.mubr.bf16.mxu0 0
  %3594 = vmatmul.mubr.bf16.gmra.mxu0 %v3559
  %v3595 = vpop.f32.mrf.mxu0
  %v3596 = vadd.f32 0.0, %v3595
  %v3597 = vpop.f32.mrf.mxu0
  %v3598 = vadd.f32 0.0, %v3597
  %v3599 = vpop.f32.mrf.mxu0
  %v3600 = vpop.f32.mrf.mxu0
  %3601 = vdwg.mxu0
  %v3602 = vadd.f32 %v3553, %v3596
  %v3603 = vadd.f32 %v3554, %v3598
  %v3604 = vmul.f32 %v3602, 0.5
  %v3605 = vmul.f32 %v3603, 0.5
  %v3606 = vtanh.pop %v3604
  %v3607 = vtanh.pop %v3605
  %v3608 = vmul.f32 %v3606, 0.5
  %v3609 = vmul.f32 %v3607, 0.5
  %v3610 = vadd.f32 %v3608, 0.5
  %v3611 = vadd.f32 %v3609, 0.5
  %v3612 = vtanh.pop %v3603
  %v3614 = vrot.slane %v3463, 6
  %v3616 = vmul.f32 %v3610, %v3614
  %3618 = vrot.lane.b32.xlu0 %v3612, 64
  %v3619 = vpop.permute.xlu0 %3618
  %v3621 = vmul.f32 %v3610, %v3619
  %3623 = vrot.lane.b32.xlu0 %v3621, 64
  %v3624 = vpop.permute.xlu0 %3623
  %v3626 = vadd.f32 %v3616, %v3624
  %v3627 = vtanh.pop %v3626
  %3629 = vrot.lane.b32.xlu0 %v3627, 64
  %v3630 = vpop.permute.xlu0 %3629
  %v3632 = vmul.f32 %v3611, %v3630
  %3634 = vrot.lane.b32.xlu0 %v3546, 64
  %v3635 = vpop.permute.xlu0 %3634
  %v3637 = vsel %vm1155, %v3632, %v3635
  %v3638 = vpack.c.bf16 %v3637, %v3637
  %3639 = vmatprep.subr.bf16.mxu0 %v1620
  %3640 = vmatpush1.bf16.msra.mxu0 %v1619
  %3641 = vmatprep.subr.bf16.mxu0 %v1618
  %3642 = vmatpush1.bf16.msra.mxu0 %v1617
  %3643 = vmatprep.subr.bf16.mxu0 %v1616
  %3644 = vmatpush1.bf16.msra.mxu0 %v1615
  %3645 = vmatprep.subr.bf16.mxu0 %v1614
  %3646 = vmatpush1.bf16.msra.mxu0 %v1613
  %3647 = vmatprep.subr.bf16.mxu0 %v1612
  %3648 = vmatpush1.bf16.msra.mxu0 %v1611
  %3649 = vmatprep.subr.bf16.mxu0 %v1610
  %3650 = vmatpush1.bf16.msra.mxu0 %v1609
  %3651 = vmatprep.subr.bf16.mxu0 %v1608
  %3652 = vmatpush1.bf16.msra.mxu0 %v1607
  %3653 = vmatprep.subr.bf16.mxu0 %v1606
  %3654 = vmatpush1.bf16.msra.mxu0 %v1605
  %3655 = vmatprep.subr.bf16.mxu0 0
  %3656 = vmatpush2.bf16.msra.mxu0 0
  %3657 = vmatprep.subr.bf16.mxu0 0
  %3658 = vmatpush2.bf16.msra.mxu0 0
  %3659 = vmatprep.subr.bf16.mxu0 0
  %3660 = vmatpush2.bf16.msra.mxu0 0
  %3661 = vmatprep.subr.bf16.mxu0 0
  %3662 = vmatpush2.bf16.msra.mxu0 0
  %3663 = vmatprep.subr.bf16.mxu0 0
  %3664 = vmatpush2.bf16.msra.mxu0 0
  %3665 = vmatprep.subr.bf16.mxu0 0
  %3666 = vmatpush2.bf16.msra.mxu0 0
  %3667 = vmatprep.subr.bf16.mxu0 0
  %3668 = vmatpush2.bf16.msra.mxu0 0
  %3669 = vmatprep.subr.bf16.mxu0 0
  %3670 = vmatpush2.bf16.msra.mxu0 0
  %3671 = vmatprep.mubr.bf16.mxu0 0
  %3672 = vmatmul.mubr.bf16.gmra.mxu0 %v3638
  %v3673 = vpop.f32.mrf.mxu0
  %v3674 = vadd.f32 %v1552, %v3673
  %v3675 = vpop.f32.mrf.mxu0
  %v3676 = vadd.f32 %v1556, %v3675
  %v3677 = vpop.f32.mrf.mxu0
  %v3678 = vpop.f32.mrf.mxu0
  %3679 = vdwg.mxu0
  %v3680 = vmul.f32 %v3674, 0.5
  %v3681 = vmul.f32 %v3676, 0.5
  %v3682 = vtanh.pop %v3680
  %v3683 = vtanh.pop %v3681
  %v3684 = vmul.f32 %v3682, 0.5
  %v3685 = vmul.f32 %v3683, 0.5
  %v3686 = vadd.f32 %v3684, 0.5
  %v3687 = vadd.f32 %v3685, 0.5
  %v3688 = vtanh.pop %v3676
  %v3689 = vmul.f32 %v3686, %v3540
  %3691 = vrot.lane.b32.xlu0 %v3688, 64
  %v3692 = vpop.permute.xlu0 %3691
  %v3694 = vmul.f32 %v3686, %v3692
  %3696 = vrot.lane.b32.xlu0 %v3694, 64
  %v3697 = vpop.permute.xlu0 %3696
  %v3699 = vadd.f32 %v3689, %v3697
  %v3700 = vtanh.pop %v3699
  %3702 = vrot.lane.b32.xlu0 %v3700, 64
  %v3703 = vpop.permute.xlu0 %3702
  %v3705 = vmul.f32 %v3687, %v3703
  %v3706 = vmul.f32 %v3705, %v1707
  %v3707 = vsel %vm1709, %v3706, 0.0
  %3708 = vadd.xlane.f32.xlu0 %v3707
  %v3709 = vpop.xlane.xlu0 %3708
  %v3710 = vadd.f32 %v3709, %v1716
  %3711 = vst.msk [vmem:[%s7 + $0x18] sm:$0x3] %vm1718, %v3710
  %v3712 = vld [vmem:[#allocation2 + $0x30] sm:$0xc]
  %v3713 = vld [vmem:[#allocation2 + $0x38] sm:$0xc]
  %v3714 = vpack.c.bf16 %v3632, %v3632
  %v3716 = vsel %vm1155, %v3714, 0
  %3718 = vmatprep.subr.bf16.mxu0 0
  %3719 = vmatpush1.bf16.msra.mxu0 0
  %3720 = vmatprep.subr.bf16.mxu0 0
  %3721 = vmatpush1.bf16.msra.mxu0 0
  %3722 = vmatprep.subr.bf16.mxu0 0
  %3723 = vmatpush1.bf16.msra.mxu0 0
  %3724 = vmatprep.subr.bf16.mxu0 0
  %3725 = vmatpush1.bf16.msra.mxu0 0
  %3726 = vmatprep.subr.bf16.mxu0 %v1466
  %3727 = vmatpush1.bf16.msra.mxu0 %v1465
  %3728 = vmatprep.subr.bf16.mxu0 %v1464
  %3729 = vmatpush1.bf16.msra.mxu0 %v1463
  %3730 = vmatprep.subr.bf16.mxu0 %v1462
  %3731 = vmatpush1.bf16.msra.mxu0 %v1461
  %3732 = vmatprep.subr.bf16.mxu0 %v1460
  %3733 = vmatpush1.bf16.msra.mxu0 %v1459
  %3734 = vmatprep.subr.bf16.mxu0 0
  %3735 = vmatpush2.bf16.msra.mxu0 0
  %3736 = vmatprep.subr.bf16.mxu0 0
  %3737 = vmatpush2.bf16.msra.mxu0 0
  %3738 = vmatprep.subr.bf16.mxu0 0
  %3739 = vmatpush2.bf16.msra.mxu0 0
  %3740 = vmatprep.subr.bf16.mxu0 0
  %3741 = vmatpush2.bf16.msra.mxu0 0
  %3742 = vmatprep.subr.bf16.mxu0 0
  %3743 = vmatpush2.bf16.msra.mxu0 0
  %3744 = vmatprep.subr.bf16.mxu0 0
  %3745 = vmatpush2.bf16.msra.mxu0 0
  %3746 = vmatprep.subr.bf16.mxu0 0
  %3747 = vmatpush2.bf16.msra.mxu0 0
  %3748 = vmatprep.subr.bf16.mxu0 0
  %3749 = vmatpush2.bf16.msra.mxu0 0
  %3750 = vmatprep.mubr.bf16.mxu0 0
  %3751 = vmatmul.mubr.bf16.gmra.mxu0 %v3716
  %v3752 = vpop.f32.mrf.mxu0
  %v3753 = vadd.f32 0.0, %v3752
  %v3754 = vpop.f32.mrf.mxu0
  %v3755 = vadd.f32 0.0, %v3754
  %v3756 = vpop.f32.mrf.mxu0
  %v3757 = vpop.f32.mrf.mxu0
  %3758 = vdwg.mxu0
  %v3761 = vrot.slane %v3753, 6
  %v3762 = vrot.slane %v3755, 6
  %v3765 = vadd.f32 %v3712, %v3761
  %v3766 = vadd.f32 %v3713, %v3762
  %v3767 = vmul.f32 %v3765, 0.5
  %v3768 = vmul.f32 %v3766, 0.5
  %v3769 = vtanh.pop %v3767
  %v3770 = vtanh.pop %v3768
  %v3771 = vmul.f32 %v3769, 0.5
  %v3772 = vmul.f32 %v3770, 0.5
  %v3773 = vadd.f32 %v3771, 0.5
  %v3774 = vadd.f32 %v3772, 0.5
  %v3775 = vtanh.pop %v3766
  %v3777 = vrot.slane %v3626, 6
  %v3779 = vmul.f32 %v3773, %v3777
  %3781 = vrot.lane.b32.xlu0 %v3775, 64
  %v3782 = vpop.permute.xlu0 %3781
  %v3784 = vmul.f32 %v3773, %v3782
  %3786 = vrot.lane.b32.xlu0 %v3784, 64
  %v3787 = vpop.permute.xlu0 %3786
  %v3789 = vadd.f32 %v3779, %v3787
  %v3790 = vtanh.pop %v3789
  %3792 = vrot.lane.b32.xlu0 %v3790, 64
  %v3793 = vpop.permute.xlu0 %3792
  %v3795 = vmul.f32 %v3774, %v3793
  %v3797 = vrot.slane %v3705, 6
  %3798 = vrot.lane.b32.xlu0 %v3797, 64
  %v3799 = vpop.permute.xlu0 %3798
  %v3801 = vsel %vm1155, %v3795, %v3799
  %v3802 = vpack.c.bf16 %v3801, %v3801
  %v3804 = vrot.slane %v3802, 1
  %3806 = vmatprep.subr.bf16.mxu0 %v1620
  %3807 = vmatpush1.bf16.msra.mxu0 %v1619
  %3808 = vmatprep.subr.bf16.mxu0 %v1618
  %3809 = vmatpush1.bf16.msra.mxu0 %v1617
  %3810 = vmatprep.subr.bf16.mxu0 %v1616
  %3811 = vmatpush1.bf16.msra.mxu0 %v1615
  %3812 = vmatprep.subr.bf16.mxu0 %v1614
  %3813 = vmatpush1.bf16.msra.mxu0 %v1613
  %3814 = vmatprep.subr.bf16.mxu0 %v1612
  %3815 = vmatpush1.bf16.msra.mxu0 %v1611
  %3816 = vmatprep.subr.bf16.mxu0 %v1610
  %3817 = vmatpush1.bf16.msra.mxu0 %v1609
  %3818 = vmatprep.subr.bf16.mxu0 %v1608
  %3819 = vmatpush1.bf16.msra.mxu0 %v1607
  %3820 = vmatprep.subr.bf16.mxu0 %v1606
  %3821 = vmatpush1.bf16.msra.mxu0 %v1605
  %3822 = vmatprep.subr.bf16.mxu0 0
  %3823 = vmatpush2.bf16.msra.mxu0 0
  %3824 = vmatprep.subr.bf16.mxu0 0
  %3825 = vmatpush2.bf16.msra.mxu0 0
  %3826 = vmatprep.subr.bf16.mxu0 0
  %3827 = vmatpush2.bf16.msra.mxu0 0
  %3828 = vmatprep.subr.bf16.mxu0 0
  %3829 = vmatpush2.bf16.msra.mxu0 0
  %3830 = vmatprep.subr.bf16.mxu0 0
  %3831 = vmatpush2.bf16.msra.mxu0 0
  %3832 = vmatprep.subr.bf16.mxu0 0
  %3833 = vmatpush2.bf16.msra.mxu0 0
  %3834 = vmatprep.subr.bf16.mxu0 0
  %3835 = vmatpush2.bf16.msra.mxu0 0
  %3836 = vmatprep.subr.bf16.mxu0 0
  %3837 = vmatpush2.bf16.msra.mxu0 0
  %3838 = vmatprep.mubr.bf16.mxu0 0
  %3839 = vmatmul.mubr.bf16.gmra.mxu0 %v3804
  %v3840 = vpop.f32.mrf.mxu0
  %v3841 = vadd.f32 %v1552, %v3840
  %v3842 = vpop.f32.mrf.mxu0
  %v3843 = vadd.f32 %v1556, %v3842
  %v3844 = vpop.f32.mrf.mxu0
  %v3845 = vpop.f32.mrf.mxu0
  %3846 = vdwg.mxu0
  %v3847 = vmul.f32 %v3841, 0.5
  %v3848 = vmul.f32 %v3843, 0.5
  %v3849 = vtanh.pop %v3847
  %v3850 = vtanh.pop %v3848
  %v3851 = vmul.f32 %v3849, 0.5
  %v3852 = vmul.f32 %v3850, 0.5
  %v3853 = vadd.f32 %v3851, 0.5
  %v3854 = vadd.f32 %v3852, 0.5
  %v3855 = vtanh.pop %v3843
  %v3856 = vmul.f32 %v3853, %v3699
  %3858 = vrot.lane.b32.xlu0 %v3855, 64
  %v3859 = vpop.permute.xlu0 %3858
  %v3861 = vmul.f32 %v3853, %v3859
  %3863 = vrot.lane.b32.xlu0 %v3861, 64
  %v3864 = vpop.permute.xlu0 %3863
  %v3866 = vadd.f32 %v3856, %v3864
  %v3867 = vtanh.pop %v3866
  %3869 = vrot.lane.b32.xlu0 %v3867, 64
  %v3870 = vpop.permute.xlu0 %3869
  %v3872 = vmul.f32 %v3854, %v3870
  %v3873 = vmul.f32 %v3872, %v1707
  %v3874 = vsel %vm1709, %v3873, 0.0
  %3875 = vadd.xlane.f32.xlu0 %v3874
  %v3876 = vpop.xlane.xlu0 %3875
  %v3877 = vadd.f32 %v3876, %v1716
  %3878 = vst.msk [vmem:[%s7 + $0x1a] sm:$0x3] %vm1718, %v3877
  %v3879 = vld [vmem:[#allocation2 + $0x30] sm:$0x30]
  %v3880 = vld [vmem:[#allocation2 + $0x38] sm:$0x30]
  %v3881 = vpack.c.bf16 %v3795, %v3795
  %v3883 = vrot.slane %v3881, 1
  %v3885 = vsel %vm1155, %v3883, 0
  %3887 = vmatprep.subr.bf16.mxu0 0
  %3888 = vmatpush1.bf16.msra.mxu0 0
  %3889 = vmatprep.subr.bf16.mxu0 0
  %3890 = vmatpush1.bf16.msra.mxu0 0
  %3891 = vmatprep.subr.bf16.mxu0 0
  %3892 = vmatpush1.bf16.msra.mxu0 0
  %3893 = vmatprep.subr.bf16.mxu0 0
  %3894 = vmatpush1.bf16.msra.mxu0 0
  %3895 = vmatprep.subr.bf16.mxu0 %v1466
  %3896 = vmatpush1.bf16.msra.mxu0 %v1465
  %3897 = vmatprep.subr.bf16.mxu0 %v1464
  %3898 = vmatpush1.bf16.msra.mxu0 %v1463
  %3899 = vmatprep.subr.bf16.mxu0 %v1462
  %3900 = vmatpush1.bf16.msra.mxu0 %v1461
  %3901 = vmatprep.subr.bf16.mxu0 %v1460
  %3902 = vmatpush1.bf16.msra.mxu0 %v1459
  %3903 = vmatprep.subr.bf16.mxu0 0
  %3904 = vmatpush2.bf16.msra.mxu0 0
  %3905 = vmatprep.subr.bf16.mxu0 0
  %3906 = vmatpush2.bf16.msra.mxu0 0
  %3907 = vmatprep.subr.bf16.mxu0 0
  %3908 = vmatpush2.bf16.msra.mxu0 0
  %3909 = vmatprep.subr.bf16.mxu0 0
  %3910 = vmatpush2.bf16.msra.mxu0 0
  %3911 = vmatprep.subr.bf16.mxu0 0
  %3912 = vmatpush2.bf16.msra.mxu0 0
  %3913 = vmatprep.subr.bf16.mxu0 0
  %3914 = vmatpush2.bf16.msra.mxu0 0
  %3915 = vmatprep.subr.bf16.mxu0 0
  %3916 = vmatpush2.bf16.msra.mxu0 0
  %3917 = vmatprep.subr.bf16.mxu0 0
  %3918 = vmatpush2.bf16.msra.mxu0 0
  %3919 = vmatprep.mubr.bf16.mxu0 0
  %3920 = vmatmul.mubr.bf16.gmra.mxu0 %v3885
  %v3921 = vpop.f32.mrf.mxu0
  %v3922 = vadd.f32 0.0, %v3921
  %v3923 = vpop.f32.mrf.mxu0
  %v3924 = vadd.f32 0.0, %v3923
  %v3925 = vpop.f32.mrf.mxu0
  %v3926 = vpop.f32.mrf.mxu0
  %3927 = vdwg.mxu0
  %v3930 = vrot.slane %v3922, 4
  %v3931 = vrot.slane %v3924, 4
  %v3934 = vadd.f32 %v3879, %v3930
  %v3935 = vadd.f32 %v3880, %v3931
  %v3936 = vmul.f32 %v3934, 0.5
  %v3937 = vmul.f32 %v3935, 0.5
  %v3938 = vtanh.pop %v3936
  %v3939 = vtanh.pop %v3937
  %v3940 = vmul.f32 %v3938, 0.5
  %v3941 = vmul.f32 %v3939, 0.5
  %v3942 = vadd.f32 %v3940, 0.5
  %v3943 = vadd.f32 %v3941, 0.5
  %v3944 = vtanh.pop %v3935
  %v3946 = vrot.slane %v3789, 6
  %v3948 = vmul.f32 %v3942, %v3946
  %3950 = vrot.lane.b32.xlu0 %v3944, 64
  %v3951 = vpop.permute.xlu0 %3950
  %v3953 = vmul.f32 %v3942, %v3951
  %3955 = vrot.lane.b32.xlu0 %v3953, 64
  %v3956 = vpop.permute.xlu0 %3955
  %v3958 = vadd.f32 %v3948, %v3956
  %v3959 = vtanh.pop %v3958
  %3961 = vrot.lane.b32.xlu0 %v3959, 64
  %v3962 = vpop.permute.xlu0 %3961
  %v3964 = vmul.f32 %v3943, %v3962
  %v3966 = vrot.slane %v3872, 4
  %3967 = vrot.lane.b32.xlu0 %v3966, 64
  %v3968 = vpop.permute.xlu0 %3967
  %v3970 = vsel %vm1155, %v3964, %v3968
  %v3971 = vpack.c.bf16 %v3970, %v3970
  %v3973 = vrot.slane %v3971, 2
  %3975 = vmatprep.subr.bf16.mxu0 %v1620
  %3976 = vmatpush1.bf16.msra.mxu0 %v1619
  %3977 = vmatprep.subr.bf16.mxu0 %v1618
  %3978 = vmatpush1.bf16.msra.mxu0 %v1617
  %3979 = vmatprep.subr.bf16.mxu0 %v1616
  %3980 = vmatpush1.bf16.msra.mxu0 %v1615
  %3981 = vmatprep.subr.bf16.mxu0 %v1614
  %3982 = vmatpush1.bf16.msra.mxu0 %v1613
  %3983 = vmatprep.subr.bf16.mxu0 %v1612
  %3984 = vmatpush1.bf16.msra.mxu0 %v1611
  %3985 = vmatprep.subr.bf16.mxu0 %v1610
  %3986 = vmatpush1.bf16.msra.mxu0 %v1609
  %3987 = vmatprep.subr.bf16.mxu0 %v1608
  %3988 = vmatpush1.bf16.msra.mxu0 %v1607
  %3989 = vmatprep.subr.bf16.mxu0 %v1606
  %3990 = vmatpush1.bf16.msra.mxu0 %v1605
  %3991 = vmatprep.subr.bf16.mxu0 0
  %3992 = vmatpush2.bf16.msra.mxu0 0
  %3993 = vmatprep.subr.bf16.mxu0 0
  %3994 = vmatpush2.bf16.msra.mxu0 0
  %3995 = vmatprep.subr.bf16.mxu0 0
  %3996 = vmatpush2.bf16.msra.mxu0 0
  %3997 = vmatprep.subr.bf16.mxu0 0
  %3998 = vmatpush2.bf16.msra.mxu0 0
  %3999 = vmatprep.subr.bf16.mxu0 0
  %4000 = vmatpush2.bf16.msra.mxu0 0
  %4001 = vmatprep.subr.bf16.mxu0 0
  %4002 = vmatpush2.bf16.msra.mxu0 0
  %4003 = vmatprep.subr.bf16.mxu0 0
  %4004 = vmatpush2.bf16.msra.mxu0 0
  %4005 = vmatprep.subr.bf16.mxu0 0
  %4006 = vmatpush2.bf16.msra.mxu0 0
  %4007 = vmatprep.mubr.bf16.mxu0 0
  %4008 = vmatmul.mubr.bf16.gmra.mxu0 %v3973
  %v4009 = vpop.f32.mrf.mxu0
  %v4010 = vadd.f32 %v1552, %v4009
  %v4011 = vpop.f32.mrf.mxu0
  %v4012 = vadd.f32 %v1556, %v4011
  %v4013 = vpop.f32.mrf.mxu0
  %v4014 = vpop.f32.mrf.mxu0
  %4015 = vdwg.mxu0
  %v4016 = vmul.f32 %v4010, 0.5
  %v4017 = vmul.f32 %v4012, 0.5
  %v4018 = vtanh.pop %v4016
  %v4019 = vtanh.pop %v4017
  %v4020 = vmul.f32 %v4018, 0.5
  %v4021 = vmul.f32 %v4019, 0.5
  %v4022 = vadd.f32 %v4020, 0.5
  %v4023 = vadd.f32 %v4021, 0.5
  %v4024 = vtanh.pop %v4012
  %v4025 = vmul.f32 %v4022, %v3866
  %4027 = vrot.lane.b32.xlu0 %v4024, 64
  %v4028 = vpop.permute.xlu0 %4027
  %v4030 = vmul.f32 %v4022, %v4028
  %4032 = vrot.lane.b32.xlu0 %v4030, 64
  %v4033 = vpop.permute.xlu0 %4032
  %v4035 = vadd.f32 %v4025, %v4033
  %v4036 = vtanh.pop %v4035
  %4038 = vrot.lane.b32.xlu0 %v4036, 64
  %v4039 = vpop.permute.xlu0 %4038
  %v4041 = vmul.f32 %v4023, %v4039
  %v4042 = vmul.f32 %v4041, %v1707
  %v4043 = vsel %vm1709, %v4042, 0.0
  %4044 = vadd.xlane.f32.xlu0 %v4043
  %v4045 = vpop.xlane.xlu0 %4044
  %v4046 = vadd.f32 %v4045, %v1716
  %4047 = vst.msk [vmem:[%s7 + $0x1c] sm:$0x3] %vm1718, %v4046
  %v4048 = vld [vmem:[#allocation2 + $0x30] sm:$0xc0]
  %v4049 = vld [vmem:[#allocation2 + $0x38] sm:$0xc0]
  %v4050 = vpack.c.bf16 %v3964, %v3964
  %v4052 = vrot.slane %v4050, 2
  %v4054 = vsel %vm1155, %v4052, 0
  %4056 = vmatprep.subr.bf16.mxu0 0
  %4057 = vmatpush1.bf16.msra.mxu0 0
  %4058 = vmatprep.subr.bf16.mxu0 0
  %4059 = vmatpush1.bf16.msra.mxu0 0
  %4060 = vmatprep.subr.bf16.mxu0 0
  %4061 = vmatpush1.bf16.msra.mxu0 0
  %4062 = vmatprep.subr.bf16.mxu0 0
  %4063 = vmatpush1.bf16.msra.mxu0 0
  %4064 = vmatprep.subr.bf16.mxu0 %v1466
  %4065 = vmatpush1.bf16.msra.mxu0 %v1465
  %4066 = vmatprep.subr.bf16.mxu0 %v1464
  %4067 = vmatpush1.bf16.msra.mxu0 %v1463
  %4068 = vmatprep.subr.bf16.mxu0 %v1462
  %4069 = vmatpush1.bf16.msra.mxu0 %v1461
  %4070 = vmatprep.subr.bf16.mxu0 %v1460
  %4071 = vmatpush1.bf16.msra.mxu0 %v1459
  %4072 = vmatprep.subr.bf16.mxu0 0
  %4073 = vmatpush2.bf16.msra.mxu0 0
  %4074 = vmatprep.subr.bf16.mxu0 0
  %4075 = vmatpush2.bf16.msra.mxu0 0
  %4076 = vmatprep.subr.bf16.mxu0 0
  %4077 = vmatpush2.bf16.msra.mxu0 0
  %4078 = vmatprep.subr.bf16.mxu0 0
  %4079 = vmatpush2.bf16.msra.mxu0 0
  %4080 = vmatprep.subr.bf16.mxu0 0
  %4081 = vmatpush2.bf16.msra.mxu0 0
  %4082 = vmatprep.subr.bf16.mxu0 0
  %4083 = vmatpush2.bf16.msra.mxu0 0
  %4084 = vmatprep.subr.bf16.mxu0 0
  %4085 = vmatpush2.bf16.msra.mxu0 0
  %4086 = vmatprep.subr.bf16.mxu0 0
  %4087 = vmatpush2.bf16.msra.mxu0 0
  %4088 = vmatprep.mubr.bf16.mxu0 0
  %4089 = vmatmul.mubr.bf16.gmra.mxu0 %v4054
  %v4090 = vpop.f32.mrf.mxu0
  %v4091 = vadd.f32 0.0, %v4090
  %v4092 = vpop.f32.mrf.mxu0
  %v4093 = vadd.f32 0.0, %v4092
  %v4094 = vpop.f32.mrf.mxu0
  %v4095 = vpop.f32.mrf.mxu0
  %4096 = vdwg.mxu0
  %v4099 = vrot.slane %v4091, 2
  %v4100 = vrot.slane %v4093, 2
  %v4103 = vadd.f32 %v4048, %v4099
  %v4104 = vadd.f32 %v4049, %v4100
  %v4105 = vmul.f32 %v4103, 0.5
  %v4106 = vmul.f32 %v4104, 0.5
  %v4107 = vtanh.pop %v4105
  %v4108 = vtanh.pop %v4106
  %v4109 = vmul.f32 %v4107, 0.5
  %v4110 = vmul.f32 %v4108, 0.5
  %v4111 = vadd.f32 %v4109, 0.5
  %v4112 = vadd.f32 %v4110, 0.5
  %v4113 = vtanh.pop %v4104
  %v4115 = vrot.slane %v3958, 6
  %v4117 = vmul.f32 %v4111, %v4115
  %4119 = vrot.lane.b32.xlu0 %v4113, 64
  %v4120 = vpop.permute.xlu0 %4119
  %v4122 = vmul.f32 %v4111, %v4120
  %4124 = vrot.lane.b32.xlu0 %v4122, 64
  %v4125 = vpop.permute.xlu0 %4124
  %v4127 = vadd.f32 %v4117, %v4125
  %v4128 = vtanh.pop %v4127
  %4130 = vrot.lane.b32.xlu0 %v4128, 64
  %v4131 = vpop.permute.xlu0 %4130
  %v4133 = vmul.f32 %v4112, %v4131
  %v4135 = vrot.slane %v4041, 2
  %4136 = vrot.lane.b32.xlu0 %v4135, 64
  %v4137 = vpop.permute.xlu0 %4136
  %v4139 = vsel %vm1155, %v4133, %v4137
  %v4140 = vpack.c.bf16 %v4139, %v4139
  %v4142 = vrot.slane %v4140, 3
  %4144 = vmatprep.subr.bf16.mxu0 %v1620
  %4145 = vmatpush1.bf16.msra.mxu0 %v1619
  %4146 = vmatprep.subr.bf16.mxu0 %v1618
  %4147 = vmatpush1.bf16.msra.mxu0 %v1617
  %4148 = vmatprep.subr.bf16.mxu0 %v1616
  %4149 = vmatpush1.bf16.msra.mxu0 %v1615
  %4150 = vmatprep.subr.bf16.mxu0 %v1614
  %4151 = vmatpush1.bf16.msra.mxu0 %v1613
  %4152 = vmatprep.subr.bf16.mxu0 %v1612
  %4153 = vmatpush1.bf16.msra.mxu0 %v1611
  %4154 = vmatprep.subr.bf16.mxu0 %v1610
  %4155 = vmatpush1.bf16.msra.mxu0 %v1609
  %4156 = vmatprep.subr.bf16.mxu0 %v1608
  %4157 = vmatpush1.bf16.msra.mxu0 %v1607
  %4158 = vmatprep.subr.bf16.mxu0 %v1606
  %4159 = vmatpush1.bf16.msra.mxu0 %v1605
  %4160 = vmatprep.subr.bf16.mxu0 0
  %4161 = vmatpush2.bf16.msra.mxu0 0
  %4162 = vmatprep.subr.bf16.mxu0 0
  %4163 = vmatpush2.bf16.msra.mxu0 0
  %4164 = vmatprep.subr.bf16.mxu0 0
  %4165 = vmatpush2.bf16.msra.mxu0 0
  %4166 = vmatprep.subr.bf16.mxu0 0
  %4167 = vmatpush2.bf16.msra.mxu0 0
  %4168 = vmatprep.subr.bf16.mxu0 0
  %4169 = vmatpush2.bf16.msra.mxu0 0
  %4170 = vmatprep.subr.bf16.mxu0 0
  %4171 = vmatpush2.bf16.msra.mxu0 0
  %4172 = vmatprep.subr.bf16.mxu0 0
  %4173 = vmatpush2.bf16.msra.mxu0 0
  %4174 = vmatprep.subr.bf16.mxu0 0
  %4175 = vmatpush2.bf16.msra.mxu0 0
  %4176 = vmatprep.mubr.bf16.mxu0 0
  %4177 = vmatmul.mubr.bf16.gmra.mxu0 %v4142
  %v4178 = vpop.f32.mrf.mxu0
  %v4179 = vadd.f32 %v1552, %v4178
  %v4180 = vpop.f32.mrf.mxu0
  %v4181 = vadd.f32 %v1556, %v4180
  %v4182 = vpop.f32.mrf.mxu0
  %v4183 = vpop.f32.mrf.mxu0
  %4184 = vdwg.mxu0
  %v4185 = vmul.f32 %v4179, 0.5
  %v4186 = vmul.f32 %v4181, 0.5
  %v4187 = vtanh.pop %v4185
  %v4188 = vtanh.pop %v4186
  %v4189 = vmul.f32 %v4187, 0.5
  %v4190 = vmul.f32 %v4188, 0.5
  %v4191 = vadd.f32 %v4189, 0.5
  %v4192 = vadd.f32 %v4190, 0.5
  %v4193 = vtanh.pop %v4181
  %v4194 = vmul.f32 %v4191, %v4035
  %4196 = vrot.lane.b32.xlu0 %v4193, 64
  %v4197 = vpop.permute.xlu0 %4196
  %v4199 = vmul.f32 %v4191, %v4197
  %4201 = vrot.lane.b32.xlu0 %v4199, 64
  %v4202 = vpop.permute.xlu0 %4201
  %v4204 = vadd.f32 %v4194, %v4202
  %v4205 = vtanh.pop %v4204
  %4207 = vrot.lane.b32.xlu0 %v4205, 64
  %v4208 = vpop.permute.xlu0 %4207
  %v4210 = vmul.f32 %v4192, %v4208
  %v4211 = vmul.f32 %v4210, %v1707
  %v4212 = vsel %vm1709, %v4211, 0.0
  %4213 = vadd.xlane.f32.xlu0 %v4212
  %v4214 = vpop.xlane.xlu0 %4213
  %v4215 = vadd.f32 %v4214, %v1716
  %4216 = vst.msk [vmem:[%s7 + $0x1e] sm:$0x3] %vm1718, %v4215
  // Predicated region
  $region30: #{tpu_custom_call.1} parent=0 // pred_check
    _
  $region31: #{tpu_custom_call.1} parent=0 // pred_check_branch
    %4218 = sbr.rel (0) target = $region33
  $region32: #{tpu_custom_call.1} parent=0 // pred_region
    _
  $region33: #{tpu_custom_call.1} parent=0 // pred_fallthru
    _
  // Predicated region
  $region34: #{tpu_custom_call.1} parent=0 // pred_check
    _
  $region35: #{tpu_custom_call.1} parent=0 // pred_check_branch
    %4220 = sbr.rel (0) target = $region37
  $region36: #{tpu_custom_call.1} parent=0 // pred_region
    _
  $region37: #{tpu_custom_call.1} parent=0 // pred_fallthru
    _

</llo_original>
